<compile_context>
chip_gen: v6e
topology: v6e:2x2x1
jax: 0.10.0
libtpu: 0.0.40
codegen_flags: <defaults>
</compile_context>

<pallas_src>
import functools

import numpy as np
import jax
import jax.numpy as jnp
from jax import lax
from jax.experimental import pallas as pl
from jax.experimental.pallas import tpu as pltpu


def _round_up(x, m):
    return ((x + m - 1) // m) * m


# --------------------------- fused forward kernel --------------------------- #

def _mil_kernel(x_ref, maskmat_ref, convw_ref, convb_ref, projw_ref, projb_ref,
                fc1w_ref, fc1b_ref, aw1_ref, ab1_ref, aw2_ref, ab2_ref,
                clin_ref, c1i_ref, c1c_ref, c1b_ref, c2w_ref, c2b_ref,
                res_ref, attn_ref, taps_ref, *, cpad, lanes, wp):
    # ---- Backbone: 3x3 conv (zero pad, stride 1) on the lane-flattened bag ----
    x = x_ref[...]                                            # (cpad, N*P)
    for kh in range(3):
        for kw in range(3):
            i = 3 * kh + kw
            d = kh * wp + kw
            # tap[q] = x[q + d]; lanes that wrap across image boundaries land only
            # in masked tail positions (see maskmat), so they never contribute.
            tap = x if d == 0 else pltpu.roll(x, shift=lanes - d, axis=1)
            taps_ref[i * cpad:(i + 1) * cpad, :] = tap
    conv = jnp.dot(convw_ref[...], taps_ref[...],
                   preferred_element_type=jnp.float32) + convb_ref[...]
    conv = jnp.maximum(conv, 0.0)                             # (cmid, N*P)  ReLU
    # Masked global-average-pool per image as one matmul (mask holds 1/(H*W)).
    pooled = jnp.dot(conv, maskmat_ref[...],
                     preferred_element_type=jnp.float32)      # (cmid, N)
    feats = jnp.maximum(
        jnp.dot(projw_ref[...], pooled, preferred_element_type=jnp.float32)
        + projb_ref[...], 0.0)                                # (F, N)  proj + ReLU

    # ---- Attention aggregator (Dropout = identity in eval mode) ----
    h = jnp.maximum(
        jnp.dot(fc1w_ref[...], feats, preferred_element_type=jnp.float32)
        + fc1b_ref[...], 0.0)                                 # (L, N)
    a1 = jnp.tanh(
        jnp.dot(aw1_ref[...], h, preferred_element_type=jnp.float32)
        + ab1_ref[...])                                       # (D, N)
    scores = jnp.dot(aw2_ref[...], a1,
                     preferred_element_type=jnp.float32) + ab2_ref[...]  # (1, N) lane-major
    # exact softmax over the bag, along lanes
    m = jnp.max(scores, axis=1, keepdims=True)
    e = jnp.exp(scores - m)
    p = e / jnp.sum(e, axis=1, keepdims=True)                 # (1, N)
    attn_ref[...] = p                                         # lane-dense output
    # aggregated feature = p @ h^T  (contract over the bag lanes) -> (1, L)
    agg = lax.dot_general(p, h, (((1,), (1,)), ((), ())),
                          preferred_element_type=jnp.float32)

    # ---- Classifier: clinical repeat(1,expand)+concat folded into split weights ----
    z = (jnp.dot(agg, c1i_ref[...], preferred_element_type=jnp.float32)
         + jnp.dot(clin_ref[...], c1c_ref[...], preferred_element_type=jnp.float32)
         + c1b_ref[...])
    z = jnp.maximum(z, 0.0)                                   # (1, hidden)
    res_ref[...] = (jnp.dot(z, c2w_ref[...], preferred_element_type=jnp.float32)
                    + c2b_ref[...])                           # (1, num_classes)


# --------------------------------- wrapper ----------------------------------- #

def mil_net_forward(packed, bag_data, clinical_data):
    """bag_data: (1, N, C, H, W); clinical_data: (1, clinical_size).

    Returns (result (1, num_classes), attention (1, N)) — same as the torch module.
    """
    bag = bag_data[0]                              # .squeeze(0) -> (N, C, H, W)
    N, C, H, W = bag.shape
    hp, wp = H + 2, W + 2
    flat = hp * wp
    P = _round_up(flat, 128)                       # per-image lane stride
    cpad = _round_up(C, 8)                         # channel pad for aligned tap stacking
    lanes = N * P

    cmid = packed["conv_w"].shape[0]
    F = packed["proj_w"].shape[0]
    L = packed["fc1_w"].shape[0]
    D = packed["attn_w1"].shape[0]
    hidden = packed["cls_w1_img"].shape[1]
    nc = packed["cls_w2"].shape[1]
    cs = clinical_data.shape[1]

    # Cheap layout prep: zero-pad spatial dims, flatten onto lanes, pad to a 128
    # multiple, stack images along lanes, pad channels to a sublane-tile multiple.
    xp = jnp.pad(bag, ((0, 0), (0, 0), (1, 1), (1, 1)))
    xflat = jnp.pad(xp.reshape(N, C, flat),
                    ((0, 0), (0, cpad - C), (0, P - flat)))   # (N, cpad, P)
    xflat = jnp.transpose(xflat, (1, 0, 2)).reshape(cpad, lanes)

    # Compile-time GAP mask matrix: maskmat[n*P + p, n] = 1/(H*W) at valid output
    # pixels, 0 at padding / tail / rolled-wrap lanes.
    pos = np.arange(P)
    valid = (((pos // wp) < H) & ((pos % wp) < W)).astype(np.float32) / float(H * W)
    mm = np.zeros((N, P, N), np.float32)
    for n in range(N):
        mm[n, :, n] = valid
    maskmat = jnp.asarray(mm.reshape(lanes, N))

    clinical = clinical_data.astype(jnp.float32)   # .float(); repeat folded into weights

    kernel = functools.partial(_mil_kernel, cpad=cpad, lanes=lanes, wp=wp)

    def full(shape):
        return pl.BlockSpec(shape, lambda i, _s=shape: (0,) * len(_s))

    result, attention = pl.pallas_call(
        kernel,
        out_shape=(jax.ShapeDtypeStruct((1, nc), jnp.float32),
                   jax.ShapeDtypeStruct((1, N), jnp.float32)),
        grid=(1,),
        in_specs=[
            full((cpad, lanes)), full((lanes, N)),
            full((cmid, 9 * cpad)), full((cmid, 1)),
            full((F, cmid)), full((F, 1)),
            full((L, F)), full((L, 1)),
            full((D, L)), full((D, 1)),
            full((1, D)), full((1, 1)),
            full((1, cs)),
            full((L, hidden)), full((cs, hidden)), full((1, hidden)),
            full((hidden, nc)), full((1, nc)),
        ],
        out_specs=(full((1, nc)), full((1, N))),
        scratch_shapes=[pltpu.VMEM((9 * cpad, lanes), jnp.float32)],
        compiler_params=pltpu.CompilerParams(dimension_semantics=("arbitrary",)),
    )(xflat, maskmat,
      packed["conv_w"], packed["conv_b"],
      packed["proj_w"], packed["proj_b"],
      packed["fc1_w"], packed["fc1_b"],
      packed["attn_w1"], packed["attn_b1"],
      packed["attn_w2"], packed["attn_b2"],
      clinical,
      packed["cls_w1_img"], packed["cls_w1_clin"], packed["cls_b1"],
      packed["cls_w2"], packed["cls_b2"])
    return result, attention


# ------------------------------ parameters ----------------------------------- #

def init_params(key, *, in_channels=3, conv_channels=8, feat_size=32, L=32, D=16,
                clinical_size=5, expand_times=10, hidden=64, num_classes=2):
    ks = jax.random.split(key, 14)

    def dense(kw, kb, fan_in, fan_out):
        scale = 1.0 / jnp.sqrt(jnp.float32(fan_in))
        w = jax.random.normal(kw, (fan_in, fan_out), jnp.float32) * scale
        b = jax.random.normal(kb, (1, fan_out), jnp.float32) * 0.01
        return w, b

    p = {}
    # conv weights in tap layout: (9 taps, out_channels, in_channels)
    p["conv_w"] = (jax.random.normal(ks[0], (9, conv_channels, in_channels), jnp.float32)
                   * (1.0 / jnp.sqrt(jnp.float32(in_channels * 9))))
    p["conv_b"] = jax.random.normal(ks[1], (conv_channels, 1), jnp.float32) * 0.01
    p["proj_w"], p["proj_b"] = dense(ks[2], ks[3], conv_channels, feat_size)
    p["fc1_w"], p["fc1_b"] = dense(ks[4], ks[5], feat_size, L)
    p["attn_w1"], p["attn_b1"] = dense(ks[6], ks[7], L, D)
    p["attn_w2"], p["attn_b2"] = dense(ks[8], ks[9], D, 1)
    fused_size = L + clinical_size * expand_times
    p["cls_w1"], p["cls_b1"] = dense(ks[10], ks[11], fused_size, hidden)
    p["cls_w2"], p["cls_b2"] = dense(ks[12], ks[13], hidden, num_classes)
    return p


def pack_params(p, *, clinical_size, expand_times):
    """One-time host-side repack into the layouts the fused kernel consumes."""
    _, cmid, C = p["conv_w"].shape
    cpad = _round_up(C, 8)
    L = p["fc1_w"].shape[1]
    # conv taps stacked along the contraction axis -> (cmid, 9*cpad)
    w = jnp.transpose(p["conv_w"], (1, 0, 2))                  # (cmid, 9, C)
    w = jnp.pad(w, ((0, 0), (0, 0), (0, cpad - C)))
    return {
        "conv_w": w.reshape(cmid, 9 * cpad),
        "conv_b": p["conv_b"],                                  # (cmid, 1)
        "proj_w": p["proj_w"].T,                                # (F, cmid)
        "proj_b": p["proj_b"].T,                                # (F, 1)
        "fc1_w": p["fc1_w"].T,                                  # (L, F)
        "fc1_b": p["fc1_b"].T,                                  # (L, 1)
        "attn_w1": p["attn_w1"].T,                              # (D, L)
        "attn_b1": p["attn_b1"].T,                              # (D, 1)
        "attn_w2": p["attn_w2"].T,                              # (1, D)
        "attn_b2": p["attn_b2"],                                # (1, 1)
        # tile(c, expand) @ W == c @ sum_t W[t-block]  (exact fold, done once)
        "cls_w1_img": p["cls_w1"][:L],                          # (L, hidden)
        "cls_w1_clin": p["cls_w1"][L:].reshape(expand_times, clinical_size, -1).sum(axis=0),
        "cls_b1": p["cls_b1"],                                  # (1, hidden)
        "cls_w2": p["cls_w2"],                                  # (hidden, nc)
        "cls_b2": p["cls_b2"],                                  # (1, nc)
    }


# ---------------------------------- main -------------------------------------- #

if __name__ == "__main__":
    key = jax.random.PRNGKey(0)
    k_params, k_bag, k_clin = jax.random.split(key, 3)

    num_classes = 2
    clinical_data_size = 5
    expand_times = 10
    N_PATCHES, C, H, W = 8, 3, 16, 16

    params = init_params(
        k_params,
        in_channels=C,
        clinical_size=clinical_data_size,
        expand_times=expand_times,
        num_classes=num_classes,
    )
    packed = pack_params(params, clinical_size=clinical_data_size,
                         expand_times=expand_times)

    bag_data = jax.random.normal(k_bag, (1, N_PATCHES, C, H, W), jnp.float32)
    clinical_data = jax.random.normal(k_clin, (1, clinical_data_size), jnp.float32)

    fwd = jax.jit(mil_net_forward)
    result, attention = fwd(packed, bag_data, clinical_data)
    jax.block_until_ready((result, attention))

    assert result.shape == (1, num_classes), result.shape
    assert attention.shape == (1, N_PATCHES), attention.shape
    assert bool(jnp.isfinite(result).all()) and bool(jnp.isfinite(attention).all())
    # attention is an exact softmax over the bag -> sums to 1
    assert bool(jnp.allclose(jnp.sum(attention), 1.0, atol=1e-3))

    print("KERNEL_OK")
</pallas_src>

<mosaic_0001>
module attributes {stable_mosaic.version = 11 : i64} {
  func.func @_mil_kernel(%arg0: i32, %arg1: memref<8x3072xf32, #tpu.memory_space<vmem>>, %arg2: memref<3072x8xf32, #tpu.memory_space<vmem>>, %arg3: memref<8x72xf32, #tpu.memory_space<vmem>>, %arg4: memref<8x1xf32, #tpu.memory_space<vmem>>, %arg5: memref<32x8xf32, #tpu.memory_space<vmem>>, %arg6: memref<32x1xf32, #tpu.memory_space<vmem>>, %arg7: memref<32x32xf32, #tpu.memory_space<vmem>>, %arg8: memref<32x1xf32, #tpu.memory_space<vmem>>, %arg9: memref<16x32xf32, #tpu.memory_space<vmem>>, %arg10: memref<16x1xf32, #tpu.memory_space<vmem>>, %arg11: memref<1x16xf32, #tpu.memory_space<vmem>>, %arg12: memref<1x1xf32, #tpu.memory_space<vmem>>, %arg13: memref<1x5xf32, #tpu.memory_space<vmem>>, %arg14: memref<32x64xf32, #tpu.memory_space<vmem>>, %arg15: memref<5x64xf32, #tpu.memory_space<vmem>>, %arg16: memref<1x64xf32, #tpu.memory_space<vmem>>, %arg17: memref<64x2xf32, #tpu.memory_space<vmem>>, %arg18: memref<1x2xf32, #tpu.memory_space<vmem>>, %arg19: memref<1x2xf32, #tpu.memory_space<vmem>>, %arg20: memref<1x8xf32, #tpu.memory_space<vmem>>, %arg21: memref<72x3072xf32, #tpu.memory_space<vmem>>) attributes {dimension_semantics = [#tpu.dimension_semantics<arbitrary>], iteration_bounds = array<i64: 1>, scalar_prefetch = 0 : i64, scratch_operands = 1 : i64, tpu.core_type = #tpu.core_type<tc>, window_params = [{pipeline_mode = #tpu.pipeline_mode<synchronous>, transform_indices = @transform_0, window_bounds = array<i64: 8, 3072>}, {pipeline_mode = #tpu.pipeline_mode<synchronous>, transform_indices = @transform_1, window_bounds = array<i64: 3072, 8>}, {pipeline_mode = #tpu.pipeline_mode<synchronous>, transform_indices = @transform_2, window_bounds = array<i64: 8, 72>}, {pipeline_mode = #tpu.pipeline_mode<synchronous>, transform_indices = @transform_3, window_bounds = array<i64: 8, 1>}, {pipeline_mode = #tpu.pipeline_mode<synchronous>, transform_indices = @transform_4, window_bounds = array<i64: 32, 8>}, {pipeline_mode = #tpu.pipeline_mode<synchronous>, transform_indices = @transform_5, window_bounds = array<i64: 32, 1>}, {pipeline_mode = #tpu.pipeline_mode<synchronous>, transform_indices = @transform_6, window_bounds = array<i64: 32, 32>}, {pipeline_mode = #tpu.pipeline_mode<synchronous>, transform_indices = @transform_7, window_bounds = array<i64: 32, 1>}, {pipeline_mode = #tpu.pipeline_mode<synchronous>, transform_indices = @transform_8, window_bounds = array<i64: 16, 32>}, {pipeline_mode = #tpu.pipeline_mode<synchronous>, transform_indices = @transform_9, window_bounds = array<i64: 16, 1>}, {pipeline_mode = #tpu.pipeline_mode<synchronous>, transform_indices = @transform_10, window_bounds = array<i64: 1, 16>}, {pipeline_mode = #tpu.pipeline_mode<synchronous>, transform_indices = @transform_11, window_bounds = array<i64: 1, 1>}, {pipeline_mode = #tpu.pipeline_mode<synchronous>, transform_indices = @transform_12, window_bounds = array<i64: 1, 5>}, {pipeline_mode = #tpu.pipeline_mode<synchronous>, transform_indices = @transform_13, window_bounds = array<i64: 32, 64>}, {pipeline_mode = #tpu.pipeline_mode<synchronous>, transform_indices = @transform_14, window_bounds = array<i64: 5, 64>}, {pipeline_mode = #tpu.pipeline_mode<synchronous>, transform_indices = @transform_15, window_bounds = array<i64: 1, 64>}, {pipeline_mode = #tpu.pipeline_mode<synchronous>, transform_indices = @transform_16, window_bounds = array<i64: 64, 2>}, {pipeline_mode = #tpu.pipeline_mode<synchronous>, transform_indices = @transform_17, window_bounds = array<i64: 1, 2>}, {pipeline_mode = #tpu.pipeline_mode<synchronous>, transform_indices = @transform_18, window_bounds = array<i64: 1, 2>}, {pipeline_mode = #tpu.pipeline_mode<synchronous>, transform_indices = @transform_19, window_bounds = array<i64: 1, 8>}]} {
    %c0 = arith.constant 0 : index
    %c0_0 = arith.constant 0 : index
    %0 = vector.load %arg1[%c0, %c0_0] : memref<8x3072xf32, #tpu.memory_space<vmem>>, vector<8x3072xf32>
    %c0_1 = arith.constant 0 : index
    %c0_2 = arith.constant 0 : index
    %1 = vector.load %arg21[%c0_1, %c0_2] : memref<72x3072xf32, #tpu.memory_space<vmem>>, vector<8x3072xf32>
    tpu.vector_store %arg21[%c0_1, %c0_2], %0 {strides = array<i32>} : memref<72x3072xf32, #tpu.memory_space<vmem>>, vector<8x3072xf32>,
    %c3071_i32 = arith.constant 3071 : i32
    %2 = tpu.dynamic_rotate %0 by %c3071_i32 dim 1 : vector<8x3072xf32>, i32 -> vector<8x3072xf32>
    %c8 = arith.constant 8 : index
    %c0_3 = arith.constant 0 : index
    %3 = vector.load %arg21[%c8, %c0_3] : memref<72x3072xf32, #tpu.memory_space<vmem>>, vector<8x3072xf32>
    tpu.vector_store %arg21[%c8, %c0_3], %2 {strides = array<i32>} : memref<72x3072xf32, #tpu.memory_space<vmem>>, vector<8x3072xf32>,
    %c3070_i32 = arith.constant 3070 : i32
    %4 = tpu.dynamic_rotate %0 by %c3070_i32 dim 1 : vector<8x3072xf32>, i32 -> vector<8x3072xf32>
    %c16 = arith.constant 16 : index
    %c0_4 = arith.constant 0 : index
    %5 = vector.load %arg21[%c16, %c0_4] : memref<72x3072xf32, #tpu.memory_space<vmem>>, vector<8x3072xf32>
    tpu.vector_store %arg21[%c16, %c0_4], %4 {strides = array<i32>} : memref<72x3072xf32, #tpu.memory_space<vmem>>, vector<8x3072xf32>,
    %c3054_i32 = arith.constant 3054 : i32
    %6 = tpu.dynamic_rotate %0 by %c3054_i32 dim 1 : vector<8x3072xf32>, i32 -> vector<8x3072xf32>
    %c24 = arith.constant 24 : index
    %c0_5 = arith.constant 0 : index
    %7 = vector.load %arg21[%c24, %c0_5] : memref<72x3072xf32, #tpu.memory_space<vmem>>, vector<8x3072xf32>
    tpu.vector_store %arg21[%c24, %c0_5], %6 {strides = array<i32>} : memref<72x3072xf32, #tpu.memory_space<vmem>>, vector<8x3072xf32>,
    %c3053_i32 = arith.constant 3053 : i32
    %8 = tpu.dynamic_rotate %0 by %c3053_i32 dim 1 : vector<8x3072xf32>, i32 -> vector<8x3072xf32>
    %c32 = arith.constant 32 : index
    %c0_6 = arith.constant 0 : index
    %9 = vector.load %arg21[%c32, %c0_6] : memref<72x3072xf32, #tpu.memory_space<vmem>>, vector<8x3072xf32>
    tpu.vector_store %arg21[%c32, %c0_6], %8 {strides = array<i32>} : memref<72x3072xf32, #tpu.memory_space<vmem>>, vector<8x3072xf32>,
    %c3052_i32 = arith.constant 3052 : i32
    %10 = tpu.dynamic_rotate %0 by %c3052_i32 dim 1 : vector<8x3072xf32>, i32 -> vector<8x3072xf32>
    %c40 = arith.constant 40 : index
    %c0_7 = arith.constant 0 : index
    %11 = vector.load %arg21[%c40, %c0_7] : memref<72x3072xf32, #tpu.memory_space<vmem>>, vector<8x3072xf32>
    tpu.vector_store %arg21[%c40, %c0_7], %10 {strides = array<i32>} : memref<72x3072xf32, #tpu.memory_space<vmem>>, vector<8x3072xf32>,
    %c3036_i32 = arith.constant 3036 : i32
    %12 = tpu.dynamic_rotate %0 by %c3036_i32 dim 1 : vector<8x3072xf32>, i32 -> vector<8x3072xf32>
    %c48 = arith.constant 48 : index
    %c0_8 = arith.constant 0 : index
    %13 = vector.load %arg21[%c48, %c0_8] : memref<72x3072xf32, #tpu.memory_space<vmem>>, vector<8x3072xf32>
    tpu.vector_store %arg21[%c48, %c0_8], %12 {strides = array<i32>} : memref<72x3072xf32, #tpu.memory_space<vmem>>, vector<8x3072xf32>,
    %c3035_i32 = arith.constant 3035 : i32
    %14 = tpu.dynamic_rotate %0 by %c3035_i32 dim 1 : vector<8x3072xf32>, i32 -> vector<8x3072xf32>
    %c56 = arith.constant 56 : index
    %c0_9 = arith.constant 0 : index
    %15 = vector.load %arg21[%c56, %c0_9] : memref<72x3072xf32, #tpu.memory_space<vmem>>, vector<8x3072xf32>
    tpu.vector_store %arg21[%c56, %c0_9], %14 {strides = array<i32>} : memref<72x3072xf32, #tpu.memory_space<vmem>>, vector<8x3072xf32>,
    %c3034_i32 = arith.constant 3034 : i32
    %16 = tpu.dynamic_rotate %0 by %c3034_i32 dim 1 : vector<8x3072xf32>, i32 -> vector<8x3072xf32>
    %c64 = arith.constant 64 : index
    %c0_10 = arith.constant 0 : index
    %17 = vector.load %arg21[%c64, %c0_10] : memref<72x3072xf32, #tpu.memory_space<vmem>>, vector<8x3072xf32>
    tpu.vector_store %arg21[%c64, %c0_10], %16 {strides = array<i32>} : memref<72x3072xf32, #tpu.memory_space<vmem>>, vector<8x3072xf32>,
    %c0_11 = arith.constant 0 : index
    %c0_12 = arith.constant 0 : index
    %18 = vector.load %arg3[%c0_11, %c0_12] : memref<8x72xf32, #tpu.memory_space<vmem>>, vector<8x72xf32>
    %c0_13 = arith.constant 0 : index
    %c0_14 = arith.constant 0 : index
    %19 = vector.load %arg21[%c0_13, %c0_14] : memref<72x3072xf32, #tpu.memory_space<vmem>>, vector<72x3072xf32>
    %cst = arith.constant dense<0.000000e+00> : vector<8x3072xf32>
    %20 = tpu.matmul %18, %19, %cst {dimension_numbers = #tpu.dot_dimension_numbers<[1], [0], [0], [1], [0, 0, 1, 1], [], []>} : vector<8x72xf32>, vector<72x3072xf32>, vector<8x3072xf32> -> vector<8x3072xf32>
    %c0_15 = arith.constant 0 : index
    %c0_16 = arith.constant 0 : index
    %21 = vector.load %arg4[%c0_15, %c0_16] : memref<8x1xf32, #tpu.memory_space<vmem>>, vector<8x1xf32>
    %22 = vector.broadcast %21 : vector<8x1xf32> to vector<8x3072xf32>
    %23 = arith.addf %20, %22 : vector<8x3072xf32>
    %cst_17 = arith.constant 0.000000e+00 : f32
    %24 = vector.broadcast %cst_17 : f32 to vector<8x3072xf32>
    %25 = arith.maximumf %23, %24 : vector<8x3072xf32>
    %c0_18 = arith.constant 0 : index
    %c0_19 = arith.constant 0 : index
    %26 = vector.load %arg2[%c0_18, %c0_19] : memref<3072x8xf32, #tpu.memory_space<vmem>>, vector<3072x8xf32>
    %cst_20 = arith.constant dense<0.000000e+00> : vector<8x8xf32>
    %27 = tpu.matmul %25, %26, %cst_20 {dimension_numbers = #tpu.dot_dimension_numbers<[1], [0], [0], [1], [0, 0, 1, 1], [], []>} : vector<8x3072xf32>, vector<3072x8xf32>, vector<8x8xf32> -> vector<8x8xf32>
    %c0_21 = arith.constant 0 : index
    %c0_22 = arith.constant 0 : index
    %28 = vector.load %arg5[%c0_21, %c0_22] : memref<32x8xf32, #tpu.memory_space<vmem>>, vector<32x8xf32>
    %cst_23 = arith.constant dense<0.000000e+00> : vector<32x8xf32>
    %29 = tpu.matmul %28, %27, %cst_23 {dimension_numbers = #tpu.dot_dimension_numbers<[1], [0], [0], [1], [0, 0, 1, 1], [], []>} : vector<32x8xf32>, vector<8x8xf32>, vector<32x8xf32> -> vector<32x8xf32>
    %c0_24 = arith.constant 0 : index
    %c0_25 = arith.constant 0 : index
    %30 = vector.load %arg6[%c0_24, %c0_25] : memref<32x1xf32, #tpu.memory_space<vmem>>, vector<32x1xf32>
    %31 = vector.broadcast %30 : vector<32x1xf32> to vector<32x8xf32>
    %32 = arith.addf %29, %31 : vector<32x8xf32>
    %cst_26 = arith.constant 0.000000e+00 : f32
    %33 = vector.broadcast %cst_26 : f32 to vector<32x8xf32>
    %34 = arith.maximumf %32, %33 : vector<32x8xf32>
    %c0_27 = arith.constant 0 : index
    %c0_28 = arith.constant 0 : index
    %35 = vector.load %arg7[%c0_27, %c0_28] : memref<32x32xf32, #tpu.memory_space<vmem>>, vector<32x32xf32>
    %cst_29 = arith.constant dense<0.000000e+00> : vector<32x8xf32>
    %36 = tpu.matmul %35, %34, %cst_29 {dimension_numbers = #tpu.dot_dimension_numbers<[1], [0], [0], [1], [0, 0, 1, 1], [], []>} : vector<32x32xf32>, vector<32x8xf32>, vector<32x8xf32> -> vector<32x8xf32>
    %c0_30 = arith.constant 0 : index
    %c0_31 = arith.constant 0 : index
    %37 = vector.load %arg8[%c0_30, %c0_31] : memref<32x1xf32, #tpu.memory_space<vmem>>, vector<32x1xf32>
    %38 = vector.broadcast %37 : vector<32x1xf32> to vector<32x8xf32>
    %39 = arith.addf %36, %38 : vector<32x8xf32>
    %cst_32 = arith.constant 0.000000e+00 : f32
    %40 = vector.broadcast %cst_32 : f32 to vector<32x8xf32>
    %41 = arith.maximumf %39, %40 : vector<32x8xf32>
    %c0_33 = arith.constant 0 : index
    %c0_34 = arith.constant 0 : index
    %42 = vector.load %arg9[%c0_33, %c0_34] : memref<16x32xf32, #tpu.memory_space<vmem>>, vector<16x32xf32>
    %cst_35 = arith.constant dense<0.000000e+00> : vector<16x8xf32>
    %43 = tpu.matmul %42, %41, %cst_35 {dimension_numbers = #tpu.dot_dimension_numbers<[1], [0], [0], [1], [0, 0, 1, 1], [], []>} : vector<16x32xf32>, vector<32x8xf32>, vector<16x8xf32> -> vector<16x8xf32>
    %c0_36 = arith.constant 0 : index
    %c0_37 = arith.constant 0 : index
    %44 = vector.load %arg10[%c0_36, %c0_37] : memref<16x1xf32, #tpu.memory_space<vmem>>, vector<16x1xf32>
    %45 = vector.broadcast %44 : vector<16x1xf32> to vector<16x8xf32>
    %46 = arith.addf %43, %45 : vector<16x8xf32>
    %47 = math.tanh %46 : vector<16x8xf32>
    %c0_38 = arith.constant 0 : index
    %c0_39 = arith.constant 0 : index
    %48 = vector.load %arg11[%c0_38, %c0_39] : memref<1x16xf32, #tpu.memory_space<vmem>>, vector<1x16xf32>
    %cst_40 = arith.constant dense<0.000000e+00> : vector<1x8xf32>
    %49 = tpu.matmul %48, %47, %cst_40 {dimension_numbers = #tpu.dot_dimension_numbers<[1], [0], [0], [1], [0, 0, 1, 1], [], []>} : vector<1x16xf32>, vector<16x8xf32>, vector<1x8xf32> -> vector<1x8xf32>
    %c0_41 = arith.constant 0 : index
    %c0_42 = arith.constant 0 : index
    %50 = vector.load %arg12[%c0_41, %c0_42] : memref<1x1xf32, #tpu.memory_space<vmem>>, vector<1x1xf32>
    %51 = vector.broadcast %50 : vector<1x1xf32> to vector<1x8xf32>
    %52 = arith.addf %49, %51 : vector<1x8xf32>
    %cst_43 = arith.constant dense<0xFF800000> : vector<1xf32>
    %53 = vector.multi_reduction <maximumf>, %52, %cst_43 [1] : vector<1x8xf32> to vector<1xf32>
    %54 = vector.shape_cast %53 : vector<1xf32> to vector<1x1xf32>
    %55 = vector.broadcast %54 : vector<1x1xf32> to vector<1x8xf32>
    %56 = arith.subf %52, %55 : vector<1x8xf32>
    %57 = math.exp %56 : vector<1x8xf32>
    %cst_44 = arith.constant dense<0.000000e+00> : vector<1xf32>
    %58 = vector.multi_reduction <add>, %57, %cst_44 [1] : vector<1x8xf32> to vector<1xf32>
    %59 = vector.shape_cast %58 : vector<1xf32> to vector<1x1xf32>
    %60 = vector.broadcast %59 : vector<1x1xf32> to vector<1x8xf32>
    %61 = arith.divf %57, %60 : vector<1x8xf32>
    %c0_45 = arith.constant 0 : index
    %c0_46 = arith.constant 0 : index
    %62 = vector.load %arg20[%c0_45, %c0_46] : memref<1x8xf32, #tpu.memory_space<vmem>>, vector<1x8xf32>
    tpu.vector_store %arg20[%c0_45, %c0_46], %61 {strides = array<i32>} : memref<1x8xf32, #tpu.memory_space<vmem>>, vector<1x8xf32>,
    %cst_47 = arith.constant dense<0.000000e+00> : vector<1x32xf32>
    %63 = tpu.matmul %61, %41, %cst_47 {dimension_numbers = #tpu.dot_dimension_numbers<[1], [1], [0], [0], [0, 0, 1, 0], [], []>} : vector<1x8xf32>, vector<32x8xf32>, vector<1x32xf32> -> vector<1x32xf32>
    %c0_48 = arith.constant 0 : index
    %c0_49 = arith.constant 0 : index
    %64 = vector.load %arg14[%c0_48, %c0_49] : memref<32x64xf32, #tpu.memory_space<vmem>>, vector<32x64xf32>
    %cst_50 = arith.constant dense<0.000000e+00> : vector<1x64xf32>
    %65 = tpu.matmul %63, %64, %cst_50 {dimension_numbers = #tpu.dot_dimension_numbers<[1], [0], [0], [1], [0, 0, 1, 1], [], []>} : vector<1x32xf32>, vector<32x64xf32>, vector<1x64xf32> -> vector<1x64xf32>
    %c0_51 = arith.constant 0 : index
    %c0_52 = arith.constant 0 : index
    %66 = vector.load %arg13[%c0_51, %c0_52] : memref<1x5xf32, #tpu.memory_space<vmem>>, vector<1x5xf32>
    %c0_53 = arith.constant 0 : index
    %c0_54 = arith.constant 0 : index
    %67 = vector.load %arg15[%c0_53, %c0_54] : memref<5x64xf32, #tpu.memory_space<vmem>>, vector<5x64xf32>
    %cst_55 = arith.constant dense<0.000000e+00> : vector<1x64xf32>
    %68 = tpu.matmul %66, %67, %cst_55 {dimension_numbers = #tpu.dot_dimension_numbers<[1], [0], [0], [1], [0, 0, 1, 1], [], []>} : vector<1x5xf32>, vector<5x64xf32>, vector<1x64xf32> -> vector<1x64xf32>
    %69 = arith.addf %65, %68 : vector<1x64xf32>
    %c0_56 = arith.constant 0 : index
    %c0_57 = arith.constant 0 : index
    %70 = vector.load %arg16[%c0_56, %c0_57] : memref<1x64xf32, #tpu.memory_space<vmem>>, vector<1x64xf32>
    %71 = arith.addf %69, %70 : vector<1x64xf32>
    %cst_58 = arith.constant 0.000000e+00 : f32
    %72 = vector.broadcast %cst_58 : f32 to vector<1x64xf32>
    %73 = arith.maximumf %71, %72 : vector<1x64xf32>
    %c0_59 = arith.constant 0 : index
    %c0_60 = arith.constant 0 : index
    %74 = vector.load %arg17[%c0_59, %c0_60] : memref<64x2xf32, #tpu.memory_space<vmem>>, vector<64x2xf32>
    %cst_61 = arith.constant dense<0.000000e+00> : vector<1x2xf32>
    %75 = tpu.matmul %73, %74, %cst_61 {dimension_numbers = #tpu.dot_dimension_numbers<[1], [0], [0], [1], [0, 0, 1, 1], [], []>} : vector<1x64xf32>, vector<64x2xf32>, vector<1x2xf32> -> vector<1x2xf32>
    %c0_62 = arith.constant 0 : index
    %c0_63 = arith.constant 0 : index
    %76 = vector.load %arg18[%c0_62, %c0_63] : memref<1x2xf32, #tpu.memory_space<vmem>>, vector<1x2xf32>
    %77 = arith.addf %75, %76 : vector<1x2xf32>
    %c0_64 = arith.constant 0 : index
    %c0_65 = arith.constant 0 : index
    %78 = vector.load %arg19[%c0_64, %c0_65] : memref<1x2xf32, #tpu.memory_space<vmem>>, vector<1x2xf32>
    tpu.vector_store %arg19[%c0_64, %c0_65], %77 {strides = array<i32>} : memref<1x2xf32, #tpu.memory_space<vmem>>, vector<1x2xf32>,
    return
  }
  func.func @transform_0(%arg0: i32) -> (i32, i32) {
    %c0_i32 = arith.constant 0 : i32
    %c0_i32_0 = arith.constant 0 : i32
    %c0_i32_1 = arith.constant 0 : i32
    return %c0_i32, %c0_i32_0 : i32, i32
  }
  func.func @transform_1(%arg0: i32) -> (i32, i32) {
    %c0_i32 = arith.constant 0 : i32
    %c0_i32_0 = arith.constant 0 : i32
    %c0_i32_1 = arith.constant 0 : i32
    return %c0_i32, %c0_i32_0 : i32, i32
  }
  func.func @transform_2(%arg0: i32) -> (i32, i32) {
    %c0_i32 = arith.constant 0 : i32
    %c0_i32_0 = arith.constant 0 : i32
    %c0_i32_1 = arith.constant 0 : i32
    return %c0_i32, %c0_i32_0 : i32, i32
  }
  func.func @transform_3(%arg0: i32) -> (i32, i32) {
    %c0_i32 = arith.constant 0 : i32
    %c0_i32_0 = arith.constant 0 : i32
    %c0_i32_1 = arith.constant 0 : i32
    return %c0_i32, %c0_i32_0 : i32, i32
  }
  func.func @transform_4(%arg0: i32) -> (i32, i32) {
    %c0_i32 = arith.constant 0 : i32
    %c0_i32_0 = arith.constant 0 : i32
    %c0_i32_1 = arith.constant 0 : i32
    return %c0_i32, %c0_i32_0 : i32, i32
  }
  func.func @transform_5(%arg0: i32) -> (i32, i32) {
    %c0_i32 = arith.constant 0 : i32
    %c0_i32_0 = arith.constant 0 : i32
    %c0_i32_1 = arith.constant 0 : i32
    return %c0_i32, %c0_i32_0 : i32, i32
  }
  func.func @transform_6(%arg0: i32) -> (i32, i32) {
    %c0_i32 = arith.constant 0 : i32
    %c0_i32_0 = arith.constant 0 : i32
    %c0_i32_1 = arith.constant 0 : i32
    return %c0_i32, %c0_i32_0 : i32, i32
  }
  func.func @transform_7(%arg0: i32) -> (i32, i32) {
    %c0_i32 = arith.constant 0 : i32
    %c0_i32_0 = arith.constant 0 : i32
    %c0_i32_1 = arith.constant 0 : i32
    return %c0_i32, %c0_i32_0 : i32, i32
  }
  func.func @transform_8(%arg0: i32) -> (i32, i32) {
    %c0_i32 = arith.constant 0 : i32
    %c0_i32_0 = arith.constant 0 : i32
    %c0_i32_1 = arith.constant 0 : i32
    return %c0_i32, %c0_i32_0 : i32, i32
  }
  func.func @transform_9(%arg0: i32) -> (i32, i32) {
    %c0_i32 = arith.constant 0 : i32
    %c0_i32_0 = arith.constant 0 : i32
    %c0_i32_1 = arith.constant 0 : i32
    return %c0_i32, %c0_i32_0 : i32, i32
  }
  func.func @transform_10(%arg0: i32) -> (i32, i32) {
    %c0_i32 = arith.constant 0 : i32
    %c0_i32_0 = arith.constant 0 : i32
    %c0_i32_1 = arith.constant 0 : i32
    return %c0_i32, %c0_i32_0 : i32, i32
  }
  func.func @transform_11(%arg0: i32) -> (i32, i32) {
    %c0_i32 = arith.constant 0 : i32
    %c0_i32_0 = arith.constant 0 : i32
    %c0_i32_1 = arith.constant 0 : i32
    return %c0_i32, %c0_i32_0 : i32, i32
  }
  func.func @transform_12(%arg0: i32) -> (i32, i32) {
    %c0_i32 = arith.constant 0 : i32
    %c0_i32_0 = arith.constant 0 : i32
    %c0_i32_1 = arith.constant 0 : i32
    return %c0_i32, %c0_i32_0 : i32, i32
  }
  func.func @transform_13(%arg0: i32) -> (i32, i32) {
    %c0_i32 = arith.constant 0 : i32
    %c0_i32_0 = arith.constant 0 : i32
    %c0_i32_1 = arith.constant 0 : i32
    return %c0_i32, %c0_i32_0 : i32, i32
  }
  func.func @transform_14(%arg0: i32) -> (i32, i32) {
    %c0_i32 = arith.constant 0 : i32
    %c0_i32_0 = arith.constant 0 : i32
    %c0_i32_1 = arith.constant 0 : i32
    return %c0_i32, %c0_i32_0 : i32, i32
  }
  func.func @transform_15(%arg0: i32) -> (i32, i32) {
    %c0_i32 = arith.constant 0 : i32
    %c0_i32_0 = arith.constant 0 : i32
    %c0_i32_1 = arith.constant 0 : i32
    return %c0_i32, %c0_i32_0 : i32, i32
  }
  func.func @transform_16(%arg0: i32) -> (i32, i32) {
    %c0_i32 = arith.constant 0 : i32
    %c0_i32_0 = arith.constant 0 : i32
    %c0_i32_1 = arith.constant 0 : i32
    return %c0_i32, %c0_i32_0 : i32, i32
  }
  func.func @transform_17(%arg0: i32) -> (i32, i32) {
    %c0_i32 = arith.constant 0 : i32
    %c0_i32_0 = arith.constant 0 : i32
    %c0_i32_1 = arith.constant 0 : i32
    return %c0_i32, %c0_i32_0 : i32, i32
  }
  func.func @transform_18(%arg0: i32) -> (i32, i32) {
    %c0_i32 = arith.constant 0 : i32
    %c0_i32_0 = arith.constant 0 : i32
    %c0_i32_1 = arith.constant 0 : i32
    return %c0_i32, %c0_i32_0 : i32, i32
  }
  func.func @transform_19(%arg0: i32) -> (i32, i32) {
    %c0_i32 = arith.constant 0 : i32
    %c0_i32_0 = arith.constant 0 : i32
    %c0_i32_1 = arith.constant 0 : i32
    return %c0_i32, %c0_i32_0 : i32, i32
  }
}

</mosaic_0001>

<llo_original>
// kernel: mil_net_forward.1
$region0: #{mil_net_forward.1}
  #allocation0 [shape = 'u32[]', space=smem, size = 0x4, offset = 0x4, fixed_abs, tag = 'smem constant byte address 0x4 - core index']
  #allocation1 [shape = 'u32[144,128]{1,0:T(1,128)}', space=vmem, size = 0x12000, scoped, tag = 'internal scratch']
  #allocation2 [shape = 'f32[72,3072]{1,0:T(8,128)}', space=vmem, size = 0xd8000, scoped, tag = 'scratch operand']
  #allocation3 [shape = 'f32[1,1]{1,0:T(1,128)S(1)}', space=vmem, size = 0x200, scoped, tag = 'scoped memory for mil_net_forward.1']
  %s0 = inlined_call_operand.vmem [shape: f32[8,3072], index: 0, kind: input, shape index: {}]
  %s1 = inlined_call_operand.hbm [shape: f32[3072,8], index: 1, kind: input, shape index: {}]
  %s2 = inlined_call_operand.hbm [shape: f32[8,72], index: 2, kind: input, shape index: {}]
  %s3 = inlined_call_operand.vmem [shape: f32[8,1], index: 3, kind: input, shape index: {}]
  %s4 = inlined_call_operand.vmem [shape: f32[32,8], index: 4, kind: input, shape index: {}]
  %s5 = inlined_call_operand.vmem [shape: f32[32,1], index: 5, kind: input, shape index: {}]
  %s6 = inlined_call_operand.hbm [shape: f32[32,32], index: 6, kind: input, shape index: {}]
  %s7 = inlined_call_operand.vmem [shape: f32[32,1], index: 7, kind: input, shape index: {}]
  %s8 = inlined_call_operand.hbm [shape: f32[16,32], index: 8, kind: input, shape index: {}]
  %s9 = inlined_call_operand.vmem [shape: f32[16,1], index: 9, kind: input, shape index: {}]
  %s10 = inlined_call_operand.hbm [shape: f32[1,16], index: 10, kind: input, shape index: {}]
  %s11 = inlined_call_operand.<no memory space> [shape: f32[1,1], index: 11, kind: input, shape index: {}]
  %s12 = inlined_call_operand.hbm [shape: f32[1,5], index: 12, kind: input, shape index: {}]
  %s13 = inlined_call_operand.hbm [shape: f32[32,64], index: 13, kind: input, shape index: {}]
  %s14 = inlined_call_operand.hbm [shape: f32[5,64], index: 14, kind: input, shape index: {}]
  %s15 = inlined_call_operand.hbm [shape: f32[1,64], index: 15, kind: input, shape index: {}]
  %s16 = inlined_call_operand.vmem [shape: f32[64,2], index: 16, kind: input, shape index: {}]
  %s17 = inlined_call_operand.hbm [shape: f32[1,2], index: 17, kind: input, shape index: {}]
  %s18 = inlined_call_operand.hbm [shape: f32[1,2], index: 18, kind: output, shape index: {0}]
  %s19 = inlined_call_operand.hbm [shape: f32[1,8], index: 19, kind: output, shape index: {1}]
  %20 = xla_tuple %s18, %s19
  %s21 = sld [smem:[#allocation0]]
  $region130: #{mil_net_forward.1} parent=0
    _
  %s23 = ssub.s32 1, %s21
  %s24 = scalar_select 0, %s23, %s21
  %v25 = vstv %s11
  %26 = vst [vmem:[#allocation3] sm:$0x1] %v25
  $region1: #{mil_net_forward.1} parent=0
    #allocation4 [shape = 'u8[1572864]{0}', space=vmem, size = 0x180000, scoped, tag = 'input window, operand 1, single buffered']
    #allocation5 [shape = 's32[1]{0}', space=sflag, size = 0x4, scoped, tag = 'scoped memory for mil_net_forward.1']
    #allocation6 [shape = 's32[1]{0}', space=sflag, size = 0x4, scoped, tag = 'scoped memory for mil_net_forward.1']
    #allocation7 [shape = 'u8[4096]{0}', space=vmem, size = 0x1000, scoped, tag = 'input window, operand 2, single buffered']
    #allocation8 [shape = 's32[1]{0}', space=sflag, size = 0x4, scoped, tag = 'scoped memory for mil_net_forward.1']
    #allocation9 [shape = 'u8[16384]{0}', space=vmem, size = 0x4000, scoped, tag = 'input window, operand 6, single buffered']
    #allocation10 [shape = 'u8[8192]{0}', space=vmem, size = 0x2000, scoped, tag = 'input window, operand 8, single buffered']
    #allocation11 [shape = 's32[1]{0}', space=sflag, size = 0x4, scoped, tag = 'scoped memory for mil_net_forward.1']
    #allocation12 [shape = 'u8[512]{0}', space=vmem, size = 0x400, scoped, tag = 'input window, operand 10, single buffered']
    #allocation13 [shape = 'u8[512]{0}', space=vmem, size = 0x400, scoped, tag = 'input window, operand 12, single buffered']
    #allocation14 [shape = 's32[1]{0}', space=sflag, size = 0x4, scoped, tag = 'scoped memory for mil_net_forward.1']
    #allocation15 [shape = 'u8[16384]{0}', space=vmem, size = 0x4000, scoped, tag = 'input window, operand 13, single buffered']
    #allocation16 [shape = 'u8[4096]{0}', space=vmem, size = 0x1000, scoped, tag = 'input window, operand 14, single buffered']
    #allocation17 [shape = 's32[1]{0}', space=sflag, size = 0x4, scoped, tag = 'scoped memory for mil_net_forward.1']
    #allocation18 [shape = 'u8[512]{0}', space=vmem, size = 0x400, scoped, tag = 'input window, operand 15, single buffered']
    #allocation19 [shape = 'u8[512]{0}', space=vmem, size = 0x400, scoped, tag = 'input window, operand 17, single buffered']
    #allocation20 [shape = 's32[1]{0}', space=sflag, size = 0x4, scoped, tag = 'scoped memory for mil_net_forward.1']
    #allocation21 [shape = 'u8[512]{0}', space=vmem, size = 0x400, scoped, tag = 'output window, operand 0, single buffered']
    #allocation22 [shape = 'u8[512]{0}', space=vmem, size = 0x400, scoped, tag = 'output window, operand 1, single buffered']
    #allocation23 [shape = 's32[1]{0}', space=sflag, size = 0x4, scoped, tag = 'scoped memory for mil_net_forward.1']
    %27 = vsyncpa [#allocation5], 0
    %28 = vsyncpa [#allocation8], 0
    %29 = vsyncpa [#allocation11], 0
    %30 = vsyncpa [#allocation14], 0
    %31 = vsyncpa [#allocation17], 0
    %32 = vsyncpa [#allocation20], 0
    %33 = vsyncpa [#allocation6], 0
    %34 = vsyncpa [#allocation23], 0
    // Predicated region
    $region2: #{mil_net_forward.1} parent=1 // pred_check
      _
    $region3: #{mil_net_forward.1} parent=1 // pred_check_branch
      %36 = sbr.rel (0) target = $region5
    $region4: #{mil_net_forward.1} parent=1 // pred_region
      _
    $region5: #{mil_net_forward.1} parent=1 // pred_fallthru
      _
    // Predicated region
    $region6: #{mil_net_forward.1} parent=1 // pred_check
      _
    $region7: #{mil_net_forward.1} parent=1 // pred_check_branch
      %38 = sbr.rel (0) target = $region9
    $region8: #{mil_net_forward.1} parent=1 // pred_region
      %s40 = ssub.s32 49152, 49152
      %41 = vsyncadd [#allocation5], %s40
      %s42 = sshll.u32 [#allocation4], 4
      %s43 = int_to_ptr.vmem [resolvable:$true] %s42
      %48 = dma.hbm_to_vmem [thread:$0]  %s1, 49152, %s43, [#allocation5], 128, 128, 8
    $region9: #{mil_net_forward.1} parent=1 // pred_fallthru
      _
    // Predicated region
    $region10: #{mil_net_forward.1} parent=1 // pred_check
      _
    $region11: #{mil_net_forward.1} parent=1 // pred_check_branch
      %50 = sbr.rel (0) target = $region13
    $region12: #{mil_net_forward.1} parent=1 // pred_region
      %s52 = ssub.s32 128, 128
      %53 = vsyncadd [#allocation8], %s52
      %s55 = sshll.u32 [#allocation7], 4
      %s56 = int_to_ptr.vmem [resolvable:$true] %s55
      %58 = dma.hbm_to_vmem [thread:$0]  %s2, 128, %s56, [#allocation8]
    $region13: #{mil_net_forward.1} parent=1 // pred_fallthru
      _
    // Predicated region
    $region14: #{mil_net_forward.1} parent=1 // pred_check
      _
    $region15: #{mil_net_forward.1} parent=1 // pred_check_branch
      %60 = sbr.rel (0) target = $region17
    $region16: #{mil_net_forward.1} parent=1 // pred_region
      _
    $region17: #{mil_net_forward.1} parent=1 // pred_fallthru
      _
    // Predicated region
    $region18: #{mil_net_forward.1} parent=1 // pred_check
      _
    $region19: #{mil_net_forward.1} parent=1 // pred_check_branch
      %62 = sbr.rel (0) target = $region21
    $region20: #{mil_net_forward.1} parent=1 // pred_region
      _
    $region21: #{mil_net_forward.1} parent=1 // pred_fallthru
      _
    // Predicated region
    $region22: #{mil_net_forward.1} parent=1 // pred_check
      _
    $region23: #{mil_net_forward.1} parent=1 // pred_check_branch
      %64 = sbr.rel (0) target = $region25
    $region24: #{mil_net_forward.1} parent=1 // pred_region
      _
    $region25: #{mil_net_forward.1} parent=1 // pred_fallthru
      _
    // Predicated region
    $region26: #{mil_net_forward.1} parent=1 // pred_check
      _
    $region27: #{mil_net_forward.1} parent=1 // pred_check_branch
      %66 = sbr.rel (0) target = $region29
    $region28: #{mil_net_forward.1} parent=1 // pred_region
      %s68 = ssub.s32 512, 512
      %69 = vsyncadd [#allocation8], %s68
      %s70 = sshll.u32 [#allocation9], 4
      %s71 = int_to_ptr.vmem [resolvable:$true] %s70
      %76 = dma.hbm_to_vmem [thread:$0]  %s6, 512, %s71, [#allocation8], 128, 128, 8
    $region29: #{mil_net_forward.1} parent=1 // pred_fallthru
      _
    // Predicated region
    $region30: #{mil_net_forward.1} parent=1 // pred_check
      _
    $region31: #{mil_net_forward.1} parent=1 // pred_check_branch
      %78 = sbr.rel (0) target = $region33
    $region32: #{mil_net_forward.1} parent=1 // pred_region
      _
    $region33: #{mil_net_forward.1} parent=1 // pred_fallthru
      _
    // Predicated region
    $region34: #{mil_net_forward.1} parent=1 // pred_check
      _
    $region35: #{mil_net_forward.1} parent=1 // pred_check_branch
      %80 = sbr.rel (0) target = $region37
    $region36: #{mil_net_forward.1} parent=1 // pred_region
      %s82 = ssub.s32 256, 256
      %83 = vsyncadd [#allocation11], %s82
      %s84 = sshll.u32 [#allocation10], 4
      %s85 = int_to_ptr.vmem [resolvable:$true] %s84
      %90 = dma.hbm_to_vmem [thread:$0]  %s8, 256, %s85, [#allocation11], 128, 128, 8
    $region37: #{mil_net_forward.1} parent=1 // pred_fallthru
      _
    // Predicated region
    $region38: #{mil_net_forward.1} parent=1 // pred_check
      _
    $region39: #{mil_net_forward.1} parent=1 // pred_check_branch
      %92 = sbr.rel (0) target = $region41
    $region40: #{mil_net_forward.1} parent=1 // pred_region
      _
    $region41: #{mil_net_forward.1} parent=1 // pred_fallthru
      _
    // Predicated region
    $region42: #{mil_net_forward.1} parent=1 // pred_check
      _
    $region43: #{mil_net_forward.1} parent=1 // pred_check_branch
      %94 = sbr.rel (0) target = $region45
    $region44: #{mil_net_forward.1} parent=1 // pred_region
      %s96 = ssub.s32 16, 16
      %97 = vsyncadd [#allocation11], %s96
      %s99 = sshll.u32 [#allocation12], 4
      %s100 = int_to_ptr.vmem [resolvable:$true] %s99
      %102 = dma.hbm_to_vmem [thread:$0]  %s10, 16, %s100, [#allocation11]
    $region45: #{mil_net_forward.1} parent=1 // pred_fallthru
      _
    // Predicated region
    $region46: #{mil_net_forward.1} parent=1 // pred_check
      _
    $region47: #{mil_net_forward.1} parent=1 // pred_check_branch
      %104 = sbr.rel (0) target = $region49
    $region48: #{mil_net_forward.1} parent=1 // pred_region
      _
    $region49: #{mil_net_forward.1} parent=1 // pred_fallthru
      _
    // Predicated region
    $region50: #{mil_net_forward.1} parent=1 // pred_check
      _
    $region51: #{mil_net_forward.1} parent=1 // pred_check_branch
      %106 = sbr.rel (0) target = $region53
    $region52: #{mil_net_forward.1} parent=1 // pred_region
      %s108 = ssub.s32 16, 16
      %109 = vsyncadd [#allocation14], %s108
      %s111 = sshll.u32 [#allocation13], 4
      %s112 = int_to_ptr.vmem [resolvable:$true] %s111
      %114 = dma.hbm_to_vmem [thread:$0]  %s12, 16, %s112, [#allocation14]
    $region53: #{mil_net_forward.1} parent=1 // pred_fallthru
      _
    // Predicated region
    $region54: #{mil_net_forward.1} parent=1 // pred_check
      _
    $region55: #{mil_net_forward.1} parent=1 // pred_check_branch
      %116 = sbr.rel (0) target = $region57
    $region56: #{mil_net_forward.1} parent=1 // pred_region
      %s118 = ssub.s32 512, 512
      %119 = vsyncadd [#allocation14], %s118
      %s120 = sshll.u32 [#allocation15], 4
      %s121 = int_to_ptr.vmem [resolvable:$true] %s120
      %126 = dma.hbm_to_vmem [thread:$0]  %s13, 512, %s121, [#allocation14], 128, 128, 8
    $region57: #{mil_net_forward.1} parent=1 // pred_fallthru
      _
    // Predicated region
    $region58: #{mil_net_forward.1} parent=1 // pred_check
      _
    $region59: #{mil_net_forward.1} parent=1 // pred_check_branch
      %128 = sbr.rel (0) target = $region61
    $region60: #{mil_net_forward.1} parent=1 // pred_region
      %s130 = ssub.s32 128, 128
      %131 = vsyncadd [#allocation17], %s130
      %s133 = sshll.u32 [#allocation16], 4
      %s134 = int_to_ptr.vmem [resolvable:$true] %s133
      %136 = dma.hbm_to_vmem [thread:$0]  %s14, 128, %s134, [#allocation17]
    $region61: #{mil_net_forward.1} parent=1 // pred_fallthru
      _
    // Predicated region
    $region62: #{mil_net_forward.1} parent=1 // pred_check
      _
    $region63: #{mil_net_forward.1} parent=1 // pred_check_branch
      %138 = sbr.rel (0) target = $region65
    $region64: #{mil_net_forward.1} parent=1 // pred_region
      %s140 = ssub.s32 16, 16
      %141 = vsyncadd [#allocation17], %s140
      %s143 = sshll.u32 [#allocation18], 4
      %s144 = int_to_ptr.vmem [resolvable:$true] %s143
      %146 = dma.hbm_to_vmem [thread:$0]  %s15, 16, %s144, [#allocation17]
    $region65: #{mil_net_forward.1} parent=1 // pred_fallthru
      _
    // Predicated region
    $region66: #{mil_net_forward.1} parent=1 // pred_check
      _
    $region67: #{mil_net_forward.1} parent=1 // pred_check_branch
      %148 = sbr.rel (0) target = $region69
    $region68: #{mil_net_forward.1} parent=1 // pred_region
      _
    $region69: #{mil_net_forward.1} parent=1 // pred_fallthru
      _
    // Predicated region
    $region70: #{mil_net_forward.1} parent=1 // pred_check
      _
    $region71: #{mil_net_forward.1} parent=1 // pred_check_branch
      %150 = sbr.rel (0) target = $region73
    $region72: #{mil_net_forward.1} parent=1 // pred_region
      %s152 = ssub.s32 16, 16
      %153 = vsyncadd [#allocation20], %s152
      %s155 = sshll.u32 [#allocation19], 4
      %s156 = int_to_ptr.vmem [resolvable:$true] %s155
      %158 = dma.hbm_to_vmem [thread:$0]  %s17, 16, %s156, [#allocation20]
    $region73: #{mil_net_forward.1} parent=1 // pred_fallthru
      _
    // Predicated region
    $region74: #{mil_net_forward.1} parent=1 // pred_check
      _
    $region75: #{mil_net_forward.1} parent=1 // pred_check_branch
      %160 = sbr.rel (0) target = $region77
    $region76: #{mil_net_forward.1} parent=1 // pred_region
      %161 = dma.done [#allocation5], 49152
    $region77: #{mil_net_forward.1} parent=1 // pred_fallthru
      _
    // Predicated region
    $region78: #{mil_net_forward.1} parent=1 // pred_check
      _
    $region79: #{mil_net_forward.1} parent=1 // pred_check_branch
      %163 = sbr.rel (0) target = $region81
    $region80: #{mil_net_forward.1} parent=1 // pred_region
      %164 = dma.done [#allocation8], 128
    $region81: #{mil_net_forward.1} parent=1 // pred_fallthru
      _
    // Predicated region
    $region82: #{mil_net_forward.1} parent=1 // pred_check
      _
    $region83: #{mil_net_forward.1} parent=1 // pred_check_branch
      %166 = sbr.rel (0) target = $region85
    $region84: #{mil_net_forward.1} parent=1 // pred_region
      %167 = dma.done [#allocation8], 512
    $region85: #{mil_net_forward.1} parent=1 // pred_fallthru
      _
    // Predicated region
    $region86: #{mil_net_forward.1} parent=1 // pred_check
      _
    $region87: #{mil_net_forward.1} parent=1 // pred_check_branch
      %169 = sbr.rel (0) target = $region89
    $region88: #{mil_net_forward.1} parent=1 // pred_region
      %170 = dma.done [#allocation11], 256
    $region89: #{mil_net_forward.1} parent=1 // pred_fallthru
      _
    // Predicated region
    $region90: #{mil_net_forward.1} parent=1 // pred_check
      _
    $region91: #{mil_net_forward.1} parent=1 // pred_check_branch
      %172 = sbr.rel (0) target = $region93
    $region92: #{mil_net_forward.1} parent=1 // pred_region
      %173 = dma.done [#allocation11], 16
    $region93: #{mil_net_forward.1} parent=1 // pred_fallthru
      _
    // Predicated region
    $region94: #{mil_net_forward.1} parent=1 // pred_check
      _
    $region95: #{mil_net_forward.1} parent=1 // pred_check_branch
      %175 = sbr.rel (0) target = $region97
    $region96: #{mil_net_forward.1} parent=1 // pred_region
      %176 = dma.done [#allocation14], 16
    $region97: #{mil_net_forward.1} parent=1 // pred_fallthru
      _
    // Predicated region
    $region98: #{mil_net_forward.1} parent=1 // pred_check
      _
    $region99: #{mil_net_forward.1} parent=1 // pred_check_branch
      %178 = sbr.rel (0) target = $region101
    $region100: #{mil_net_forward.1} parent=1 // pred_region
      %179 = dma.done [#allocation14], 512
    $region101: #{mil_net_forward.1} parent=1 // pred_fallthru
      _
    // Predicated region
    $region102: #{mil_net_forward.1} parent=1 // pred_check
      _
    $region103: #{mil_net_forward.1} parent=1 // pred_check_branch
      %181 = sbr.rel (0) target = $region105
    $region104: #{mil_net_forward.1} parent=1 // pred_region
      %182 = dma.done [#allocation17], 128
    $region105: #{mil_net_forward.1} parent=1 // pred_fallthru
      _
    // Predicated region
    $region106: #{mil_net_forward.1} parent=1 // pred_check
      _
    $region107: #{mil_net_forward.1} parent=1 // pred_check_branch
      %184 = sbr.rel (0) target = $region109
    $region108: #{mil_net_forward.1} parent=1 // pred_region
      %185 = dma.done [#allocation17], 16
    $region109: #{mil_net_forward.1} parent=1 // pred_fallthru
      _
    // Predicated region
    $region110: #{mil_net_forward.1} parent=1 // pred_check
      _
    $region111: #{mil_net_forward.1} parent=1 // pred_check_branch
      %187 = sbr.rel (0) target = $region113
    $region112: #{mil_net_forward.1} parent=1 // pred_region
      %188 = dma.done [#allocation20], 16
    $region113: #{mil_net_forward.1} parent=1 // pred_fallthru
      _
    %v189 = vld [vmem:[%s0] sm:$0xff]
    %v190 = vld [vmem:[%s0 + $0x8] sm:$0xff]
    %v191 = vld [vmem:[%s0 + $0x10] sm:$0xff]
    %v192 = vld [vmem:[%s0 + $0x18] sm:$0xff]
    %v193 = vld [vmem:[%s0 + $0x20] sm:$0xff]
    %v194 = vld [vmem:[%s0 + $0x28] sm:$0xff]
    %v195 = vld [vmem:[%s0 + $0x30] sm:$0xff]
    %v196 = vld [vmem:[%s0 + $0x38] sm:$0xff]
    %v197 = vld [vmem:[%s0 + $0x40] sm:$0xff]
    %v198 = vld [vmem:[%s0 + $0x48] sm:$0xff]
    %v199 = vld [vmem:[%s0 + $0x50] sm:$0xff]
    %v200 = vld [vmem:[%s0 + $0x58] sm:$0xff]
    %v201 = vld [vmem:[%s0 + $0x60] sm:$0xff]
    %v202 = vld [vmem:[%s0 + $0x68] sm:$0xff]
    %v203 = vld [vmem:[%s0 + $0x70] sm:$0xff]
    %v204 = vld [vmem:[%s0 + $0x78] sm:$0xff]
    %v205 = vld [vmem:[%s0 + $0x80] sm:$0xff]
    %v206 = vld [vmem:[%s0 + $0x88] sm:$0xff]
    %v207 = vld [vmem:[%s0 + $0x90] sm:$0xff]
    %v208 = vld [vmem:[%s0 + $0x98] sm:$0xff]
    %v209 = vld [vmem:[%s0 + $0xa0] sm:$0xff]
    %v210 = vld [vmem:[%s0 + $0xa8] sm:$0xff]
    %v211 = vld [vmem:[%s0 + $0xb0] sm:$0xff]
    %v212 = vld [vmem:[%s0 + $0xb8] sm:$0xff]
    %213 = vst [vmem:[#allocation2] sm:$0xff] %v189
    %214 = vst [vmem:[#allocation2 + $0x8] sm:$0xff] %v190
    %215 = vst [vmem:[#allocation2 + $0x10] sm:$0xff] %v191
    %216 = vst [vmem:[#allocation2 + $0x18] sm:$0xff] %v192
    %217 = vst [vmem:[#allocation2 + $0x20] sm:$0xff] %v193
    %218 = vst [vmem:[#allocation2 + $0x28] sm:$0xff] %v194
    %219 = vst [vmem:[#allocation2 + $0x30] sm:$0xff] %v195
    %220 = vst [vmem:[#allocation2 + $0x38] sm:$0xff] %v196
    %221 = vst [vmem:[#allocation2 + $0x40] sm:$0xff] %v197
    %222 = vst [vmem:[#allocation2 + $0x48] sm:$0xff] %v198
    %223 = vst [vmem:[#allocation2 + $0x50] sm:$0xff] %v199
    %224 = vst [vmem:[#allocation2 + $0x58] sm:$0xff] %v200
    %225 = vst [vmem:[#allocation2 + $0x60] sm:$0xff] %v201
    %226 = vst [vmem:[#allocation2 + $0x68] sm:$0xff] %v202
    %227 = vst [vmem:[#allocation2 + $0x70] sm:$0xff] %v203
    %228 = vst [vmem:[#allocation2 + $0x78] sm:$0xff] %v204
    %229 = vst [vmem:[#allocation2 + $0x80] sm:$0xff] %v205
    %230 = vst [vmem:[#allocation2 + $0x88] sm:$0xff] %v206
    %231 = vst [vmem:[#allocation2 + $0x90] sm:$0xff] %v207
    %232 = vst [vmem:[#allocation2 + $0x98] sm:$0xff] %v208
    %233 = vst [vmem:[#allocation2 + $0xa0] sm:$0xff] %v209
    %234 = vst [vmem:[#allocation2 + $0xa8] sm:$0xff] %v210
    %235 = vst [vmem:[#allocation2 + $0xb0] sm:$0xff] %v211
    %236 = vst [vmem:[#allocation2 + $0xb8] sm:$0xff] %v212
    %237 = vrot.lane.b32.xlu0 %v189, 127
    %v238 = vpop.permute.xlu0 %237
    %239 = vrot.lane.b32.xlu0 %v190, 127
    %v240 = vpop.permute.xlu0 %239
    %241 = vrot.lane.b32.xlu0 %v191, 127
    %v242 = vpop.permute.xlu0 %241
    %243 = vrot.lane.b32.xlu0 %v192, 127
    %v244 = vpop.permute.xlu0 %243
    %245 = vrot.lane.b32.xlu0 %v193, 127
    %v246 = vpop.permute.xlu0 %245
    %247 = vrot.lane.b32.xlu0 %v194, 127
    %v248 = vpop.permute.xlu0 %247
    %249 = vrot.lane.b32.xlu0 %v195, 127
    %v250 = vpop.permute.xlu0 %249
    %251 = vrot.lane.b32.xlu0 %v196, 127
    %v252 = vpop.permute.xlu0 %251
    %253 = vrot.lane.b32.xlu0 %v197, 127
    %v254 = vpop.permute.xlu0 %253
    %255 = vrot.lane.b32.xlu0 %v198, 127
    %v256 = vpop.permute.xlu0 %255
    %257 = vrot.lane.b32.xlu0 %v199, 127
    %v258 = vpop.permute.xlu0 %257
    %259 = vrot.lane.b32.xlu0 %v200, 127
    %v260 = vpop.permute.xlu0 %259
    %261 = vrot.lane.b32.xlu0 %v201, 127
    %v262 = vpop.permute.xlu0 %261
    %263 = vrot.lane.b32.xlu0 %v202, 127
    %v264 = vpop.permute.xlu0 %263
    %265 = vrot.lane.b32.xlu0 %v203, 127
    %v266 = vpop.permute.xlu0 %265
    %267 = vrot.lane.b32.xlu0 %v204, 127
    %v268 = vpop.permute.xlu0 %267
    %269 = vrot.lane.b32.xlu0 %v205, 127
    %v270 = vpop.permute.xlu0 %269
    %271 = vrot.lane.b32.xlu0 %v206, 127
    %v272 = vpop.permute.xlu0 %271
    %273 = vrot.lane.b32.xlu0 %v207, 127
    %v274 = vpop.permute.xlu0 %273
    %275 = vrot.lane.b32.xlu0 %v208, 127
    %v276 = vpop.permute.xlu0 %275
    %277 = vrot.lane.b32.xlu0 %v209, 127
    %v278 = vpop.permute.xlu0 %277
    %279 = vrot.lane.b32.xlu0 %v210, 127
    %v280 = vpop.permute.xlu0 %279
    %281 = vrot.lane.b32.xlu0 %v211, 127
    %v282 = vpop.permute.xlu0 %281
    %283 = vrot.lane.b32.xlu0 %v212, 127
    %v284 = vpop.permute.xlu0 %283
    %v285 = vlaneseq
    %v286 = vand.u32 %v285, 127
    %vm287 = vcmp.lt.s32.totalorder %v286, 127
    %v288 = vsel %vm287, %v282, %v284
    %v289 = vsel %vm287, %v280, %v282
    %v290 = vsel %vm287, %v278, %v280
    %v291 = vsel %vm287, %v276, %v278
    %v292 = vsel %vm287, %v274, %v276
    %v293 = vsel %vm287, %v272, %v274
    %v294 = vsel %vm287, %v270, %v272
    %v295 = vsel %vm287, %v268, %v270
    %v296 = vsel %vm287, %v266, %v268
    %v297 = vsel %vm287, %v264, %v266
    %v298 = vsel %vm287, %v262, %v264
    %v299 = vsel %vm287, %v260, %v262
    %v300 = vsel %vm287, %v258, %v260
    %v301 = vsel %vm287, %v256, %v258
    %v302 = vsel %vm287, %v254, %v256
    %v303 = vsel %vm287, %v252, %v254
    %v304 = vsel %vm287, %v250, %v252
    %v305 = vsel %vm287, %v248, %v250
    %v306 = vsel %vm287, %v246, %v248
    %v307 = vsel %vm287, %v244, %v246
    %v308 = vsel %vm287, %v242, %v244
    %v309 = vsel %vm287, %v240, %v242
    %v310 = vsel %vm287, %v238, %v240
    %v311 = vsel %vm287, %v284, %v238
    %312 = vst [vmem:[#allocation2 + $0xc0] sm:$0xff] %v310
    %313 = vst [vmem:[#allocation2 + $0xc8] sm:$0xff] %v309
    %314 = vst [vmem:[#allocation2 + $0xd0] sm:$0xff] %v308
    %315 = vst [vmem:[#allocation2 + $0xd8] sm:$0xff] %v307
    %316 = vst [vmem:[#allocation2 + $0xe0] sm:$0xff] %v306
    %317 = vst [vmem:[#allocation2 + $0xe8] sm:$0xff] %v305
    %318 = vst [vmem:[#allocation2 + $0xf0] sm:$0xff] %v304
    %319 = vst [vmem:[#allocation2 + $0xf8] sm:$0xff] %v303
    %320 = vst [vmem:[#allocation2 + $0x100] sm:$0xff] %v302
    %321 = vst [vmem:[#allocation2 + $0x108] sm:$0xff] %v301
    %322 = vst [vmem:[#allocation2 + $0x110] sm:$0xff] %v300
    %323 = vst [vmem:[#allocation2 + $0x118] sm:$0xff] %v299
    %324 = vst [vmem:[#allocation2 + $0x120] sm:$0xff] %v298
    %325 = vst [vmem:[#allocation2 + $0x128] sm:$0xff] %v297
    %326 = vst [vmem:[#allocation2 + $0x130] sm:$0xff] %v296
    %327 = vst [vmem:[#allocation2 + $0x138] sm:$0xff] %v295
    %328 = vst [vmem:[#allocation2 + $0x140] sm:$0xff] %v294
    %329 = vst [vmem:[#allocation2 + $0x148] sm:$0xff] %v293
    %330 = vst [vmem:[#allocation2 + $0x150] sm:$0xff] %v292
    %331 = vst [vmem:[#allocation2 + $0x158] sm:$0xff] %v291
    %332 = vst [vmem:[#allocation2 + $0x160] sm:$0xff] %v290
    %333 = vst [vmem:[#allocation2 + $0x168] sm:$0xff] %v289
    %334 = vst [vmem:[#allocation2 + $0x170] sm:$0xff] %v288
    %335 = vst [vmem:[#allocation2 + $0x178] sm:$0xff] %v311
    %336 = vrot.lane.b32.xlu0 %v189, 126
    %v337 = vpop.permute.xlu0 %336
    %338 = vrot.lane.b32.xlu0 %v190, 126
    %v339 = vpop.permute.xlu0 %338
    %340 = vrot.lane.b32.xlu0 %v191, 126
    %v341 = vpop.permute.xlu0 %340
    %342 = vrot.lane.b32.xlu0 %v192, 126
    %v343 = vpop.permute.xlu0 %342
    %344 = vrot.lane.b32.xlu0 %v193, 126
    %v345 = vpop.permute.xlu0 %344
    %346 = vrot.lane.b32.xlu0 %v194, 126
    %v347 = vpop.permute.xlu0 %346
    %348 = vrot.lane.b32.xlu0 %v195, 126
    %v349 = vpop.permute.xlu0 %348
    %350 = vrot.lane.b32.xlu0 %v196, 126
    %v351 = vpop.permute.xlu0 %350
    %352 = vrot.lane.b32.xlu0 %v197, 126
    %v353 = vpop.permute.xlu0 %352
    %354 = vrot.lane.b32.xlu0 %v198, 126
    %v355 = vpop.permute.xlu0 %354
    %356 = vrot.lane.b32.xlu0 %v199, 126
    %v357 = vpop.permute.xlu0 %356
    %358 = vrot.lane.b32.xlu0 %v200, 126
    %v359 = vpop.permute.xlu0 %358
    %360 = vrot.lane.b32.xlu0 %v201, 126
    %v361 = vpop.permute.xlu0 %360
    %362 = vrot.lane.b32.xlu0 %v202, 126
    %v363 = vpop.permute.xlu0 %362
    %364 = vrot.lane.b32.xlu0 %v203, 126
    %v365 = vpop.permute.xlu0 %364
    %366 = vrot.lane.b32.xlu0 %v204, 126
    %v367 = vpop.permute.xlu0 %366
    %368 = vrot.lane.b32.xlu0 %v205, 126
    %v369 = vpop.permute.xlu0 %368
    %370 = vrot.lane.b32.xlu0 %v206, 126
    %v371 = vpop.permute.xlu0 %370
    %372 = vrot.lane.b32.xlu0 %v207, 126
    %v373 = vpop.permute.xlu0 %372
    %374 = vrot.lane.b32.xlu0 %v208, 126
    %v375 = vpop.permute.xlu0 %374
    %376 = vrot.lane.b32.xlu0 %v209, 126
    %v377 = vpop.permute.xlu0 %376
    %378 = vrot.lane.b32.xlu0 %v210, 126
    %v379 = vpop.permute.xlu0 %378
    %380 = vrot.lane.b32.xlu0 %v211, 126
    %v381 = vpop.permute.xlu0 %380
    %382 = vrot.lane.b32.xlu0 %v212, 126
    %v383 = vpop.permute.xlu0 %382
    %vm384 = vcmp.lt.s32.totalorder %v286, 126
    %v385 = vsel %vm384, %v381, %v383
    %v386 = vsel %vm384, %v379, %v381
    %v387 = vsel %vm384, %v377, %v379
    %v388 = vsel %vm384, %v375, %v377
    %v389 = vsel %vm384, %v373, %v375
    %v390 = vsel %vm384, %v371, %v373
    %v391 = vsel %vm384, %v369, %v371
    %v392 = vsel %vm384, %v367, %v369
    %v393 = vsel %vm384, %v365, %v367
    %v394 = vsel %vm384, %v363, %v365
    %v395 = vsel %vm384, %v361, %v363
    %v396 = vsel %vm384, %v359, %v361
    %v397 = vsel %vm384, %v357, %v359
    %v398 = vsel %vm384, %v355, %v357
    %v399 = vsel %vm384, %v353, %v355
    %v400 = vsel %vm384, %v351, %v353
    %v401 = vsel %vm384, %v349, %v351
    %v402 = vsel %vm384, %v347, %v349
    %v403 = vsel %vm384, %v345, %v347
    %v404 = vsel %vm384, %v343, %v345
    %v405 = vsel %vm384, %v341, %v343
    %v406 = vsel %vm384, %v339, %v341
    %v407 = vsel %vm384, %v337, %v339
    %v408 = vsel %vm384, %v383, %v337
    %409 = vst [vmem:[#allocation2 + $0x180] sm:$0xff] %v407
    %410 = vst [vmem:[#allocation2 + $0x188] sm:$0xff] %v406
    %411 = vst [vmem:[#allocation2 + $0x190] sm:$0xff] %v405
    %412 = vst [vmem:[#allocation2 + $0x198] sm:$0xff] %v404
    %413 = vst [vmem:[#allocation2 + $0x1a0] sm:$0xff] %v403
    %414 = vst [vmem:[#allocation2 + $0x1a8] sm:$0xff] %v402
    %415 = vst [vmem:[#allocation2 + $0x1b0] sm:$0xff] %v401
    %416 = vst [vmem:[#allocation2 + $0x1b8] sm:$0xff] %v400
    %417 = vst [vmem:[#allocation2 + $0x1c0] sm:$0xff] %v399
    %418 = vst [vmem:[#allocation2 + $0x1c8] sm:$0xff] %v398
    %419 = vst [vmem:[#allocation2 + $0x1d0] sm:$0xff] %v397
    %420 = vst [vmem:[#allocation2 + $0x1d8] sm:$0xff] %v396
    %421 = vst [vmem:[#allocation2 + $0x1e0] sm:$0xff] %v395
    %422 = vst [vmem:[#allocation2 + $0x1e8] sm:$0xff] %v394
    %423 = vst [vmem:[#allocation2 + $0x1f0] sm:$0xff] %v393
    %424 = vst [vmem:[#allocation2 + $0x1f8] sm:$0xff] %v392
    %425 = vst [vmem:[#allocation2 + $0x200] sm:$0xff] %v391
    %426 = vst [vmem:[#allocation2 + $0x208] sm:$0xff] %v390
    %427 = vst [vmem:[#allocation2 + $0x210] sm:$0xff] %v389
    %428 = vst [vmem:[#allocation2 + $0x218] sm:$0xff] %v388
    %429 = vst [vmem:[#allocation2 + $0x220] sm:$0xff] %v387
    %430 = vst [vmem:[#allocation2 + $0x228] sm:$0xff] %v386
    %431 = vst [vmem:[#allocation2 + $0x230] sm:$0xff] %v385
    %432 = vst [vmem:[#allocation2 + $0x238] sm:$0xff] %v408
    %433 = vrot.lane.b32.xlu0 %v189, 110
    %v434 = vpop.permute.xlu0 %433
    %435 = vrot.lane.b32.xlu0 %v190, 110
    %v436 = vpop.permute.xlu0 %435
    %437 = vrot.lane.b32.xlu0 %v191, 110
    %v438 = vpop.permute.xlu0 %437
    %439 = vrot.lane.b32.xlu0 %v192, 110
    %v440 = vpop.permute.xlu0 %439
    %441 = vrot.lane.b32.xlu0 %v193, 110
    %v442 = vpop.permute.xlu0 %441
    %443 = vrot.lane.b32.xlu0 %v194, 110
    %v444 = vpop.permute.xlu0 %443
    %445 = vrot.lane.b32.xlu0 %v195, 110
    %v446 = vpop.permute.xlu0 %445
    %447 = vrot.lane.b32.xlu0 %v196, 110
    %v448 = vpop.permute.xlu0 %447
    %449 = vrot.lane.b32.xlu0 %v197, 110
    %v450 = vpop.permute.xlu0 %449
    %451 = vrot.lane.b32.xlu0 %v198, 110
    %v452 = vpop.permute.xlu0 %451
    %453 = vrot.lane.b32.xlu0 %v199, 110
    %v454 = vpop.permute.xlu0 %453
    %455 = vrot.lane.b32.xlu0 %v200, 110
    %v456 = vpop.permute.xlu0 %455
    %457 = vrot.lane.b32.xlu0 %v201, 110
    %v458 = vpop.permute.xlu0 %457
    %459 = vrot.lane.b32.xlu0 %v202, 110
    %v460 = vpop.permute.xlu0 %459
    %461 = vrot.lane.b32.xlu0 %v203, 110
    %v462 = vpop.permute.xlu0 %461
    %463 = vrot.lane.b32.xlu0 %v204, 110
    %v464 = vpop.permute.xlu0 %463
    %465 = vrot.lane.b32.xlu0 %v205, 110
    %v466 = vpop.permute.xlu0 %465
    %467 = vrot.lane.b32.xlu0 %v206, 110
    %v468 = vpop.permute.xlu0 %467
    %469 = vrot.lane.b32.xlu0 %v207, 110
    %v470 = vpop.permute.xlu0 %469
    %471 = vrot.lane.b32.xlu0 %v208, 110
    %v472 = vpop.permute.xlu0 %471
    %473 = vrot.lane.b32.xlu0 %v209, 110
    %v474 = vpop.permute.xlu0 %473
    %475 = vrot.lane.b32.xlu0 %v210, 110
    %v476 = vpop.permute.xlu0 %475
    %477 = vrot.lane.b32.xlu0 %v211, 110
    %v478 = vpop.permute.xlu0 %477
    %479 = vrot.lane.b32.xlu0 %v212, 110
    %v480 = vpop.permute.xlu0 %479
    %vm481 = vcmp.lt.s32.totalorder %v286, 110
    %v482 = vsel %vm481, %v478, %v480
    %v483 = vsel %vm481, %v476, %v478
    %v484 = vsel %vm481, %v474, %v476
    %v485 = vsel %vm481, %v472, %v474
    %v486 = vsel %vm481, %v470, %v472
    %v487 = vsel %vm481, %v468, %v470
    %v488 = vsel %vm481, %v466, %v468
    %v489 = vsel %vm481, %v464, %v466
    %v490 = vsel %vm481, %v462, %v464
    %v491 = vsel %vm481, %v460, %v462
    %v492 = vsel %vm481, %v458, %v460
    %v493 = vsel %vm481, %v456, %v458
    %v494 = vsel %vm481, %v454, %v456
    %v495 = vsel %vm481, %v452, %v454
    %v496 = vsel %vm481, %v450, %v452
    %v497 = vsel %vm481, %v448, %v450
    %v498 = vsel %vm481, %v446, %v448
    %v499 = vsel %vm481, %v444, %v446
    %v500 = vsel %vm481, %v442, %v444
    %v501 = vsel %vm481, %v440, %v442
    %v502 = vsel %vm481, %v438, %v440
    %v503 = vsel %vm481, %v436, %v438
    %v504 = vsel %vm481, %v434, %v436
    %v505 = vsel %vm481, %v480, %v434
    %506 = vst [vmem:[#allocation2 + $0x240] sm:$0xff] %v504
    %507 = vst [vmem:[#allocation2 + $0x248] sm:$0xff] %v503
    %508 = vst [vmem:[#allocation2 + $0x250] sm:$0xff] %v502
    %509 = vst [vmem:[#allocation2 + $0x258] sm:$0xff] %v501
    %510 = vst [vmem:[#allocation2 + $0x260] sm:$0xff] %v500
    %511 = vst [vmem:[#allocation2 + $0x268] sm:$0xff] %v499
    %512 = vst [vmem:[#allocation2 + $0x270] sm:$0xff] %v498
    %513 = vst [vmem:[#allocation2 + $0x278] sm:$0xff] %v497
    %514 = vst [vmem:[#allocation2 + $0x280] sm:$0xff] %v496
    %515 = vst [vmem:[#allocation2 + $0x288] sm:$0xff] %v495
    %516 = vst [vmem:[#allocation2 + $0x290] sm:$0xff] %v494
    %517 = vst [vmem:[#allocation2 + $0x298] sm:$0xff] %v493
    %518 = vst [vmem:[#allocation2 + $0x2a0] sm:$0xff] %v492
    %519 = vst [vmem:[#allocation2 + $0x2a8] sm:$0xff] %v491
    %520 = vst [vmem:[#allocation2 + $0x2b0] sm:$0xff] %v490
    %521 = vst [vmem:[#allocation2 + $0x2b8] sm:$0xff] %v489
    %522 = vst [vmem:[#allocation2 + $0x2c0] sm:$0xff] %v488
    %523 = vst [vmem:[#allocation2 + $0x2c8] sm:$0xff] %v487
    %524 = vst [vmem:[#allocation2 + $0x2d0] sm:$0xff] %v486
    %525 = vst [vmem:[#allocation2 + $0x2d8] sm:$0xff] %v485
    %526 = vst [vmem:[#allocation2 + $0x2e0] sm:$0xff] %v484
    %527 = vst [vmem:[#allocation2 + $0x2e8] sm:$0xff] %v483
    %528 = vst [vmem:[#allocation2 + $0x2f0] sm:$0xff] %v482
    %529 = vst [vmem:[#allocation2 + $0x2f8] sm:$0xff] %v505
    %530 = vrot.lane.b32.xlu0 %v189, 109
    %v531 = vpop.permute.xlu0 %530
    %532 = vrot.lane.b32.xlu0 %v190, 109
    %v533 = vpop.permute.xlu0 %532
    %534 = vrot.lane.b32.xlu0 %v191, 109
    %v535 = vpop.permute.xlu0 %534
    %536 = vrot.lane.b32.xlu0 %v192, 109
    %v537 = vpop.permute.xlu0 %536
    %538 = vrot.lane.b32.xlu0 %v193, 109
    %v539 = vpop.permute.xlu0 %538
    %540 = vrot.lane.b32.xlu0 %v194, 109
    %v541 = vpop.permute.xlu0 %540
    %542 = vrot.lane.b32.xlu0 %v195, 109
    %v543 = vpop.permute.xlu0 %542
    %544 = vrot.lane.b32.xlu0 %v196, 109
    %v545 = vpop.permute.xlu0 %544
    %546 = vrot.lane.b32.xlu0 %v197, 109
    %v547 = vpop.permute.xlu0 %546
    %548 = vrot.lane.b32.xlu0 %v198, 109
    %v549 = vpop.permute.xlu0 %548
    %550 = vrot.lane.b32.xlu0 %v199, 109
    %v551 = vpop.permute.xlu0 %550
    %552 = vrot.lane.b32.xlu0 %v200, 109
    %v553 = vpop.permute.xlu0 %552
    %554 = vrot.lane.b32.xlu0 %v201, 109
    %v555 = vpop.permute.xlu0 %554
    %556 = vrot.lane.b32.xlu0 %v202, 109
    %v557 = vpop.permute.xlu0 %556
    %558 = vrot.lane.b32.xlu0 %v203, 109
    %v559 = vpop.permute.xlu0 %558
    %560 = vrot.lane.b32.xlu0 %v204, 109
    %v561 = vpop.permute.xlu0 %560
    %562 = vrot.lane.b32.xlu0 %v205, 109
    %v563 = vpop.permute.xlu0 %562
    %564 = vrot.lane.b32.xlu0 %v206, 109
    %v565 = vpop.permute.xlu0 %564
    %566 = vrot.lane.b32.xlu0 %v207, 109
    %v567 = vpop.permute.xlu0 %566
    %568 = vrot.lane.b32.xlu0 %v208, 109
    %v569 = vpop.permute.xlu0 %568
    %570 = vrot.lane.b32.xlu0 %v209, 109
    %v571 = vpop.permute.xlu0 %570
    %572 = vrot.lane.b32.xlu0 %v210, 109
    %v573 = vpop.permute.xlu0 %572
    %574 = vrot.lane.b32.xlu0 %v211, 109
    %v575 = vpop.permute.xlu0 %574
    %576 = vrot.lane.b32.xlu0 %v212, 109
    %v577 = vpop.permute.xlu0 %576
    %vm578 = vcmp.lt.s32.totalorder %v286, 109
    %v579 = vsel %vm578, %v575, %v577
    %v580 = vsel %vm578, %v573, %v575
    %v581 = vsel %vm578, %v571, %v573
    %v582 = vsel %vm578, %v569, %v571
    %v583 = vsel %vm578, %v567, %v569
    %v584 = vsel %vm578, %v565, %v567
    %v585 = vsel %vm578, %v563, %v565
    %v586 = vsel %vm578, %v561, %v563
    %v587 = vsel %vm578, %v559, %v561
    %v588 = vsel %vm578, %v557, %v559
    %v589 = vsel %vm578, %v555, %v557
    %v590 = vsel %vm578, %v553, %v555
    %v591 = vsel %vm578, %v551, %v553
    %v592 = vsel %vm578, %v549, %v551
    %v593 = vsel %vm578, %v547, %v549
    %v594 = vsel %vm578, %v545, %v547
    %v595 = vsel %vm578, %v543, %v545
    %v596 = vsel %vm578, %v541, %v543
    %v597 = vsel %vm578, %v539, %v541
    %v598 = vsel %vm578, %v537, %v539
    %v599 = vsel %vm578, %v535, %v537
    %v600 = vsel %vm578, %v533, %v535
    %v601 = vsel %vm578, %v531, %v533
    %v602 = vsel %vm578, %v577, %v531
    %603 = vst [vmem:[#allocation2 + $0x300] sm:$0xff] %v601
    %604 = vst [vmem:[#allocation2 + $0x308] sm:$0xff] %v600
    %605 = vst [vmem:[#allocation2 + $0x310] sm:$0xff] %v599
    %606 = vst [vmem:[#allocation2 + $0x318] sm:$0xff] %v598
    %607 = vst [vmem:[#allocation2 + $0x320] sm:$0xff] %v597
    %608 = vst [vmem:[#allocation2 + $0x328] sm:$0xff] %v596
    %609 = vst [vmem:[#allocation2 + $0x330] sm:$0xff] %v595
    %610 = vst [vmem:[#allocation2 + $0x338] sm:$0xff] %v594
    %611 = vst [vmem:[#allocation2 + $0x340] sm:$0xff] %v593
    %612 = vst [vmem:[#allocation2 + $0x348] sm:$0xff] %v592
    %613 = vst [vmem:[#allocation2 + $0x350] sm:$0xff] %v591
    %614 = vst [vmem:[#allocation2 + $0x358] sm:$0xff] %v590
    %615 = vst [vmem:[#allocation2 + $0x360] sm:$0xff] %v589
    %616 = vst [vmem:[#allocation2 + $0x368] sm:$0xff] %v588
    %617 = vst [vmem:[#allocation2 + $0x370] sm:$0xff] %v587
    %618 = vst [vmem:[#allocation2 + $0x378] sm:$0xff] %v586
    %619 = vst [vmem:[#allocation2 + $0x380] sm:$0xff] %v585
    %620 = vst [vmem:[#allocation2 + $0x388] sm:$0xff] %v584
    %621 = vst [vmem:[#allocation2 + $0x390] sm:$0xff] %v583
    %622 = vst [vmem:[#allocation2 + $0x398] sm:$0xff] %v582
    %623 = vst [vmem:[#allocation2 + $0x3a0] sm:$0xff] %v581
    %624 = vst [vmem:[#allocation2 + $0x3a8] sm:$0xff] %v580
    %625 = vst [vmem:[#allocation2 + $0x3b0] sm:$0xff] %v579
    %626 = vst [vmem:[#allocation2 + $0x3b8] sm:$0xff] %v602
    %627 = vrot.lane.b32.xlu0 %v189, 108
    %v628 = vpop.permute.xlu0 %627
    %629 = vrot.lane.b32.xlu0 %v190, 108
    %v630 = vpop.permute.xlu0 %629
    %631 = vrot.lane.b32.xlu0 %v191, 108
    %v632 = vpop.permute.xlu0 %631
    %633 = vrot.lane.b32.xlu0 %v192, 108
    %v634 = vpop.permute.xlu0 %633
    %635 = vrot.lane.b32.xlu0 %v193, 108
    %v636 = vpop.permute.xlu0 %635
    %637 = vrot.lane.b32.xlu0 %v194, 108
    %v638 = vpop.permute.xlu0 %637
    %639 = vrot.lane.b32.xlu0 %v195, 108
    %v640 = vpop.permute.xlu0 %639
    %641 = vrot.lane.b32.xlu0 %v196, 108
    %v642 = vpop.permute.xlu0 %641
    %643 = vrot.lane.b32.xlu0 %v197, 108
    %v644 = vpop.permute.xlu0 %643
    %645 = vrot.lane.b32.xlu0 %v198, 108
    %v646 = vpop.permute.xlu0 %645
    %647 = vrot.lane.b32.xlu0 %v199, 108
    %v648 = vpop.permute.xlu0 %647
    %649 = vrot.lane.b32.xlu0 %v200, 108
    %v650 = vpop.permute.xlu0 %649
    %651 = vrot.lane.b32.xlu0 %v201, 108
    %v652 = vpop.permute.xlu0 %651
    %653 = vrot.lane.b32.xlu0 %v202, 108
    %v654 = vpop.permute.xlu0 %653
    %655 = vrot.lane.b32.xlu0 %v203, 108
    %v656 = vpop.permute.xlu0 %655
    %657 = vrot.lane.b32.xlu0 %v204, 108
    %v658 = vpop.permute.xlu0 %657
    %659 = vrot.lane.b32.xlu0 %v205, 108
    %v660 = vpop.permute.xlu0 %659
    %661 = vrot.lane.b32.xlu0 %v206, 108
    %v662 = vpop.permute.xlu0 %661
    %663 = vrot.lane.b32.xlu0 %v207, 108
    %v664 = vpop.permute.xlu0 %663
    %665 = vrot.lane.b32.xlu0 %v208, 108
    %v666 = vpop.permute.xlu0 %665
    %667 = vrot.lane.b32.xlu0 %v209, 108
    %v668 = vpop.permute.xlu0 %667
    %669 = vrot.lane.b32.xlu0 %v210, 108
    %v670 = vpop.permute.xlu0 %669
    %671 = vrot.lane.b32.xlu0 %v211, 108
    %v672 = vpop.permute.xlu0 %671
    %673 = vrot.lane.b32.xlu0 %v212, 108
    %v674 = vpop.permute.xlu0 %673
    %vm675 = vcmp.lt.s32.totalorder %v286, 108
    %v676 = vsel %vm675, %v672, %v674
    %v677 = vsel %vm675, %v670, %v672
    %v678 = vsel %vm675, %v668, %v670
    %v679 = vsel %vm675, %v666, %v668
    %v680 = vsel %vm675, %v664, %v666
    %v681 = vsel %vm675, %v662, %v664
    %v682 = vsel %vm675, %v660, %v662
    %v683 = vsel %vm675, %v658, %v660
    %v684 = vsel %vm675, %v656, %v658
    %v685 = vsel %vm675, %v654, %v656
    %v686 = vsel %vm675, %v652, %v654
    %v687 = vsel %vm675, %v650, %v652
    %v688 = vsel %vm675, %v648, %v650
    %v689 = vsel %vm675, %v646, %v648
    %v690 = vsel %vm675, %v644, %v646
    %v691 = vsel %vm675, %v642, %v644
    %v692 = vsel %vm675, %v640, %v642
    %v693 = vsel %vm675, %v638, %v640
    %v694 = vsel %vm675, %v636, %v638
    %v695 = vsel %vm675, %v634, %v636
    %v696 = vsel %vm675, %v632, %v634
    %v697 = vsel %vm675, %v630, %v632
    %v698 = vsel %vm675, %v628, %v630
    %v699 = vsel %vm675, %v674, %v628
    %700 = vst [vmem:[#allocation2 + $0x3c0] sm:$0xff] %v698
    %701 = vst [vmem:[#allocation2 + $0x3c8] sm:$0xff] %v697
    %702 = vst [vmem:[#allocation2 + $0x3d0] sm:$0xff] %v696
    %703 = vst [vmem:[#allocation2 + $0x3d8] sm:$0xff] %v695
    %704 = vst [vmem:[#allocation2 + $0x3e0] sm:$0xff] %v694
    %705 = vst [vmem:[#allocation2 + $0x3e8] sm:$0xff] %v693
    %706 = vst [vmem:[#allocation2 + $0x3f0] sm:$0xff] %v692
    %707 = vst [vmem:[#allocation2 + $0x3f8] sm:$0xff] %v691
    %708 = vst [vmem:[#allocation2 + $0x400] sm:$0xff] %v690
    %709 = vst [vmem:[#allocation2 + $0x408] sm:$0xff] %v689
    %710 = vst [vmem:[#allocation2 + $0x410] sm:$0xff] %v688
    %711 = vst [vmem:[#allocation2 + $0x418] sm:$0xff] %v687
    %712 = vst [vmem:[#allocation2 + $0x420] sm:$0xff] %v686
    %713 = vst [vmem:[#allocation2 + $0x428] sm:$0xff] %v685
    %714 = vst [vmem:[#allocation2 + $0x430] sm:$0xff] %v684
    %715 = vst [vmem:[#allocation2 + $0x438] sm:$0xff] %v683
    %716 = vst [vmem:[#allocation2 + $0x440] sm:$0xff] %v682
    %717 = vst [vmem:[#allocation2 + $0x448] sm:$0xff] %v681
    %718 = vst [vmem:[#allocation2 + $0x450] sm:$0xff] %v680
    %719 = vst [vmem:[#allocation2 + $0x458] sm:$0xff] %v679
    %720 = vst [vmem:[#allocation2 + $0x460] sm:$0xff] %v678
    %721 = vst [vmem:[#allocation2 + $0x468] sm:$0xff] %v677
    %722 = vst [vmem:[#allocation2 + $0x470] sm:$0xff] %v676
    %723 = vst [vmem:[#allocation2 + $0x478] sm:$0xff] %v699
    %724 = vrot.lane.b32.xlu0 %v189, 92
    %v725 = vpop.permute.xlu0 %724
    %726 = vrot.lane.b32.xlu0 %v190, 92
    %v727 = vpop.permute.xlu0 %726
    %728 = vrot.lane.b32.xlu0 %v191, 92
    %v729 = vpop.permute.xlu0 %728
    %730 = vrot.lane.b32.xlu0 %v192, 92
    %v731 = vpop.permute.xlu0 %730
    %732 = vrot.lane.b32.xlu0 %v193, 92
    %v733 = vpop.permute.xlu0 %732
    %734 = vrot.lane.b32.xlu0 %v194, 92
    %v735 = vpop.permute.xlu0 %734
    %736 = vrot.lane.b32.xlu0 %v195, 92
    %v737 = vpop.permute.xlu0 %736
    %738 = vrot.lane.b32.xlu0 %v196, 92
    %v739 = vpop.permute.xlu0 %738
    %740 = vrot.lane.b32.xlu0 %v197, 92
    %v741 = vpop.permute.xlu0 %740
    %742 = vrot.lane.b32.xlu0 %v198, 92
    %v743 = vpop.permute.xlu0 %742
    %744 = vrot.lane.b32.xlu0 %v199, 92
    %v745 = vpop.permute.xlu0 %744
    %746 = vrot.lane.b32.xlu0 %v200, 92
    %v747 = vpop.permute.xlu0 %746
    %748 = vrot.lane.b32.xlu0 %v201, 92
    %v749 = vpop.permute.xlu0 %748
    %750 = vrot.lane.b32.xlu0 %v202, 92
    %v751 = vpop.permute.xlu0 %750
    %752 = vrot.lane.b32.xlu0 %v203, 92
    %v753 = vpop.permute.xlu0 %752
    %754 = vrot.lane.b32.xlu0 %v204, 92
    %v755 = vpop.permute.xlu0 %754
    %756 = vrot.lane.b32.xlu0 %v205, 92
    %v757 = vpop.permute.xlu0 %756
    %758 = vrot.lane.b32.xlu0 %v206, 92
    %v759 = vpop.permute.xlu0 %758
    %760 = vrot.lane.b32.xlu0 %v207, 92
    %v761 = vpop.permute.xlu0 %760
    %762 = vrot.lane.b32.xlu0 %v208, 92
    %v763 = vpop.permute.xlu0 %762
    %764 = vrot.lane.b32.xlu0 %v209, 92
    %v765 = vpop.permute.xlu0 %764
    %766 = vrot.lane.b32.xlu0 %v210, 92
    %v767 = vpop.permute.xlu0 %766
    %768 = vrot.lane.b32.xlu0 %v211, 92
    %v769 = vpop.permute.xlu0 %768
    %770 = vrot.lane.b32.xlu0 %v212, 92
    %v771 = vpop.permute.xlu0 %770
    %vm772 = vcmp.lt.s32.totalorder %v286, 92
    %v773 = vsel %vm772, %v769, %v771
    %v774 = vsel %vm772, %v767, %v769
    %v775 = vsel %vm772, %v765, %v767
    %v776 = vsel %vm772, %v763, %v765
    %v777 = vsel %vm772, %v761, %v763
    %v778 = vsel %vm772, %v759, %v761
    %v779 = vsel %vm772, %v757, %v759
    %v780 = vsel %vm772, %v755, %v757
    %v781 = vsel %vm772, %v753, %v755
    %v782 = vsel %vm772, %v751, %v753
    %v783 = vsel %vm772, %v749, %v751
    %v784 = vsel %vm772, %v747, %v749
    %v785 = vsel %vm772, %v745, %v747
    %v786 = vsel %vm772, %v743, %v745
    %v787 = vsel %vm772, %v741, %v743
    %v788 = vsel %vm772, %v739, %v741
    %v789 = vsel %vm772, %v737, %v739
    %v790 = vsel %vm772, %v735, %v737
    %v791 = vsel %vm772, %v733, %v735
    %v792 = vsel %vm772, %v731, %v733
    %v793 = vsel %vm772, %v729, %v731
    %v794 = vsel %vm772, %v727, %v729
    %v795 = vsel %vm772, %v725, %v727
    %v796 = vsel %vm772, %v771, %v725
    %797 = vst [vmem:[#allocation2 + $0x480] sm:$0xff] %v795
    %798 = vst [vmem:[#allocation2 + $0x488] sm:$0xff] %v794
    %799 = vst [vmem:[#allocation2 + $0x490] sm:$0xff] %v793
    %800 = vst [vmem:[#allocation2 + $0x498] sm:$0xff] %v792
    %801 = vst [vmem:[#allocation2 + $0x4a0] sm:$0xff] %v791
    %802 = vst [vmem:[#allocation2 + $0x4a8] sm:$0xff] %v790
    %803 = vst [vmem:[#allocation2 + $0x4b0] sm:$0xff] %v789
    %804 = vst [vmem:[#allocation2 + $0x4b8] sm:$0xff] %v788
    %805 = vst [vmem:[#allocation2 + $0x4c0] sm:$0xff] %v787
    %806 = vst [vmem:[#allocation2 + $0x4c8] sm:$0xff] %v786
    %807 = vst [vmem:[#allocation2 + $0x4d0] sm:$0xff] %v785
    %808 = vst [vmem:[#allocation2 + $0x4d8] sm:$0xff] %v784
    %809 = vst [vmem:[#allocation2 + $0x4e0] sm:$0xff] %v783
    %810 = vst [vmem:[#allocation2 + $0x4e8] sm:$0xff] %v782
    %811 = vst [vmem:[#allocation2 + $0x4f0] sm:$0xff] %v781
    %812 = vst [vmem:[#allocation2 + $0x4f8] sm:$0xff] %v780
    %813 = vst [vmem:[#allocation2 + $0x500] sm:$0xff] %v779
    %814 = vst [vmem:[#allocation2 + $0x508] sm:$0xff] %v778
    %815 = vst [vmem:[#allocation2 + $0x510] sm:$0xff] %v777
    %816 = vst [vmem:[#allocation2 + $0x518] sm:$0xff] %v776
    %817 = vst [vmem:[#allocation2 + $0x520] sm:$0xff] %v775
    %818 = vst [vmem:[#allocation2 + $0x528] sm:$0xff] %v774
    %819 = vst [vmem:[#allocation2 + $0x530] sm:$0xff] %v773
    %820 = vst [vmem:[#allocation2 + $0x538] sm:$0xff] %v796
    %821 = vrot.lane.b32.xlu0 %v189, 91
    %v822 = vpop.permute.xlu0 %821
    %823 = vrot.lane.b32.xlu0 %v190, 91
    %v824 = vpop.permute.xlu0 %823
    %825 = vrot.lane.b32.xlu0 %v191, 91
    %v826 = vpop.permute.xlu0 %825
    %827 = vrot.lane.b32.xlu0 %v192, 91
    %v828 = vpop.permute.xlu0 %827
    %829 = vrot.lane.b32.xlu0 %v193, 91
    %v830 = vpop.permute.xlu0 %829
    %831 = vrot.lane.b32.xlu0 %v194, 91
    %v832 = vpop.permute.xlu0 %831
    %833 = vrot.lane.b32.xlu0 %v195, 91
    %v834 = vpop.permute.xlu0 %833
    %835 = vrot.lane.b32.xlu0 %v196, 91
    %v836 = vpop.permute.xlu0 %835
    %837 = vrot.lane.b32.xlu0 %v197, 91
    %v838 = vpop.permute.xlu0 %837
    %839 = vrot.lane.b32.xlu0 %v198, 91
    %v840 = vpop.permute.xlu0 %839
    %841 = vrot.lane.b32.xlu0 %v199, 91
    %v842 = vpop.permute.xlu0 %841
    %843 = vrot.lane.b32.xlu0 %v200, 91
    %v844 = vpop.permute.xlu0 %843
    %845 = vrot.lane.b32.xlu0 %v201, 91
    %v846 = vpop.permute.xlu0 %845
    %847 = vrot.lane.b32.xlu0 %v202, 91
    %v848 = vpop.permute.xlu0 %847
    %849 = vrot.lane.b32.xlu0 %v203, 91
    %v850 = vpop.permute.xlu0 %849
    %851 = vrot.lane.b32.xlu0 %v204, 91
    %v852 = vpop.permute.xlu0 %851
    %853 = vrot.lane.b32.xlu0 %v205, 91
    %v854 = vpop.permute.xlu0 %853
    %855 = vrot.lane.b32.xlu0 %v206, 91
    %v856 = vpop.permute.xlu0 %855
    %857 = vrot.lane.b32.xlu0 %v207, 91
    %v858 = vpop.permute.xlu0 %857
    %859 = vrot.lane.b32.xlu0 %v208, 91
    %v860 = vpop.permute.xlu0 %859
    %861 = vrot.lane.b32.xlu0 %v209, 91
    %v862 = vpop.permute.xlu0 %861
    %863 = vrot.lane.b32.xlu0 %v210, 91
    %v864 = vpop.permute.xlu0 %863
    %865 = vrot.lane.b32.xlu0 %v211, 91
    %v866 = vpop.permute.xlu0 %865
    %867 = vrot.lane.b32.xlu0 %v212, 91
    %v868 = vpop.permute.xlu0 %867
    %vm869 = vcmp.lt.s32.totalorder %v286, 91
    %v870 = vsel %vm869, %v866, %v868
    %v871 = vsel %vm869, %v864, %v866
    %v872 = vsel %vm869, %v862, %v864
    %v873 = vsel %vm869, %v860, %v862
    %v874 = vsel %vm869, %v858, %v860
    %v875 = vsel %vm869, %v856, %v858
    %v876 = vsel %vm869, %v854, %v856
    %v877 = vsel %vm869, %v852, %v854
    %v878 = vsel %vm869, %v850, %v852
    %v879 = vsel %vm869, %v848, %v850
    %v880 = vsel %vm869, %v846, %v848
    %v881 = vsel %vm869, %v844, %v846
    %v882 = vsel %vm869, %v842, %v844
    %v883 = vsel %vm869, %v840, %v842
    %v884 = vsel %vm869, %v838, %v840
    %v885 = vsel %vm869, %v836, %v838
    %v886 = vsel %vm869, %v834, %v836
    %v887 = vsel %vm869, %v832, %v834
    %v888 = vsel %vm869, %v830, %v832
    %v889 = vsel %vm869, %v828, %v830
    %v890 = vsel %vm869, %v826, %v828
    %v891 = vsel %vm869, %v824, %v826
    %v892 = vsel %vm869, %v822, %v824
    %v893 = vsel %vm869, %v868, %v822
    %894 = vst [vmem:[#allocation2 + $0x540] sm:$0xff] %v892
    %895 = vst [vmem:[#allocation2 + $0x548] sm:$0xff] %v891
    %896 = vst [vmem:[#allocation2 + $0x550] sm:$0xff] %v890
    %897 = vst [vmem:[#allocation2 + $0x558] sm:$0xff] %v889
    %898 = vst [vmem:[#allocation2 + $0x560] sm:$0xff] %v888
    %899 = vst [vmem:[#allocation2 + $0x568] sm:$0xff] %v887
    %900 = vst [vmem:[#allocation2 + $0x570] sm:$0xff] %v886
    %901 = vst [vmem:[#allocation2 + $0x578] sm:$0xff] %v885
    %902 = vst [vmem:[#allocation2 + $0x580] sm:$0xff] %v884
    %903 = vst [vmem:[#allocation2 + $0x588] sm:$0xff] %v883
    %904 = vst [vmem:[#allocation2 + $0x590] sm:$0xff] %v882
    %905 = vst [vmem:[#allocation2 + $0x598] sm:$0xff] %v881
    %906 = vst [vmem:[#allocation2 + $0x5a0] sm:$0xff] %v880
    %907 = vst [vmem:[#allocation2 + $0x5a8] sm:$0xff] %v879
    %908 = vst [vmem:[#allocation2 + $0x5b0] sm:$0xff] %v878
    %909 = vst [vmem:[#allocation2 + $0x5b8] sm:$0xff] %v877
    %910 = vst [vmem:[#allocation2 + $0x5c0] sm:$0xff] %v876
    %911 = vst [vmem:[#allocation2 + $0x5c8] sm:$0xff] %v875
    %912 = vst [vmem:[#allocation2 + $0x5d0] sm:$0xff] %v874
    %913 = vst [vmem:[#allocation2 + $0x5d8] sm:$0xff] %v873
    %914 = vst [vmem:[#allocation2 + $0x5e0] sm:$0xff] %v872
    %915 = vst [vmem:[#allocation2 + $0x5e8] sm:$0xff] %v871
    %916 = vst [vmem:[#allocation2 + $0x5f0] sm:$0xff] %v870
    %917 = vst [vmem:[#allocation2 + $0x5f8] sm:$0xff] %v893
    %918 = vrot.lane.b32.xlu0 %v189, 90
    %v919 = vpop.permute.xlu0 %918
    %920 = vrot.lane.b32.xlu0 %v190, 90
    %v921 = vpop.permute.xlu0 %920
    %922 = vrot.lane.b32.xlu0 %v191, 90
    %v923 = vpop.permute.xlu0 %922
    %924 = vrot.lane.b32.xlu0 %v192, 90
    %v925 = vpop.permute.xlu0 %924
    %926 = vrot.lane.b32.xlu0 %v193, 90
    %v927 = vpop.permute.xlu0 %926
    %928 = vrot.lane.b32.xlu0 %v194, 90
    %v929 = vpop.permute.xlu0 %928
    %930 = vrot.lane.b32.xlu0 %v195, 90
    %v931 = vpop.permute.xlu0 %930
    %932 = vrot.lane.b32.xlu0 %v196, 90
    %v933 = vpop.permute.xlu0 %932
    %934 = vrot.lane.b32.xlu0 %v197, 90
    %v935 = vpop.permute.xlu0 %934
    %936 = vrot.lane.b32.xlu0 %v198, 90
    %v937 = vpop.permute.xlu0 %936
    %938 = vrot.lane.b32.xlu0 %v199, 90
    %v939 = vpop.permute.xlu0 %938
    %940 = vrot.lane.b32.xlu0 %v200, 90
    %v941 = vpop.permute.xlu0 %940
    %942 = vrot.lane.b32.xlu0 %v201, 90
    %v943 = vpop.permute.xlu0 %942
    %944 = vrot.lane.b32.xlu0 %v202, 90
    %v945 = vpop.permute.xlu0 %944
    %946 = vrot.lane.b32.xlu0 %v203, 90
    %v947 = vpop.permute.xlu0 %946
    %948 = vrot.lane.b32.xlu0 %v204, 90
    %v949 = vpop.permute.xlu0 %948
    %950 = vrot.lane.b32.xlu0 %v205, 90
    %v951 = vpop.permute.xlu0 %950
    %952 = vrot.lane.b32.xlu0 %v206, 90
    %v953 = vpop.permute.xlu0 %952
    %954 = vrot.lane.b32.xlu0 %v207, 90
    %v955 = vpop.permute.xlu0 %954
    %956 = vrot.lane.b32.xlu0 %v208, 90
    %v957 = vpop.permute.xlu0 %956
    %958 = vrot.lane.b32.xlu0 %v209, 90
    %v959 = vpop.permute.xlu0 %958
    %960 = vrot.lane.b32.xlu0 %v210, 90
    %v961 = vpop.permute.xlu0 %960
    %962 = vrot.lane.b32.xlu0 %v211, 90
    %v963 = vpop.permute.xlu0 %962
    %964 = vrot.lane.b32.xlu0 %v212, 90
    %v965 = vpop.permute.xlu0 %964
    %vm966 = vcmp.lt.s32.totalorder %v286, 90
    %v967 = vsel %vm966, %v963, %v965
    %v968 = vsel %vm966, %v961, %v963
    %v969 = vsel %vm966, %v959, %v961
    %v970 = vsel %vm966, %v957, %v959
    %v971 = vsel %vm966, %v955, %v957
    %v972 = vsel %vm966, %v953, %v955
    %v973 = vsel %vm966, %v951, %v953
    %v974 = vsel %vm966, %v949, %v951
    %v975 = vsel %vm966, %v947, %v949
    %v976 = vsel %vm966, %v945, %v947
    %v977 = vsel %vm966, %v943, %v945
    %v978 = vsel %vm966, %v941, %v943
    %v979 = vsel %vm966, %v939, %v941
    %v980 = vsel %vm966, %v937, %v939
    %v981 = vsel %vm966, %v935, %v937
    %v982 = vsel %vm966, %v933, %v935
    %v983 = vsel %vm966, %v931, %v933
    %v984 = vsel %vm966, %v929, %v931
    %v985 = vsel %vm966, %v927, %v929
    %v986 = vsel %vm966, %v925, %v927
    %v987 = vsel %vm966, %v923, %v925
    %v988 = vsel %vm966, %v921, %v923
    %v989 = vsel %vm966, %v919, %v921
    %v990 = vsel %vm966, %v965, %v919
    %991 = vst [vmem:[#allocation2 + $0x600] sm:$0xff] %v989
    %992 = vst [vmem:[#allocation2 + $0x608] sm:$0xff] %v988
    %993 = vst [vmem:[#allocation2 + $0x610] sm:$0xff] %v987
    %994 = vst [vmem:[#allocation2 + $0x618] sm:$0xff] %v986
    %995 = vst [vmem:[#allocation2 + $0x620] sm:$0xff] %v985
    %996 = vst [vmem:[#allocation2 + $0x628] sm:$0xff] %v984
    %997 = vst [vmem:[#allocation2 + $0x630] sm:$0xff] %v983
    %998 = vst [vmem:[#allocation2 + $0x638] sm:$0xff] %v982
    %999 = vst [vmem:[#allocation2 + $0x640] sm:$0xff] %v981
    %1000 = vst [vmem:[#allocation2 + $0x648] sm:$0xff] %v980
    %1001 = vst [vmem:[#allocation2 + $0x650] sm:$0xff] %v979
    %1002 = vst [vmem:[#allocation2 + $0x658] sm:$0xff] %v978
    %1003 = vst [vmem:[#allocation2 + $0x660] sm:$0xff] %v977
    %1004 = vst [vmem:[#allocation2 + $0x668] sm:$0xff] %v976
    %1005 = vst [vmem:[#allocation2 + $0x670] sm:$0xff] %v975
    %1006 = vst [vmem:[#allocation2 + $0x678] sm:$0xff] %v974
    %1007 = vst [vmem:[#allocation2 + $0x680] sm:$0xff] %v973
    %1008 = vst [vmem:[#allocation2 + $0x688] sm:$0xff] %v972
    %1009 = vst [vmem:[#allocation2 + $0x690] sm:$0xff] %v971
    %1010 = vst [vmem:[#allocation2 + $0x698] sm:$0xff] %v970
    %1011 = vst [vmem:[#allocation2 + $0x6a0] sm:$0xff] %v969
    %1012 = vst [vmem:[#allocation2 + $0x6a8] sm:$0xff] %v968
    %1013 = vst [vmem:[#allocation2 + $0x6b0] sm:$0xff] %v967
    %1014 = vst [vmem:[#allocation2 + $0x6b8] sm:$0xff] %v990
    %v1015 = vld [vmem:[#allocation7] sm:$0xff]
    %v1016 = vld [vmem:[#allocation2] sm:$0xff]
    %v1017 = vld [vmem:[#allocation2 + $0x8] sm:$0xff]
    %v1018 = vld [vmem:[#allocation2 + $0x10] sm:$0xff]
    %v1019 = vld [vmem:[#allocation2 + $0x18] sm:$0xff]
    %v1020 = vld [vmem:[#allocation2 + $0x20] sm:$0xff]
    %v1021 = vld [vmem:[#allocation2 + $0x28] sm:$0xff]
    %v1022 = vld [vmem:[#allocation2 + $0x30] sm:$0xff]
    %v1023 = vld [vmem:[#allocation2 + $0x38] sm:$0xff]
    %v1024 = vld [vmem:[#allocation2 + $0x40] sm:$0xff]
    %v1025 = vld [vmem:[#allocation2 + $0x48] sm:$0xff]
    %v1026 = vld [vmem:[#allocation2 + $0x50] sm:$0xff]
    %v1027 = vld [vmem:[#allocation2 + $0x58] sm:$0xff]
    %v1028 = vld [vmem:[#allocation2 + $0x60] sm:$0xff]
    %v1029 = vld [vmem:[#allocation2 + $0x68] sm:$0xff]
    %v1030 = vld [vmem:[#allocation2 + $0x70] sm:$0xff]
    %v1031 = vld [vmem:[#allocation2 + $0x78] sm:$0xff]
    %v1032 = vld [vmem:[#allocation2 + $0x80] sm:$0xff]
    %v1033 = vld [vmem:[#allocation2 + $0x88] sm:$0xff]
    %v1034 = vld [vmem:[#allocation2 + $0x90] sm:$0xff]
    %v1035 = vld [vmem:[#allocation2 + $0x98] sm:$0xff]
    %v1036 = vld [vmem:[#allocation2 + $0xa0] sm:$0xff]
    %v1037 = vld [vmem:[#allocation2 + $0xa8] sm:$0xff]
    %v1038 = vld [vmem:[#allocation2 + $0xb0] sm:$0xff]
    %v1039 = vld [vmem:[#allocation2 + $0xb8] sm:$0xff]
    %v1040 = vld [vmem:[#allocation2 + $0xc0] sm:$0xff]
    %v1041 = vld [vmem:[#allocation2 + $0xc8] sm:$0xff]
    %v1042 = vld [vmem:[#allocation2 + $0xd0] sm:$0xff]
    %v1043 = vld [vmem:[#allocation2 + $0xd8] sm:$0xff]
    %v1044 = vld [vmem:[#allocation2 + $0xe0] sm:$0xff]
    %v1045 = vld [vmem:[#allocation2 + $0xe8] sm:$0xff]
    %v1046 = vld [vmem:[#allocation2 + $0xf0] sm:$0xff]
    %v1047 = vld [vmem:[#allocation2 + $0xf8] sm:$0xff]
    %v1048 = vld [vmem:[#allocation2 + $0x100] sm:$0xff]
    %v1049 = vld [vmem:[#allocation2 + $0x108] sm:$0xff]
    %v1050 = vld [vmem:[#allocation2 + $0x110] sm:$0xff]
    %v1051 = vld [vmem:[#allocation2 + $0x118] sm:$0xff]
    %v1052 = vld [vmem:[#allocation2 + $0x120] sm:$0xff]
    %v1053 = vld [vmem:[#allocation2 + $0x128] sm:$0xff]
    %v1054 = vld [vmem:[#allocation2 + $0x130] sm:$0xff]
    %v1055 = vld [vmem:[#allocation2 + $0x138] sm:$0xff]
    %v1056 = vld [vmem:[#allocation2 + $0x140] sm:$0xff]
    %v1057 = vld [vmem:[#allocation2 + $0x148] sm:$0xff]
    %v1058 = vld [vmem:[#allocation2 + $0x150] sm:$0xff]
    %v1059 = vld [vmem:[#allocation2 + $0x158] sm:$0xff]
    %v1060 = vld [vmem:[#allocation2 + $0x160] sm:$0xff]
    %v1061 = vld [vmem:[#allocation2 + $0x168] sm:$0xff]
    %v1062 = vld [vmem:[#allocation2 + $0x170] sm:$0xff]
    %v1063 = vld [vmem:[#allocation2 + $0x178] sm:$0xff]
    %v1064 = vld [vmem:[#allocation2 + $0x180] sm:$0xff]
    %v1065 = vld [vmem:[#allocation2 + $0x188] sm:$0xff]
    %v1066 = vld [vmem:[#allocation2 + $0x190] sm:$0xff]
    %v1067 = vld [vmem:[#allocation2 + $0x198] sm:$0xff]
    %v1068 = vld [vmem:[#allocation2 + $0x1a0] sm:$0xff]
    %v1069 = vld [vmem:[#allocation2 + $0x1a8] sm:$0xff]
    %v1070 = vld [vmem:[#allocation2 + $0x1b0] sm:$0xff]
    %v1071 = vld [vmem:[#allocation2 + $0x1b8] sm:$0xff]
    %v1072 = vld [vmem:[#allocation2 + $0x1c0] sm:$0xff]
    %v1073 = vld [vmem:[#allocation2 + $0x1c8] sm:$0xff]
    %v1074 = vld [vmem:[#allocation2 + $0x1d0] sm:$0xff]
    %v1075 = vld [vmem:[#allocation2 + $0x1d8] sm:$0xff]
    %v1076 = vld [vmem:[#allocation2 + $0x1e0] sm:$0xff]
    %v1077 = vld [vmem:[#allocation2 + $0x1e8] sm:$0xff]
    %v1078 = vld [vmem:[#allocation2 + $0x1f0] sm:$0xff]
    %v1079 = vld [vmem:[#allocation2 + $0x1f8] sm:$0xff]
    %v1080 = vld [vmem:[#allocation2 + $0x200] sm:$0xff]
    %v1081 = vld [vmem:[#allocation2 + $0x208] sm:$0xff]
    %v1082 = vld [vmem:[#allocation2 + $0x210] sm:$0xff]
    %v1083 = vld [vmem:[#allocation2 + $0x218] sm:$0xff]
    %v1084 = vld [vmem:[#allocation2 + $0x220] sm:$0xff]
    %v1085 = vld [vmem:[#allocation2 + $0x228] sm:$0xff]
    %v1086 = vld [vmem:[#allocation2 + $0x230] sm:$0xff]
    %v1087 = vld [vmem:[#allocation2 + $0x238] sm:$0xff]
    %v1088 = vld [vmem:[#allocation2 + $0x240] sm:$0xff]
    %v1089 = vld [vmem:[#allocation2 + $0x248] sm:$0xff]
    %v1090 = vld [vmem:[#allocation2 + $0x250] sm:$0xff]
    %v1091 = vld [vmem:[#allocation2 + $0x258] sm:$0xff]
    %v1092 = vld [vmem:[#allocation2 + $0x260] sm:$0xff]
    %v1093 = vld [vmem:[#allocation2 + $0x268] sm:$0xff]
    %v1094 = vld [vmem:[#allocation2 + $0x270] sm:$0xff]
    %v1095 = vld [vmem:[#allocation2 + $0x278] sm:$0xff]
    %v1096 = vld [vmem:[#allocation2 + $0x280] sm:$0xff]
    %v1097 = vld [vmem:[#allocation2 + $0x288] sm:$0xff]
    %v1098 = vld [vmem:[#allocation2 + $0x290] sm:$0xff]
    %v1099 = vld [vmem:[#allocation2 + $0x298] sm:$0xff]
    %v1100 = vld [vmem:[#allocation2 + $0x2a0] sm:$0xff]
    %v1101 = vld [vmem:[#allocation2 + $0x2a8] sm:$0xff]
    %v1102 = vld [vmem:[#allocation2 + $0x2b0] sm:$0xff]
    %v1103 = vld [vmem:[#allocation2 + $0x2b8] sm:$0xff]
    %v1104 = vld [vmem:[#allocation2 + $0x2c0] sm:$0xff]
    %v1105 = vld [vmem:[#allocation2 + $0x2c8] sm:$0xff]
    %v1106 = vld [vmem:[#allocation2 + $0x2d0] sm:$0xff]
    %v1107 = vld [vmem:[#allocation2 + $0x2d8] sm:$0xff]
    %v1108 = vld [vmem:[#allocation2 + $0x2e0] sm:$0xff]
    %v1109 = vld [vmem:[#allocation2 + $0x2e8] sm:$0xff]
    %v1110 = vld [vmem:[#allocation2 + $0x2f0] sm:$0xff]
    %v1111 = vld [vmem:[#allocation2 + $0x2f8] sm:$0xff]
    %v1112 = vld [vmem:[#allocation2 + $0x300] sm:$0xff]
    %v1113 = vld [vmem:[#allocation2 + $0x308] sm:$0xff]
    %v1114 = vld [vmem:[#allocation2 + $0x310] sm:$0xff]
    %v1115 = vld [vmem:[#allocation2 + $0x318] sm:$0xff]
    %v1116 = vld [vmem:[#allocation2 + $0x320] sm:$0xff]
    %v1117 = vld [vmem:[#allocation2 + $0x328] sm:$0xff]
    %v1118 = vld [vmem:[#allocation2 + $0x330] sm:$0xff]
    %v1119 = vld [vmem:[#allocation2 + $0x338] sm:$0xff]
    %v1120 = vld [vmem:[#allocation2 + $0x340] sm:$0xff]
    %v1121 = vld [vmem:[#allocation2 + $0x348] sm:$0xff]
    %v1122 = vld [vmem:[#allocation2 + $0x350] sm:$0xff]
    %v1123 = vld [vmem:[#allocation2 + $0x358] sm:$0xff]
    %v1124 = vld [vmem:[#allocation2 + $0x360] sm:$0xff]
    %v1125 = vld [vmem:[#allocation2 + $0x368] sm:$0xff]
    %v1126 = vld [vmem:[#allocation2 + $0x370] sm:$0xff]
    %v1127 = vld [vmem:[#allocation2 + $0x378] sm:$0xff]
    %v1128 = vld [vmem:[#allocation2 + $0x380] sm:$0xff]
    %v1129 = vld [vmem:[#allocation2 + $0x388] sm:$0xff]
    %v1130 = vld [vmem:[#allocation2 + $0x390] sm:$0xff]
    %v1131 = vld [vmem:[#allocation2 + $0x398] sm:$0xff]
    %v1132 = vld [vmem:[#allocation2 + $0x3a0] sm:$0xff]
    %v1133 = vld [vmem:[#allocation2 + $0x3a8] sm:$0xff]
    %v1134 = vld [vmem:[#allocation2 + $0x3b0] sm:$0xff]
    %v1135 = vld [vmem:[#allocation2 + $0x3b8] sm:$0xff]
    %v1136 = vld [vmem:[#allocation2 + $0x3c0] sm:$0xff]
    %v1137 = vld [vmem:[#allocation2 + $0x3c8] sm:$0xff]
    %v1138 = vld [vmem:[#allocation2 + $0x3d0] sm:$0xff]
    %v1139 = vld [vmem:[#allocation2 + $0x3d8] sm:$0xff]
    %v1140 = vld [vmem:[#allocation2 + $0x3e0] sm:$0xff]
    %v1141 = vld [vmem:[#allocation2 + $0x3e8] sm:$0xff]
    %v1142 = vld [vmem:[#allocation2 + $0x3f0] sm:$0xff]
    %v1143 = vld [vmem:[#allocation2 + $0x3f8] sm:$0xff]
    %v1144 = vld [vmem:[#allocation2 + $0x400] sm:$0xff]
    %v1145 = vld [vmem:[#allocation2 + $0x408] sm:$0xff]
    %v1146 = vld [vmem:[#allocation2 + $0x410] sm:$0xff]
    %v1147 = vld [vmem:[#allocation2 + $0x418] sm:$0xff]
    %v1148 = vld [vmem:[#allocation2 + $0x420] sm:$0xff]
    %v1149 = vld [vmem:[#allocation2 + $0x428] sm:$0xff]
    %v1150 = vld [vmem:[#allocation2 + $0x430] sm:$0xff]
    %v1151 = vld [vmem:[#allocation2 + $0x438] sm:$0xff]
    %v1152 = vld [vmem:[#allocation2 + $0x440] sm:$0xff]
    %v1153 = vld [vmem:[#allocation2 + $0x448] sm:$0xff]
    %v1154 = vld [vmem:[#allocation2 + $0x450] sm:$0xff]
    %v1155 = vld [vmem:[#allocation2 + $0x458] sm:$0xff]
    %v1156 = vld [vmem:[#allocation2 + $0x460] sm:$0xff]
    %v1157 = vld [vmem:[#allocation2 + $0x468] sm:$0xff]
    %v1158 = vld [vmem:[#allocation2 + $0x470] sm:$0xff]
    %v1159 = vld [vmem:[#allocation2 + $0x478] sm:$0xff]
    %v1160 = vld [vmem:[#allocation2 + $0x480] sm:$0xff]
    %v1161 = vld [vmem:[#allocation2 + $0x488] sm:$0xff]
    %v1162 = vld [vmem:[#allocation2 + $0x490] sm:$0xff]
    %v1163 = vld [vmem:[#allocation2 + $0x498] sm:$0xff]
    %v1164 = vld [vmem:[#allocation2 + $0x4a0] sm:$0xff]
    %v1165 = vld [vmem:[#allocation2 + $0x4a8] sm:$0xff]
    %v1166 = vld [vmem:[#allocation2 + $0x4b0] sm:$0xff]
    %v1167 = vld [vmem:[#allocation2 + $0x4b8] sm:$0xff]
    %v1168 = vld [vmem:[#allocation2 + $0x4c0] sm:$0xff]
    %v1169 = vld [vmem:[#allocation2 + $0x4c8] sm:$0xff]
    %v1170 = vld [vmem:[#allocation2 + $0x4d0] sm:$0xff]
    %v1171 = vld [vmem:[#allocation2 + $0x4d8] sm:$0xff]
    %v1172 = vld [vmem:[#allocation2 + $0x4e0] sm:$0xff]
    %v1173 = vld [vmem:[#allocation2 + $0x4e8] sm:$0xff]
    %v1174 = vld [vmem:[#allocation2 + $0x4f0] sm:$0xff]
    %v1175 = vld [vmem:[#allocation2 + $0x4f8] sm:$0xff]
    %v1176 = vld [vmem:[#allocation2 + $0x500] sm:$0xff]
    %v1177 = vld [vmem:[#allocation2 + $0x508] sm:$0xff]
    %v1178 = vld [vmem:[#allocation2 + $0x510] sm:$0xff]
    %v1179 = vld [vmem:[#allocation2 + $0x518] sm:$0xff]
    %v1180 = vld [vmem:[#allocation2 + $0x520] sm:$0xff]
    %v1181 = vld [vmem:[#allocation2 + $0x528] sm:$0xff]
    %v1182 = vld [vmem:[#allocation2 + $0x530] sm:$0xff]
    %v1183 = vld [vmem:[#allocation2 + $0x538] sm:$0xff]
    %v1184 = vld [vmem:[#allocation2 + $0x540] sm:$0xff]
    %v1185 = vld [vmem:[#allocation2 + $0x548] sm:$0xff]
    %v1186 = vld [vmem:[#allocation2 + $0x550] sm:$0xff]
    %v1187 = vld [vmem:[#allocation2 + $0x558] sm:$0xff]
    %v1188 = vld [vmem:[#allocation2 + $0x560] sm:$0xff]
    %v1189 = vld [vmem:[#allocation2 + $0x568] sm:$0xff]
    %v1190 = vld [vmem:[#allocation2 + $0x570] sm:$0xff]
    %v1191 = vld [vmem:[#allocation2 + $0x578] sm:$0xff]
    %v1192 = vld [vmem:[#allocation2 + $0x580] sm:$0xff]
    %v1193 = vld [vmem:[#allocation2 + $0x588] sm:$0xff]
    %v1194 = vld [vmem:[#allocation2 + $0x590] sm:$0xff]
    %v1195 = vld [vmem:[#allocation2 + $0x598] sm:$0xff]
    %v1196 = vld [vmem:[#allocation2 + $0x5a0] sm:$0xff]
    %v1197 = vld [vmem:[#allocation2 + $0x5a8] sm:$0xff]
    %v1198 = vld [vmem:[#allocation2 + $0x5b0] sm:$0xff]
    %v1199 = vld [vmem:[#allocation2 + $0x5b8] sm:$0xff]
    %v1200 = vld [vmem:[#allocation2 + $0x5c0] sm:$0xff]
    %v1201 = vld [vmem:[#allocation2 + $0x5c8] sm:$0xff]
    %v1202 = vld [vmem:[#allocation2 + $0x5d0] sm:$0xff]
    %v1203 = vld [vmem:[#allocation2 + $0x5d8] sm:$0xff]
    %v1204 = vld [vmem:[#allocation2 + $0x5e0] sm:$0xff]
    %v1205 = vld [vmem:[#allocation2 + $0x5e8] sm:$0xff]
    %v1206 = vld [vmem:[#allocation2 + $0x5f0] sm:$0xff]
    %v1207 = vld [vmem:[#allocation2 + $0x5f8] sm:$0xff]
    %v1208 = vld [vmem:[#allocation2 + $0x600] sm:$0xff]
    %v1209 = vld [vmem:[#allocation2 + $0x608] sm:$0xff]
    %v1210 = vld [vmem:[#allocation2 + $0x610] sm:$0xff]
    %v1211 = vld [vmem:[#allocation2 + $0x618] sm:$0xff]
    %v1212 = vld [vmem:[#allocation2 + $0x620] sm:$0xff]
    %v1213 = vld [vmem:[#allocation2 + $0x628] sm:$0xff]
    %v1214 = vld [vmem:[#allocation2 + $0x630] sm:$0xff]
    %v1215 = vld [vmem:[#allocation2 + $0x638] sm:$0xff]
    %v1216 = vld [vmem:[#allocation2 + $0x640] sm:$0xff]
    %v1217 = vld [vmem:[#allocation2 + $0x648] sm:$0xff]
    %v1218 = vld [vmem:[#allocation2 + $0x650] sm:$0xff]
    %v1219 = vld [vmem:[#allocation2 + $0x658] sm:$0xff]
    %v1220 = vld [vmem:[#allocation2 + $0x660] sm:$0xff]
    %v1221 = vld [vmem:[#allocation2 + $0x668] sm:$0xff]
    %v1222 = vld [vmem:[#allocation2 + $0x670] sm:$0xff]
    %v1223 = vld [vmem:[#allocation2 + $0x678] sm:$0xff]
    %v1224 = vld [vmem:[#allocation2 + $0x680] sm:$0xff]
    %v1225 = vld [vmem:[#allocation2 + $0x688] sm:$0xff]
    %v1226 = vld [vmem:[#allocation2 + $0x690] sm:$0xff]
    %v1227 = vld [vmem:[#allocation2 + $0x698] sm:$0xff]
    %v1228 = vld [vmem:[#allocation2 + $0x6a0] sm:$0xff]
    %v1229 = vld [vmem:[#allocation2 + $0x6a8] sm:$0xff]
    %v1230 = vld [vmem:[#allocation2 + $0x6b0] sm:$0xff]
    %v1231 = vld [vmem:[#allocation2 + $0x6b8] sm:$0xff]
    %v1232 = vld [vmem:[%s3] sm:$0xff]
    %1234 = vset.pattern.permute.xlu0 0
    %1235 = vperm.xlu0 %1234, %v1232
    %v1236 = vpop.permute.xlu0 %1235
    %vm1238 = vcmask 588800
    %v1240 = vsel %vm1238, %v1015, 0
    %1242 = vmatprep.subr.mxu0 0.0
    %1243 = vmatpush1.msra.mxu0 0.0
    %1244 = vmatprep.subr.mxu0 0.0
    %1245 = vmatpush1.msra.mxu0 0.0
    %1246 = vmatprep.subr.mxu0 0.0
    %1247 = vmatpush1.msra.mxu0 0.0
    %1248 = vmatprep.subr.mxu0 0.0
    %1249 = vmatpush1.msra.mxu0 0.0
    %1250 = vmatprep.subr.mxu0 0.0
    %1251 = vmatpush1.msra.mxu0 0.0
    %1252 = vmatprep.subr.mxu0 0.0
    %1253 = vmatpush1.msra.mxu0 0.0
    %1254 = vmatprep.subr.mxu0 0.0
    %1255 = vmatpush1.msra.mxu0 0.0
    %1256 = vmatprep.subr.mxu0 %v1209
    %1257 = vmatpush1.msra.mxu0 %v1208
    %1258 = vmatprep.subr.mxu0 %v1185
    %1259 = vmatpush1.msra.mxu0 %v1184
    %1260 = vmatprep.subr.mxu0 %v1161
    %1261 = vmatpush1.msra.mxu0 %v1160
    %1262 = vmatprep.subr.mxu0 %v1137
    %1263 = vmatpush1.msra.mxu0 %v1136
    %1264 = vmatprep.subr.mxu0 %v1113
    %1265 = vmatpush1.msra.mxu0 %v1112
    %1266 = vmatprep.subr.mxu0 %v1089
    %1267 = vmatpush1.msra.mxu0 %v1088
    %1268 = vmatprep.subr.mxu0 %v1065
    %1269 = vmatpush1.msra.mxu0 %v1064
    %1270 = vmatprep.subr.mxu0 %v1041
    %1271 = vmatpush1.msra.mxu0 %v1040
    %1272 = vmatprep.subr.mxu0 %v1017
    %1273 = vmatpush1.msra.mxu0 %v1016
    %1274 = vmatprep.subr.mxu0 0.0
    %1275 = vmatpush2.msra.mxu0 0.0
    %1276 = vmatprep.subr.mxu0 0.0
    %1277 = vmatpush2.msra.mxu0 0.0
    %1278 = vmatprep.subr.mxu0 0.0
    %1279 = vmatpush2.msra.mxu0 0.0
    %1280 = vmatprep.subr.mxu0 0.0
    %1281 = vmatpush2.msra.mxu0 0.0
    %1282 = vmatprep.subr.mxu0 0.0
    %1283 = vmatpush2.msra.mxu0 0.0
    %1284 = vmatprep.subr.mxu0 0.0
    %1285 = vmatpush2.msra.mxu0 0.0
    %1286 = vmatprep.subr.mxu0 0.0
    %1287 = vmatpush2.msra.mxu0 0.0
    %1288 = vmatprep.subr.mxu0 0.0
    %1289 = vmatpush2.msra.mxu0 0.0
    %1290 = vmatprep.subr.mxu0 0.0
    %1291 = vmatpush2.msra.mxu0 0.0
    %1292 = vmatprep.subr.mxu0 0.0
    %1293 = vmatpush2.msra.mxu0 0.0
    %1294 = vmatprep.subr.mxu0 0.0
    %1295 = vmatpush2.msra.mxu0 0.0
    %1296 = vmatprep.subr.mxu0 0.0
    %1297 = vmatpush2.msra.mxu0 0.0
    %1298 = vmatprep.subr.mxu0 0.0
    %1299 = vmatpush2.msra.mxu0 0.0
    %1300 = vmatprep.subr.mxu0 0.0
    %1301 = vmatpush2.msra.mxu0 0.0
    %1302 = vmatprep.subr.mxu0 0.0
    %1303 = vmatpush2.msra.mxu0 0.0
    %1304 = vmatprep.subr.mxu0 0.0
    %1305 = vmatpush2.msra.mxu0 0.0
    %1306 = vmatprep.mubr.f32.mxu0 0.0
    %1307 = vmatmul.mubr.f32.gmra.mxu0 %v1240
    %v1308 = vpop.f32.mrf.mxu0
    %v1309 = vadd.f32 %v1236, %v1308
    %v1310 = vpop.f32.mrf.mxu0
    %v1311 = vadd.f32 %v1236, %v1310
    %1312 = vdwg.mxu0
    %1313 = vmatprep.subr.mxu0 0.0
    %1314 = vmatpush1.msra.mxu0 0.0
    %1315 = vmatprep.subr.mxu0 0.0
    %1316 = vmatpush1.msra.mxu0 0.0
    %1317 = vmatprep.subr.mxu0 0.0
    %1318 = vmatpush1.msra.mxu0 0.0
    %1319 = vmatprep.subr.mxu0 0.0
    %1320 = vmatpush1.msra.mxu0 0.0
    %1321 = vmatprep.subr.mxu0 0.0
    %1322 = vmatpush1.msra.mxu0 0.0
    %1323 = vmatprep.subr.mxu0 0.0
    %1324 = vmatpush1.msra.mxu0 0.0
    %1325 = vmatprep.subr.mxu0 0.0
    %1326 = vmatpush1.msra.mxu0 0.0
    %1327 = vmatprep.subr.mxu0 %v1211
    %1328 = vmatpush1.msra.mxu0 %v1210
    %1329 = vmatprep.subr.mxu0 %v1187
    %1330 = vmatpush1.msra.mxu0 %v1186
    %1331 = vmatprep.subr.mxu0 %v1163
    %1332 = vmatpush1.msra.mxu0 %v1162
    %1333 = vmatprep.subr.mxu0 %v1139
    %1334 = vmatpush1.msra.mxu0 %v1138
    %1335 = vmatprep.subr.mxu0 %v1115
    %1336 = vmatpush1.msra.mxu0 %v1114
    %1337 = vmatprep.subr.mxu0 %v1091
    %1338 = vmatpush1.msra.mxu0 %v1090
    %1339 = vmatprep.subr.mxu0 %v1067
    %1340 = vmatpush1.msra.mxu0 %v1066
    %1341 = vmatprep.subr.mxu0 %v1043
    %1342 = vmatpush1.msra.mxu0 %v1042
    %1343 = vmatprep.subr.mxu0 %v1019
    %1344 = vmatpush1.msra.mxu0 %v1018
    %1345 = vmatprep.subr.mxu0 0.0
    %1346 = vmatpush2.msra.mxu0 0.0
    %1347 = vmatprep.subr.mxu0 0.0
    %1348 = vmatpush2.msra.mxu0 0.0
    %1349 = vmatprep.subr.mxu0 0.0
    %1350 = vmatpush2.msra.mxu0 0.0
    %1351 = vmatprep.subr.mxu0 0.0
    %1352 = vmatpush2.msra.mxu0 0.0
    %1353 = vmatprep.subr.mxu0 0.0
    %1354 = vmatpush2.msra.mxu0 0.0
    %1355 = vmatprep.subr.mxu0 0.0
    %1356 = vmatpush2.msra.mxu0 0.0
    %1357 = vmatprep.subr.mxu0 0.0
    %1358 = vmatpush2.msra.mxu0 0.0
    %1359 = vmatprep.subr.mxu0 0.0
    %1360 = vmatpush2.msra.mxu0 0.0
    %1361 = vmatprep.subr.mxu0 0.0
    %1362 = vmatpush2.msra.mxu0 0.0
    %1363 = vmatprep.subr.mxu0 0.0
    %1364 = vmatpush2.msra.mxu0 0.0
    %1365 = vmatprep.subr.mxu0 0.0
    %1366 = vmatpush2.msra.mxu0 0.0
    %1367 = vmatprep.subr.mxu0 0.0
    %1368 = vmatpush2.msra.mxu0 0.0
    %1369 = vmatprep.subr.mxu0 0.0
    %1370 = vmatpush2.msra.mxu0 0.0
    %1371 = vmatprep.subr.mxu0 0.0
    %1372 = vmatpush2.msra.mxu0 0.0
    %1373 = vmatprep.subr.mxu0 0.0
    %1374 = vmatpush2.msra.mxu0 0.0
    %1375 = vmatprep.subr.mxu0 0.0
    %1376 = vmatpush2.msra.mxu0 0.0
    %1377 = vmatprep.mubr.f32.mxu0 0.0
    %1378 = vmatmul.mubr.f32.gmra.mxu0 %v1240
    %v1379 = vpop.f32.mrf.mxu0
    %v1380 = vadd.f32 %v1236, %v1379
    %v1381 = vpop.f32.mrf.mxu0
    %v1382 = vadd.f32 %v1236, %v1381
    %1383 = vdwg.mxu0
    %1384 = vmatprep.subr.mxu0 0.0
    %1385 = vmatpush1.msra.mxu0 0.0
    %1386 = vmatprep.subr.mxu0 0.0
    %1387 = vmatpush1.msra.mxu0 0.0
    %1388 = vmatprep.subr.mxu0 0.0
    %1389 = vmatpush1.msra.mxu0 0.0
    %1390 = vmatprep.subr.mxu0 0.0
    %1391 = vmatpush1.msra.mxu0 0.0
    %1392 = vmatprep.subr.mxu0 0.0
    %1393 = vmatpush1.msra.mxu0 0.0
    %1394 = vmatprep.subr.mxu0 0.0
    %1395 = vmatpush1.msra.mxu0 0.0
    %1396 = vmatprep.subr.mxu0 0.0
    %1397 = vmatpush1.msra.mxu0 0.0
    %1398 = vmatprep.subr.mxu0 %v1213
    %1399 = vmatpush1.msra.mxu0 %v1212
    %1400 = vmatprep.subr.mxu0 %v1189
    %1401 = vmatpush1.msra.mxu0 %v1188
    %1402 = vmatprep.subr.mxu0 %v1165
    %1403 = vmatpush1.msra.mxu0 %v1164
    %1404 = vmatprep.subr.mxu0 %v1141
    %1405 = vmatpush1.msra.mxu0 %v1140
    %1406 = vmatprep.subr.mxu0 %v1117
    %1407 = vmatpush1.msra.mxu0 %v1116
    %1408 = vmatprep.subr.mxu0 %v1093
    %1409 = vmatpush1.msra.mxu0 %v1092
    %1410 = vmatprep.subr.mxu0 %v1069
    %1411 = vmatpush1.msra.mxu0 %v1068
    %1412 = vmatprep.subr.mxu0 %v1045
    %1413 = vmatpush1.msra.mxu0 %v1044
    %1414 = vmatprep.subr.mxu0 %v1021
    %1415 = vmatpush1.msra.mxu0 %v1020
    %1416 = vmatprep.subr.mxu0 0.0
    %1417 = vmatpush2.msra.mxu0 0.0
    %1418 = vmatprep.subr.mxu0 0.0
    %1419 = vmatpush2.msra.mxu0 0.0
    %1420 = vmatprep.subr.mxu0 0.0
    %1421 = vmatpush2.msra.mxu0 0.0
    %1422 = vmatprep.subr.mxu0 0.0
    %1423 = vmatpush2.msra.mxu0 0.0
    %1424 = vmatprep.subr.mxu0 0.0
    %1425 = vmatpush2.msra.mxu0 0.0
    %1426 = vmatprep.subr.mxu0 0.0
    %1427 = vmatpush2.msra.mxu0 0.0
    %1428 = vmatprep.subr.mxu0 0.0
    %1429 = vmatpush2.msra.mxu0 0.0
    %1430 = vmatprep.subr.mxu0 0.0
    %1431 = vmatpush2.msra.mxu0 0.0
    %1432 = vmatprep.subr.mxu0 0.0
    %1433 = vmatpush2.msra.mxu0 0.0
    %1434 = vmatprep.subr.mxu0 0.0
    %1435 = vmatpush2.msra.mxu0 0.0
    %1436 = vmatprep.subr.mxu0 0.0
    %1437 = vmatpush2.msra.mxu0 0.0
    %1438 = vmatprep.subr.mxu0 0.0
    %1439 = vmatpush2.msra.mxu0 0.0
    %1440 = vmatprep.subr.mxu0 0.0
    %1441 = vmatpush2.msra.mxu0 0.0
    %1442 = vmatprep.subr.mxu0 0.0
    %1443 = vmatpush2.msra.mxu0 0.0
    %1444 = vmatprep.subr.mxu0 0.0
    %1445 = vmatpush2.msra.mxu0 0.0
    %1446 = vmatprep.subr.mxu0 0.0
    %1447 = vmatpush2.msra.mxu0 0.0
    %1448 = vmatprep.mubr.f32.mxu0 0.0
    %1449 = vmatmul.mubr.f32.gmra.mxu0 %v1240
    %v1450 = vpop.f32.mrf.mxu0
    %v1451 = vadd.f32 %v1236, %v1450
    %v1452 = vpop.f32.mrf.mxu0
    %v1453 = vadd.f32 %v1236, %v1452
    %1454 = vdwg.mxu0
    %1455 = vmatprep.subr.mxu0 0.0
    %1456 = vmatpush1.msra.mxu0 0.0
    %1457 = vmatprep.subr.mxu0 0.0
    %1458 = vmatpush1.msra.mxu0 0.0
    %1459 = vmatprep.subr.mxu0 0.0
    %1460 = vmatpush1.msra.mxu0 0.0
    %1461 = vmatprep.subr.mxu0 0.0
    %1462 = vmatpush1.msra.mxu0 0.0
    %1463 = vmatprep.subr.mxu0 0.0
    %1464 = vmatpush1.msra.mxu0 0.0
    %1465 = vmatprep.subr.mxu0 0.0
    %1466 = vmatpush1.msra.mxu0 0.0
    %1467 = vmatprep.subr.mxu0 0.0
    %1468 = vmatpush1.msra.mxu0 0.0
    %1469 = vmatprep.subr.mxu0 %v1215
    %1470 = vmatpush1.msra.mxu0 %v1214
    %1471 = vmatprep.subr.mxu0 %v1191
    %1472 = vmatpush1.msra.mxu0 %v1190
    %1473 = vmatprep.subr.mxu0 %v1167
    %1474 = vmatpush1.msra.mxu0 %v1166
    %1475 = vmatprep.subr.mxu0 %v1143
    %1476 = vmatpush1.msra.mxu0 %v1142
    %1477 = vmatprep.subr.mxu0 %v1119
    %1478 = vmatpush1.msra.mxu0 %v1118
    %1479 = vmatprep.subr.mxu0 %v1095
    %1480 = vmatpush1.msra.mxu0 %v1094
    %1481 = vmatprep.subr.mxu0 %v1071
    %1482 = vmatpush1.msra.mxu0 %v1070
    %1483 = vmatprep.subr.mxu0 %v1047
    %1484 = vmatpush1.msra.mxu0 %v1046
    %1485 = vmatprep.subr.mxu0 %v1023
    %1486 = vmatpush1.msra.mxu0 %v1022
    %1487 = vmatprep.subr.mxu0 0.0
    %1488 = vmatpush2.msra.mxu0 0.0
    %1489 = vmatprep.subr.mxu0 0.0
    %1490 = vmatpush2.msra.mxu0 0.0
    %1491 = vmatprep.subr.mxu0 0.0
    %1492 = vmatpush2.msra.mxu0 0.0
    %1493 = vmatprep.subr.mxu0 0.0
    %1494 = vmatpush2.msra.mxu0 0.0
    %1495 = vmatprep.subr.mxu0 0.0
    %1496 = vmatpush2.msra.mxu0 0.0
    %1497 = vmatprep.subr.mxu0 0.0
    %1498 = vmatpush2.msra.mxu0 0.0
    %1499 = vmatprep.subr.mxu0 0.0
    %1500 = vmatpush2.msra.mxu0 0.0
    %1501 = vmatprep.subr.mxu0 0.0
    %1502 = vmatpush2.msra.mxu0 0.0
    %1503 = vmatprep.subr.mxu0 0.0
    %1504 = vmatpush2.msra.mxu0 0.0
    %1505 = vmatprep.subr.mxu0 0.0
    %1506 = vmatpush2.msra.mxu0 0.0
    %1507 = vmatprep.subr.mxu0 0.0
    %1508 = vmatpush2.msra.mxu0 0.0
    %1509 = vmatprep.subr.mxu0 0.0
    %1510 = vmatpush2.msra.mxu0 0.0
    %1511 = vmatprep.subr.mxu0 0.0
    %1512 = vmatpush2.msra.mxu0 0.0
    %1513 = vmatprep.subr.mxu0 0.0
    %1514 = vmatpush2.msra.mxu0 0.0
    %1515 = vmatprep.subr.mxu0 0.0
    %1516 = vmatpush2.msra.mxu0 0.0
    %1517 = vmatprep.subr.mxu0 0.0
    %1518 = vmatpush2.msra.mxu0 0.0
    %1519 = vmatprep.mubr.f32.mxu0 0.0
    %1520 = vmatmul.mubr.f32.gmra.mxu0 %v1240
    %v1521 = vpop.f32.mrf.mxu0
    %v1522 = vadd.f32 %v1236, %v1521
    %v1523 = vpop.f32.mrf.mxu0
    %v1524 = vadd.f32 %v1236, %v1523
    %1525 = vdwg.mxu0
    %1526 = vmatprep.subr.mxu0 0.0
    %1527 = vmatpush1.msra.mxu0 0.0
    %1528 = vmatprep.subr.mxu0 0.0
    %1529 = vmatpush1.msra.mxu0 0.0
    %1530 = vmatprep.subr.mxu0 0.0
    %1531 = vmatpush1.msra.mxu0 0.0
    %1532 = vmatprep.subr.mxu0 0.0
    %1533 = vmatpush1.msra.mxu0 0.0
    %1534 = vmatprep.subr.mxu0 0.0
    %1535 = vmatpush1.msra.mxu0 0.0
    %1536 = vmatprep.subr.mxu0 0.0
    %1537 = vmatpush1.msra.mxu0 0.0
    %1538 = vmatprep.subr.mxu0 0.0
    %1539 = vmatpush1.msra.mxu0 0.0
    %1540 = vmatprep.subr.mxu0 %v1217
    %1541 = vmatpush1.msra.mxu0 %v1216
    %1542 = vmatprep.subr.mxu0 %v1193
    %1543 = vmatpush1.msra.mxu0 %v1192
    %1544 = vmatprep.subr.mxu0 %v1169
    %1545 = vmatpush1.msra.mxu0 %v1168
    %1546 = vmatprep.subr.mxu0 %v1145
    %1547 = vmatpush1.msra.mxu0 %v1144
    %1548 = vmatprep.subr.mxu0 %v1121
    %1549 = vmatpush1.msra.mxu0 %v1120
    %1550 = vmatprep.subr.mxu0 %v1097
    %1551 = vmatpush1.msra.mxu0 %v1096
    %1552 = vmatprep.subr.mxu0 %v1073
    %1553 = vmatpush1.msra.mxu0 %v1072
    %1554 = vmatprep.subr.mxu0 %v1049
    %1555 = vmatpush1.msra.mxu0 %v1048
    %1556 = vmatprep.subr.mxu0 %v1025
    %1557 = vmatpush1.msra.mxu0 %v1024
    %1558 = vmatprep.subr.mxu0 0.0
    %1559 = vmatpush2.msra.mxu0 0.0
    %1560 = vmatprep.subr.mxu0 0.0
    %1561 = vmatpush2.msra.mxu0 0.0
    %1562 = vmatprep.subr.mxu0 0.0
    %1563 = vmatpush2.msra.mxu0 0.0
    %1564 = vmatprep.subr.mxu0 0.0
    %1565 = vmatpush2.msra.mxu0 0.0
    %1566 = vmatprep.subr.mxu0 0.0
    %1567 = vmatpush2.msra.mxu0 0.0
    %1568 = vmatprep.subr.mxu0 0.0
    %1569 = vmatpush2.msra.mxu0 0.0
    %1570 = vmatprep.subr.mxu0 0.0
    %1571 = vmatpush2.msra.mxu0 0.0
    %1572 = vmatprep.subr.mxu0 0.0
    %1573 = vmatpush2.msra.mxu0 0.0
    %1574 = vmatprep.subr.mxu0 0.0
    %1575 = vmatpush2.msra.mxu0 0.0
    %1576 = vmatprep.subr.mxu0 0.0
    %1577 = vmatpush2.msra.mxu0 0.0
    %1578 = vmatprep.subr.mxu0 0.0
    %1579 = vmatpush2.msra.mxu0 0.0
    %1580 = vmatprep.subr.mxu0 0.0
    %1581 = vmatpush2.msra.mxu0 0.0
    %1582 = vmatprep.subr.mxu0 0.0
    %1583 = vmatpush2.msra.mxu0 0.0
    %1584 = vmatprep.subr.mxu0 0.0
    %1585 = vmatpush2.msra.mxu0 0.0
    %1586 = vmatprep.subr.mxu0 0.0
    %1587 = vmatpush2.msra.mxu0 0.0
    %1588 = vmatprep.subr.mxu0 0.0
    %1589 = vmatpush2.msra.mxu0 0.0
    %1590 = vmatprep.mubr.f32.mxu0 0.0
    %1591 = vmatmul.mubr.f32.gmra.mxu0 %v1240
    %v1592 = vpop.f32.mrf.mxu0
    %v1593 = vadd.f32 %v1236, %v1592
    %v1594 = vpop.f32.mrf.mxu0
    %v1595 = vadd.f32 %v1236, %v1594
    %1596 = vdwg.mxu0
    %1597 = vmatprep.subr.mxu0 0.0
    %1598 = vmatpush1.msra.mxu0 0.0
    %1599 = vmatprep.subr.mxu0 0.0
    %1600 = vmatpush1.msra.mxu0 0.0
    %1601 = vmatprep.subr.mxu0 0.0
    %1602 = vmatpush1.msra.mxu0 0.0
    %1603 = vmatprep.subr.mxu0 0.0
    %1604 = vmatpush1.msra.mxu0 0.0
    %1605 = vmatprep.subr.mxu0 0.0
    %1606 = vmatpush1.msra.mxu0 0.0
    %1607 = vmatprep.subr.mxu0 0.0
    %1608 = vmatpush1.msra.mxu0 0.0
    %1609 = vmatprep.subr.mxu0 0.0
    %1610 = vmatpush1.msra.mxu0 0.0
    %1611 = vmatprep.subr.mxu0 %v1219
    %1612 = vmatpush1.msra.mxu0 %v1218
    %1613 = vmatprep.subr.mxu0 %v1195
    %1614 = vmatpush1.msra.mxu0 %v1194
    %1615 = vmatprep.subr.mxu0 %v1171
    %1616 = vmatpush1.msra.mxu0 %v1170
    %1617 = vmatprep.subr.mxu0 %v1147
    %1618 = vmatpush1.msra.mxu0 %v1146
    %1619 = vmatprep.subr.mxu0 %v1123
    %1620 = vmatpush1.msra.mxu0 %v1122
    %1621 = vmatprep.subr.mxu0 %v1099
    %1622 = vmatpush1.msra.mxu0 %v1098
    %1623 = vmatprep.subr.mxu0 %v1075
    %1624 = vmatpush1.msra.mxu0 %v1074
    %1625 = vmatprep.subr.mxu0 %v1051
    %1626 = vmatpush1.msra.mxu0 %v1050
    %1627 = vmatprep.subr.mxu0 %v1027
    %1628 = vmatpush1.msra.mxu0 %v1026
    %1629 = vmatprep.subr.mxu0 0.0
    %1630 = vmatpush2.msra.mxu0 0.0
    %1631 = vmatprep.subr.mxu0 0.0
    %1632 = vmatpush2.msra.mxu0 0.0
    %1633 = vmatprep.subr.mxu0 0.0
    %1634 = vmatpush2.msra.mxu0 0.0
    %1635 = vmatprep.subr.mxu0 0.0
    %1636 = vmatpush2.msra.mxu0 0.0
    %1637 = vmatprep.subr.mxu0 0.0
    %1638 = vmatpush2.msra.mxu0 0.0
    %1639 = vmatprep.subr.mxu0 0.0
    %1640 = vmatpush2.msra.mxu0 0.0
    %1641 = vmatprep.subr.mxu0 0.0
    %1642 = vmatpush2.msra.mxu0 0.0
    %1643 = vmatprep.subr.mxu0 0.0
    %1644 = vmatpush2.msra.mxu0 0.0
    %1645 = vmatprep.subr.mxu0 0.0
    %1646 = vmatpush2.msra.mxu0 0.0
    %1647 = vmatprep.subr.mxu0 0.0
    %1648 = vmatpush2.msra.mxu0 0.0
    %1649 = vmatprep.subr.mxu0 0.0
    %1650 = vmatpush2.msra.mxu0 0.0
    %1651 = vmatprep.subr.mxu0 0.0
    %1652 = vmatpush2.msra.mxu0 0.0
    %1653 = vmatprep.subr.mxu0 0.0
    %1654 = vmatpush2.msra.mxu0 0.0
    %1655 = vmatprep.subr.mxu0 0.0
    %1656 = vmatpush2.msra.mxu0 0.0
    %1657 = vmatprep.subr.mxu0 0.0
    %1658 = vmatpush2.msra.mxu0 0.0
    %1659 = vmatprep.subr.mxu0 0.0
    %1660 = vmatpush2.msra.mxu0 0.0
    %1661 = vmatprep.mubr.f32.mxu0 0.0
    %1662 = vmatmul.mubr.f32.gmra.mxu0 %v1240
    %v1663 = vpop.f32.mrf.mxu0
    %v1664 = vadd.f32 %v1236, %v1663
    %v1665 = vpop.f32.mrf.mxu0
    %v1666 = vadd.f32 %v1236, %v1665
    %1667 = vdwg.mxu0
    %1668 = vmatprep.subr.mxu0 0.0
    %1669 = vmatpush1.msra.mxu0 0.0
    %1670 = vmatprep.subr.mxu0 0.0
    %1671 = vmatpush1.msra.mxu0 0.0
    %1672 = vmatprep.subr.mxu0 0.0
    %1673 = vmatpush1.msra.mxu0 0.0
    %1674 = vmatprep.subr.mxu0 0.0
    %1675 = vmatpush1.msra.mxu0 0.0
    %1676 = vmatprep.subr.mxu0 0.0
    %1677 = vmatpush1.msra.mxu0 0.0
    %1678 = vmatprep.subr.mxu0 0.0
    %1679 = vmatpush1.msra.mxu0 0.0
    %1680 = vmatprep.subr.mxu0 0.0
    %1681 = vmatpush1.msra.mxu0 0.0
    %1682 = vmatprep.subr.mxu0 %v1221
    %1683 = vmatpush1.msra.mxu0 %v1220
    %1684 = vmatprep.subr.mxu0 %v1197
    %1685 = vmatpush1.msra.mxu0 %v1196
    %1686 = vmatprep.subr.mxu0 %v1173
    %1687 = vmatpush1.msra.mxu0 %v1172
    %1688 = vmatprep.subr.mxu0 %v1149
    %1689 = vmatpush1.msra.mxu0 %v1148
    %1690 = vmatprep.subr.mxu0 %v1125
    %1691 = vmatpush1.msra.mxu0 %v1124
    %1692 = vmatprep.subr.mxu0 %v1101
    %1693 = vmatpush1.msra.mxu0 %v1100
    %1694 = vmatprep.subr.mxu0 %v1077
    %1695 = vmatpush1.msra.mxu0 %v1076
    %1696 = vmatprep.subr.mxu0 %v1053
    %1697 = vmatpush1.msra.mxu0 %v1052
    %1698 = vmatprep.subr.mxu0 %v1029
    %1699 = vmatpush1.msra.mxu0 %v1028
    %1700 = vmatprep.subr.mxu0 0.0
    %1701 = vmatpush2.msra.mxu0 0.0
    %1702 = vmatprep.subr.mxu0 0.0
    %1703 = vmatpush2.msra.mxu0 0.0
    %1704 = vmatprep.subr.mxu0 0.0
    %1705 = vmatpush2.msra.mxu0 0.0
    %1706 = vmatprep.subr.mxu0 0.0
    %1707 = vmatpush2.msra.mxu0 0.0
    %1708 = vmatprep.subr.mxu0 0.0
    %1709 = vmatpush2.msra.mxu0 0.0
    %1710 = vmatprep.subr.mxu0 0.0
    %1711 = vmatpush2.msra.mxu0 0.0
    %1712 = vmatprep.subr.mxu0 0.0
    %1713 = vmatpush2.msra.mxu0 0.0
    %1714 = vmatprep.subr.mxu0 0.0
    %1715 = vmatpush2.msra.mxu0 0.0
    %1716 = vmatprep.subr.mxu0 0.0
    %1717 = vmatpush2.msra.mxu0 0.0
    %1718 = vmatprep.subr.mxu0 0.0
    %1719 = vmatpush2.msra.mxu0 0.0
    %1720 = vmatprep.subr.mxu0 0.0
    %1721 = vmatpush2.msra.mxu0 0.0
    %1722 = vmatprep.subr.mxu0 0.0
    %1723 = vmatpush2.msra.mxu0 0.0
    %1724 = vmatprep.subr.mxu0 0.0
    %1725 = vmatpush2.msra.mxu0 0.0
    %1726 = vmatprep.subr.mxu0 0.0
    %1727 = vmatpush2.msra.mxu0 0.0
    %1728 = vmatprep.subr.mxu0 0.0
    %1729 = vmatpush2.msra.mxu0 0.0
    %1730 = vmatprep.subr.mxu0 0.0
    %1731 = vmatpush2.msra.mxu0 0.0
    %1732 = vmatprep.mubr.f32.mxu0 0.0
    %1733 = vmatmul.mubr.f32.gmra.mxu0 %v1240
    %v1734 = vpop.f32.mrf.mxu0
    %v1735 = vadd.f32 %v1236, %v1734
    %v1736 = vpop.f32.mrf.mxu0
    %v1737 = vadd.f32 %v1236, %v1736
    %1738 = vdwg.mxu0
    %1739 = vmatprep.subr.mxu0 0.0
    %1740 = vmatpush1.msra.mxu0 0.0
    %1741 = vmatprep.subr.mxu0 0.0
    %1742 = vmatpush1.msra.mxu0 0.0
    %1743 = vmatprep.subr.mxu0 0.0
    %1744 = vmatpush1.msra.mxu0 0.0
    %1745 = vmatprep.subr.mxu0 0.0
    %1746 = vmatpush1.msra.mxu0 0.0
    %1747 = vmatprep.subr.mxu0 0.0
    %1748 = vmatpush1.msra.mxu0 0.0
    %1749 = vmatprep.subr.mxu0 0.0
    %1750 = vmatpush1.msra.mxu0 0.0
    %1751 = vmatprep.subr.mxu0 0.0
    %1752 = vmatpush1.msra.mxu0 0.0
    %1753 = vmatprep.subr.mxu0 %v1223
    %1754 = vmatpush1.msra.mxu0 %v1222
    %1755 = vmatprep.subr.mxu0 %v1199
    %1756 = vmatpush1.msra.mxu0 %v1198
    %1757 = vmatprep.subr.mxu0 %v1175
    %1758 = vmatpush1.msra.mxu0 %v1174
    %1759 = vmatprep.subr.mxu0 %v1151
    %1760 = vmatpush1.msra.mxu0 %v1150
    %1761 = vmatprep.subr.mxu0 %v1127
    %1762 = vmatpush1.msra.mxu0 %v1126
    %1763 = vmatprep.subr.mxu0 %v1103
    %1764 = vmatpush1.msra.mxu0 %v1102
    %1765 = vmatprep.subr.mxu0 %v1079
    %1766 = vmatpush1.msra.mxu0 %v1078
    %1767 = vmatprep.subr.mxu0 %v1055
    %1768 = vmatpush1.msra.mxu0 %v1054
    %1769 = vmatprep.subr.mxu0 %v1031
    %1770 = vmatpush1.msra.mxu0 %v1030
    %1771 = vmatprep.subr.mxu0 0.0
    %1772 = vmatpush2.msra.mxu0 0.0
    %1773 = vmatprep.subr.mxu0 0.0
    %1774 = vmatpush2.msra.mxu0 0.0
    %1775 = vmatprep.subr.mxu0 0.0
    %1776 = vmatpush2.msra.mxu0 0.0
    %1777 = vmatprep.subr.mxu0 0.0
    %1778 = vmatpush2.msra.mxu0 0.0
    %1779 = vmatprep.subr.mxu0 0.0
    %1780 = vmatpush2.msra.mxu0 0.0
    %1781 = vmatprep.subr.mxu0 0.0
    %1782 = vmatpush2.msra.mxu0 0.0
    %1783 = vmatprep.subr.mxu0 0.0
    %1784 = vmatpush2.msra.mxu0 0.0
    %1785 = vmatprep.subr.mxu0 0.0
    %1786 = vmatpush2.msra.mxu0 0.0
    %1787 = vmatprep.subr.mxu0 0.0
    %1788 = vmatpush2.msra.mxu0 0.0
    %1789 = vmatprep.subr.mxu0 0.0
    %1790 = vmatpush2.msra.mxu0 0.0
    %1791 = vmatprep.subr.mxu0 0.0
    %1792 = vmatpush2.msra.mxu0 0.0
    %1793 = vmatprep.subr.mxu0 0.0
    %1794 = vmatpush2.msra.mxu0 0.0
    %1795 = vmatprep.subr.mxu0 0.0
    %1796 = vmatpush2.msra.mxu0 0.0
    %1797 = vmatprep.subr.mxu0 0.0
    %1798 = vmatpush2.msra.mxu0 0.0
    %1799 = vmatprep.subr.mxu0 0.0
    %1800 = vmatpush2.msra.mxu0 0.0
    %1801 = vmatprep.subr.mxu0 0.0
    %1802 = vmatpush2.msra.mxu0 0.0
    %1803 = vmatprep.mubr.f32.mxu0 0.0
    %1804 = vmatmul.mubr.f32.gmra.mxu0 %v1240
    %v1805 = vpop.f32.mrf.mxu0
    %v1806 = vadd.f32 %v1236, %v1805
    %v1807 = vpop.f32.mrf.mxu0
    %v1808 = vadd.f32 %v1236, %v1807
    %1809 = vdwg.mxu0
    %1810 = vmatprep.subr.mxu0 0.0
    %1811 = vmatpush1.msra.mxu0 0.0
    %1812 = vmatprep.subr.mxu0 0.0
    %1813 = vmatpush1.msra.mxu0 0.0
    %1814 = vmatprep.subr.mxu0 0.0
    %1815 = vmatpush1.msra.mxu0 0.0
    %1816 = vmatprep.subr.mxu0 0.0
    %1817 = vmatpush1.msra.mxu0 0.0
    %1818 = vmatprep.subr.mxu0 0.0
    %1819 = vmatpush1.msra.mxu0 0.0
    %1820 = vmatprep.subr.mxu0 0.0
    %1821 = vmatpush1.msra.mxu0 0.0
    %1822 = vmatprep.subr.mxu0 0.0
    %1823 = vmatpush1.msra.mxu0 0.0
    %1824 = vmatprep.subr.mxu0 %v1225
    %1825 = vmatpush1.msra.mxu0 %v1224
    %1826 = vmatprep.subr.mxu0 %v1201
    %1827 = vmatpush1.msra.mxu0 %v1200
    %1828 = vmatprep.subr.mxu0 %v1177
    %1829 = vmatpush1.msra.mxu0 %v1176
    %1830 = vmatprep.subr.mxu0 %v1153
    %1831 = vmatpush1.msra.mxu0 %v1152
    %1832 = vmatprep.subr.mxu0 %v1129
    %1833 = vmatpush1.msra.mxu0 %v1128
    %1834 = vmatprep.subr.mxu0 %v1105
    %1835 = vmatpush1.msra.mxu0 %v1104
    %1836 = vmatprep.subr.mxu0 %v1081
    %1837 = vmatpush1.msra.mxu0 %v1080
    %1838 = vmatprep.subr.mxu0 %v1057
    %1839 = vmatpush1.msra.mxu0 %v1056
    %1840 = vmatprep.subr.mxu0 %v1033
    %1841 = vmatpush1.msra.mxu0 %v1032
    %1842 = vmatprep.subr.mxu0 0.0
    %1843 = vmatpush2.msra.mxu0 0.0
    %1844 = vmatprep.subr.mxu0 0.0
    %1845 = vmatpush2.msra.mxu0 0.0
    %1846 = vmatprep.subr.mxu0 0.0
    %1847 = vmatpush2.msra.mxu0 0.0
    %1848 = vmatprep.subr.mxu0 0.0
    %1849 = vmatpush2.msra.mxu0 0.0
    %1850 = vmatprep.subr.mxu0 0.0
    %1851 = vmatpush2.msra.mxu0 0.0
    %1852 = vmatprep.subr.mxu0 0.0
    %1853 = vmatpush2.msra.mxu0 0.0
    %1854 = vmatprep.subr.mxu0 0.0
    %1855 = vmatpush2.msra.mxu0 0.0
    %1856 = vmatprep.subr.mxu0 0.0
    %1857 = vmatpush2.msra.mxu0 0.0
    %1858 = vmatprep.subr.mxu0 0.0
    %1859 = vmatpush2.msra.mxu0 0.0
    %1860 = vmatprep.subr.mxu0 0.0
    %1861 = vmatpush2.msra.mxu0 0.0
    %1862 = vmatprep.subr.mxu0 0.0
    %1863 = vmatpush2.msra.mxu0 0.0
    %1864 = vmatprep.subr.mxu0 0.0
    %1865 = vmatpush2.msra.mxu0 0.0
    %1866 = vmatprep.subr.mxu0 0.0
    %1867 = vmatpush2.msra.mxu0 0.0
    %1868 = vmatprep.subr.mxu0 0.0
    %1869 = vmatpush2.msra.mxu0 0.0
    %1870 = vmatprep.subr.mxu0 0.0
    %1871 = vmatpush2.msra.mxu0 0.0
    %1872 = vmatprep.subr.mxu0 0.0
    %1873 = vmatpush2.msra.mxu0 0.0
    %1874 = vmatprep.mubr.f32.mxu0 0.0
    %1875 = vmatmul.mubr.f32.gmra.mxu0 %v1240
    %v1876 = vpop.f32.mrf.mxu0
    %v1877 = vadd.f32 %v1236, %v1876
    %v1878 = vpop.f32.mrf.mxu0
    %v1879 = vadd.f32 %v1236, %v1878
    %1880 = vdwg.mxu0
    %1881 = vmatprep.subr.mxu0 0.0
    %1882 = vmatpush1.msra.mxu0 0.0
    %1883 = vmatprep.subr.mxu0 0.0
    %1884 = vmatpush1.msra.mxu0 0.0
    %1885 = vmatprep.subr.mxu0 0.0
    %1886 = vmatpush1.msra.mxu0 0.0
    %1887 = vmatprep.subr.mxu0 0.0
    %1888 = vmatpush1.msra.mxu0 0.0
    %1889 = vmatprep.subr.mxu0 0.0
    %1890 = vmatpush1.msra.mxu0 0.0
    %1891 = vmatprep.subr.mxu0 0.0
    %1892 = vmatpush1.msra.mxu0 0.0
    %1893 = vmatprep.subr.mxu0 0.0
    %1894 = vmatpush1.msra.mxu0 0.0
    %1895 = vmatprep.subr.mxu0 %v1227
    %1896 = vmatpush1.msra.mxu0 %v1226
    %1897 = vmatprep.subr.mxu0 %v1203
    %1898 = vmatpush1.msra.mxu0 %v1202
    %1899 = vmatprep.subr.mxu0 %v1179
    %1900 = vmatpush1.msra.mxu0 %v1178
    %1901 = vmatprep.subr.mxu0 %v1155
    %1902 = vmatpush1.msra.mxu0 %v1154
    %1903 = vmatprep.subr.mxu0 %v1131
    %1904 = vmatpush1.msra.mxu0 %v1130
    %1905 = vmatprep.subr.mxu0 %v1107
    %1906 = vmatpush1.msra.mxu0 %v1106
    %1907 = vmatprep.subr.mxu0 %v1083
    %1908 = vmatpush1.msra.mxu0 %v1082
    %1909 = vmatprep.subr.mxu0 %v1059
    %1910 = vmatpush1.msra.mxu0 %v1058
    %1911 = vmatprep.subr.mxu0 %v1035
    %1912 = vmatpush1.msra.mxu0 %v1034
    %1913 = vmatprep.subr.mxu0 0.0
    %1914 = vmatpush2.msra.mxu0 0.0
    %1915 = vmatprep.subr.mxu0 0.0
    %1916 = vmatpush2.msra.mxu0 0.0
    %1917 = vmatprep.subr.mxu0 0.0
    %1918 = vmatpush2.msra.mxu0 0.0
    %1919 = vmatprep.subr.mxu0 0.0
    %1920 = vmatpush2.msra.mxu0 0.0
    %1921 = vmatprep.subr.mxu0 0.0
    %1922 = vmatpush2.msra.mxu0 0.0
    %1923 = vmatprep.subr.mxu0 0.0
    %1924 = vmatpush2.msra.mxu0 0.0
    %1925 = vmatprep.subr.mxu0 0.0
    %1926 = vmatpush2.msra.mxu0 0.0
    %1927 = vmatprep.subr.mxu0 0.0
    %1928 = vmatpush2.msra.mxu0 0.0
    %1929 = vmatprep.subr.mxu0 0.0
    %1930 = vmatpush2.msra.mxu0 0.0
    %1931 = vmatprep.subr.mxu0 0.0
    %1932 = vmatpush2.msra.mxu0 0.0
    %1933 = vmatprep.subr.mxu0 0.0
    %1934 = vmatpush2.msra.mxu0 0.0
    %1935 = vmatprep.subr.mxu0 0.0
    %1936 = vmatpush2.msra.mxu0 0.0
    %1937 = vmatprep.subr.mxu0 0.0
    %1938 = vmatpush2.msra.mxu0 0.0
    %1939 = vmatprep.subr.mxu0 0.0
    %1940 = vmatpush2.msra.mxu0 0.0
    %1941 = vmatprep.subr.mxu0 0.0
    %1942 = vmatpush2.msra.mxu0 0.0
    %1943 = vmatprep.subr.mxu0 0.0
    %1944 = vmatpush2.msra.mxu0 0.0
    %1945 = vmatprep.mubr.f32.mxu0 0.0
    %1946 = vmatmul.mubr.f32.gmra.mxu0 %v1240
    %v1947 = vpop.f32.mrf.mxu0
    %v1948 = vadd.f32 %v1236, %v1947
    %v1949 = vpop.f32.mrf.mxu0
    %v1950 = vadd.f32 %v1236, %v1949
    %1951 = vdwg.mxu0
    %1952 = vmatprep.subr.mxu0 0.0
    %1953 = vmatpush1.msra.mxu0 0.0
    %1954 = vmatprep.subr.mxu0 0.0
    %1955 = vmatpush1.msra.mxu0 0.0
    %1956 = vmatprep.subr.mxu0 0.0
    %1957 = vmatpush1.msra.mxu0 0.0
    %1958 = vmatprep.subr.mxu0 0.0
    %1959 = vmatpush1.msra.mxu0 0.0
    %1960 = vmatprep.subr.mxu0 0.0
    %1961 = vmatpush1.msra.mxu0 0.0
    %1962 = vmatprep.subr.mxu0 0.0
    %1963 = vmatpush1.msra.mxu0 0.0
    %1964 = vmatprep.subr.mxu0 0.0
    %1965 = vmatpush1.msra.mxu0 0.0
    %1966 = vmatprep.subr.mxu0 %v1229
    %1967 = vmatpush1.msra.mxu0 %v1228
    %1968 = vmatprep.subr.mxu0 %v1205
    %1969 = vmatpush1.msra.mxu0 %v1204
    %1970 = vmatprep.subr.mxu0 %v1181
    %1971 = vmatpush1.msra.mxu0 %v1180
    %1972 = vmatprep.subr.mxu0 %v1157
    %1973 = vmatpush1.msra.mxu0 %v1156
    %1974 = vmatprep.subr.mxu0 %v1133
    %1975 = vmatpush1.msra.mxu0 %v1132
    %1976 = vmatprep.subr.mxu0 %v1109
    %1977 = vmatpush1.msra.mxu0 %v1108
    %1978 = vmatprep.subr.mxu0 %v1085
    %1979 = vmatpush1.msra.mxu0 %v1084
    %1980 = vmatprep.subr.mxu0 %v1061
    %1981 = vmatpush1.msra.mxu0 %v1060
    %1982 = vmatprep.subr.mxu0 %v1037
    %1983 = vmatpush1.msra.mxu0 %v1036
    %1984 = vmatprep.subr.mxu0 0.0
    %1985 = vmatpush2.msra.mxu0 0.0
    %1986 = vmatprep.subr.mxu0 0.0
    %1987 = vmatpush2.msra.mxu0 0.0
    %1988 = vmatprep.subr.mxu0 0.0
    %1989 = vmatpush2.msra.mxu0 0.0
    %1990 = vmatprep.subr.mxu0 0.0
    %1991 = vmatpush2.msra.mxu0 0.0
    %1992 = vmatprep.subr.mxu0 0.0
    %1993 = vmatpush2.msra.mxu0 0.0
    %1994 = vmatprep.subr.mxu0 0.0
    %1995 = vmatpush2.msra.mxu0 0.0
    %1996 = vmatprep.subr.mxu0 0.0
    %1997 = vmatpush2.msra.mxu0 0.0
    %1998 = vmatprep.subr.mxu0 0.0
    %1999 = vmatpush2.msra.mxu0 0.0
    %2000 = vmatprep.subr.mxu0 0.0
    %2001 = vmatpush2.msra.mxu0 0.0
    %2002 = vmatprep.subr.mxu0 0.0
    %2003 = vmatpush2.msra.mxu0 0.0
    %2004 = vmatprep.subr.mxu0 0.0
    %2005 = vmatpush2.msra.mxu0 0.0
    %2006 = vmatprep.subr.mxu0 0.0
    %2007 = vmatpush2.msra.mxu0 0.0
    %2008 = vmatprep.subr.mxu0 0.0
    %2009 = vmatpush2.msra.mxu0 0.0
    %2010 = vmatprep.subr.mxu0 0.0
    %2011 = vmatpush2.msra.mxu0 0.0
    %2012 = vmatprep.subr.mxu0 0.0
    %2013 = vmatpush2.msra.mxu0 0.0
    %2014 = vmatprep.subr.mxu0 0.0
    %2015 = vmatpush2.msra.mxu0 0.0
    %2016 = vmatprep.mubr.f32.mxu0 0.0
    %2017 = vmatmul.mubr.f32.gmra.mxu0 %v1240
    %v2018 = vpop.f32.mrf.mxu0
    %v2019 = vadd.f32 %v1236, %v2018
    %v2020 = vpop.f32.mrf.mxu0
    %v2021 = vadd.f32 %v1236, %v2020
    %2022 = vdwg.mxu0
    %2023 = vmatprep.subr.mxu0 0.0
    %2024 = vmatpush1.msra.mxu0 0.0
    %2025 = vmatprep.subr.mxu0 0.0
    %2026 = vmatpush1.msra.mxu0 0.0
    %2027 = vmatprep.subr.mxu0 0.0
    %2028 = vmatpush1.msra.mxu0 0.0
    %2029 = vmatprep.subr.mxu0 0.0
    %2030 = vmatpush1.msra.mxu0 0.0
    %2031 = vmatprep.subr.mxu0 0.0
    %2032 = vmatpush1.msra.mxu0 0.0
    %2033 = vmatprep.subr.mxu0 0.0
    %2034 = vmatpush1.msra.mxu0 0.0
    %2035 = vmatprep.subr.mxu0 0.0
    %2036 = vmatpush1.msra.mxu0 0.0
    %2037 = vmatprep.subr.mxu0 %v1231
    %2038 = vmatpush1.msra.mxu0 %v1230
    %2039 = vmatprep.subr.mxu0 %v1207
    %2040 = vmatpush1.msra.mxu0 %v1206
    %2041 = vmatprep.subr.mxu0 %v1183
    %2042 = vmatpush1.msra.mxu0 %v1182
    %2043 = vmatprep.subr.mxu0 %v1159
    %2044 = vmatpush1.msra.mxu0 %v1158
    %2045 = vmatprep.subr.mxu0 %v1135
    %2046 = vmatpush1.msra.mxu0 %v1134
    %2047 = vmatprep.subr.mxu0 %v1111
    %2048 = vmatpush1.msra.mxu0 %v1110
    %2049 = vmatprep.subr.mxu0 %v1087
    %2050 = vmatpush1.msra.mxu0 %v1086
    %2051 = vmatprep.subr.mxu0 %v1063
    %2052 = vmatpush1.msra.mxu0 %v1062
    %2053 = vmatprep.subr.mxu0 %v1039
    %2054 = vmatpush1.msra.mxu0 %v1038
    %2055 = vmatprep.subr.mxu0 0.0
    %2056 = vmatpush2.msra.mxu0 0.0
    %2057 = vmatprep.subr.mxu0 0.0
    %2058 = vmatpush2.msra.mxu0 0.0
    %2059 = vmatprep.subr.mxu0 0.0
    %2060 = vmatpush2.msra.mxu0 0.0
    %2061 = vmatprep.subr.mxu0 0.0
    %2062 = vmatpush2.msra.mxu0 0.0
    %2063 = vmatprep.subr.mxu0 0.0
    %2064 = vmatpush2.msra.mxu0 0.0
    %2065 = vmatprep.subr.mxu0 0.0
    %2066 = vmatpush2.msra.mxu0 0.0
    %2067 = vmatprep.subr.mxu0 0.0
    %2068 = vmatpush2.msra.mxu0 0.0
    %2069 = vmatprep.subr.mxu0 0.0
    %2070 = vmatpush2.msra.mxu0 0.0
    %2071 = vmatprep.subr.mxu0 0.0
    %2072 = vmatpush2.msra.mxu0 0.0
    %2073 = vmatprep.subr.mxu0 0.0
    %2074 = vmatpush2.msra.mxu0 0.0
    %2075 = vmatprep.subr.mxu0 0.0
    %2076 = vmatpush2.msra.mxu0 0.0
    %2077 = vmatprep.subr.mxu0 0.0
    %2078 = vmatpush2.msra.mxu0 0.0
    %2079 = vmatprep.subr.mxu0 0.0
    %2080 = vmatpush2.msra.mxu0 0.0
    %2081 = vmatprep.subr.mxu0 0.0
    %2082 = vmatpush2.msra.mxu0 0.0
    %2083 = vmatprep.subr.mxu0 0.0
    %2084 = vmatpush2.msra.mxu0 0.0
    %2085 = vmatprep.subr.mxu0 0.0
    %2086 = vmatpush2.msra.mxu0 0.0
    %2087 = vmatprep.mubr.f32.mxu0 0.0
    %2088 = vmatmul.mubr.f32.gmra.mxu0 %v1240
    %v2089 = vpop.f32.mrf.mxu0
    %v2090 = vadd.f32 %v1236, %v2089
    %v2091 = vpop.f32.mrf.mxu0
    %v2092 = vadd.f32 %v1236, %v2091
    %2093 = vdwg.mxu0
    %v2094 = vmax.f32 %v1309, 0.0
    %v2095 = vmax.f32 %v1311, 0.0
    %v2096 = vmax.f32 %v1380, 0.0
    %v2097 = vmax.f32 %v1382, 0.0
    %v2098 = vmax.f32 %v1451, 0.0
    %v2099 = vmax.f32 %v1453, 0.0
    %v2100 = vmax.f32 %v1522, 0.0
    %v2101 = vmax.f32 %v1524, 0.0
    %v2102 = vmax.f32 %v1593, 0.0
    %v2103 = vmax.f32 %v1595, 0.0
    %v2104 = vmax.f32 %v1664, 0.0
    %v2105 = vmax.f32 %v1666, 0.0
    %v2106 = vmax.f32 %v1735, 0.0
    %v2107 = vmax.f32 %v1737, 0.0
    %v2108 = vmax.f32 %v1806, 0.0
    %v2109 = vmax.f32 %v1808, 0.0
    %v2110 = vmax.f32 %v1877, 0.0
    %v2111 = vmax.f32 %v1879, 0.0
    %v2112 = vmax.f32 %v1948, 0.0
    %v2113 = vmax.f32 %v1950, 0.0
    %v2114 = vmax.f32 %v2019, 0.0
    %v2115 = vmax.f32 %v2021, 0.0
    %v2116 = vmax.f32 %v2090, 0.0
    %v2117 = vmax.f32 %v2092, 0.0
    %v2118 = vld [vmem:[#allocation4] sm:$0xff]
    %v2119 = vld [vmem:[#allocation4 + $0x8] sm:$0xff]
    %v2120 = vld [vmem:[#allocation4 + $0x10] sm:$0xff]
    %v2121 = vld [vmem:[#allocation4 + $0x18] sm:$0xff]
    %v2122 = vld [vmem:[#allocation4 + $0x20] sm:$0xff]
    %v2123 = vld [vmem:[#allocation4 + $0x28] sm:$0xff]
    %v2124 = vld [vmem:[#allocation4 + $0x30] sm:$0xff]
    %v2125 = vld [vmem:[#allocation4 + $0x38] sm:$0xff]
    %v2126 = vld [vmem:[#allocation4 + $0x40] sm:$0xff]
    %v2127 = vld [vmem:[#allocation4 + $0x48] sm:$0xff]
    %v2128 = vld [vmem:[#allocation4 + $0x50] sm:$0xff]
    %v2129 = vld [vmem:[#allocation4 + $0x58] sm:$0xff]
    %v2130 = vld [vmem:[#allocation4 + $0x60] sm:$0xff]
    %v2131 = vld [vmem:[#allocation4 + $0x68] sm:$0xff]
    %v2132 = vld [vmem:[#allocation4 + $0x70] sm:$0xff]
    %v2133 = vld [vmem:[#allocation4 + $0x78] sm:$0xff]
    %v2134 = vld [vmem:[#allocation4 + $0x80] sm:$0xff]
    %v2135 = vld [vmem:[#allocation4 + $0x88] sm:$0xff]
    %v2136 = vld [vmem:[#allocation4 + $0x90] sm:$0xff]
    %v2137 = vld [vmem:[#allocation4 + $0x98] sm:$0xff]
    %v2138 = vld [vmem:[#allocation4 + $0xa0] sm:$0xff]
    %v2139 = vld [vmem:[#allocation4 + $0xa8] sm:$0xff]
    %v2140 = vld [vmem:[#allocation4 + $0xb0] sm:$0xff]
    %v2141 = vld [vmem:[#allocation4 + $0xb8] sm:$0xff]
    %v2142 = vld [vmem:[#allocation4 + $0xc0] sm:$0xff]
    %v2143 = vld [vmem:[#allocation4 + $0xc8] sm:$0xff]
    %v2144 = vld [vmem:[#allocation4 + $0xd0] sm:$0xff]
    %v2145 = vld [vmem:[#allocation4 + $0xd8] sm:$0xff]
    %v2146 = vld [vmem:[#allocation4 + $0xe0] sm:$0xff]
    %v2147 = vld [vmem:[#allocation4 + $0xe8] sm:$0xff]
    %v2148 = vld [vmem:[#allocation4 + $0xf0] sm:$0xff]
    %v2149 = vld [vmem:[#allocation4 + $0xf8] sm:$0xff]
    %v2150 = vld [vmem:[#allocation4 + $0x100] sm:$0xff]
    %v2151 = vld [vmem:[#allocation4 + $0x108] sm:$0xff]
    %v2152 = vld [vmem:[#allocation4 + $0x110] sm:$0xff]
    %v2153 = vld [vmem:[#allocation4 + $0x118] sm:$0xff]
    %v2154 = vld [vmem:[#allocation4 + $0x120] sm:$0xff]
    %v2155 = vld [vmem:[#allocation4 + $0x128] sm:$0xff]
    %v2156 = vld [vmem:[#allocation4 + $0x130] sm:$0xff]
    %v2157 = vld [vmem:[#allocation4 + $0x138] sm:$0xff]
    %v2158 = vld [vmem:[#allocation4 + $0x140] sm:$0xff]
    %v2159 = vld [vmem:[#allocation4 + $0x148] sm:$0xff]
    %v2160 = vld [vmem:[#allocation4 + $0x150] sm:$0xff]
    %v2161 = vld [vmem:[#allocation4 + $0x158] sm:$0xff]
    %v2162 = vld [vmem:[#allocation4 + $0x160] sm:$0xff]
    %v2163 = vld [vmem:[#allocation4 + $0x168] sm:$0xff]
    %v2164 = vld [vmem:[#allocation4 + $0x170] sm:$0xff]
    %v2165 = vld [vmem:[#allocation4 + $0x178] sm:$0xff]
    %v2166 = vld [vmem:[#allocation4 + $0x180] sm:$0xff]
    %v2167 = vld [vmem:[#allocation4 + $0x188] sm:$0xff]
    %v2168 = vld [vmem:[#allocation4 + $0x190] sm:$0xff]
    %v2169 = vld [vmem:[#allocation4 + $0x198] sm:$0xff]
    %v2170 = vld [vmem:[#allocation4 + $0x1a0] sm:$0xff]
    %v2171 = vld [vmem:[#allocation4 + $0x1a8] sm:$0xff]
    %v2172 = vld [vmem:[#allocation4 + $0x1b0] sm:$0xff]
    %v2173 = vld [vmem:[#allocation4 + $0x1b8] sm:$0xff]
    %v2174 = vld [vmem:[#allocation4 + $0x1c0] sm:$0xff]
    %v2175 = vld [vmem:[#allocation4 + $0x1c8] sm:$0xff]
    %v2176 = vld [vmem:[#allocation4 + $0x1d0] sm:$0xff]
    %v2177 = vld [vmem:[#allocation4 + $0x1d8] sm:$0xff]
    %v2178 = vld [vmem:[#allocation4 + $0x1e0] sm:$0xff]
    %v2179 = vld [vmem:[#allocation4 + $0x1e8] sm:$0xff]
    %v2180 = vld [vmem:[#allocation4 + $0x1f0] sm:$0xff]
    %v2181 = vld [vmem:[#allocation4 + $0x1f8] sm:$0xff]
    %v2182 = vld [vmem:[#allocation4 + $0x200] sm:$0xff]
    %v2183 = vld [vmem:[#allocation4 + $0x208] sm:$0xff]
    %v2184 = vld [vmem:[#allocation4 + $0x210] sm:$0xff]
    %v2185 = vld [vmem:[#allocation4 + $0x218] sm:$0xff]
    %v2186 = vld [vmem:[#allocation4 + $0x220] sm:$0xff]
    %v2187 = vld [vmem:[#allocation4 + $0x228] sm:$0xff]
    %v2188 = vld [vmem:[#allocation4 + $0x230] sm:$0xff]
    %v2189 = vld [vmem:[#allocation4 + $0x238] sm:$0xff]
    %v2190 = vld [vmem:[#allocation4 + $0x240] sm:$0xff]
    %v2191 = vld [vmem:[#allocation4 + $0x248] sm:$0xff]
    %v2192 = vld [vmem:[#allocation4 + $0x250] sm:$0xff]
    %v2193 = vld [vmem:[#allocation4 + $0x258] sm:$0xff]
    %v2194 = vld [vmem:[#allocation4 + $0x260] sm:$0xff]
    %v2195 = vld [vmem:[#allocation4 + $0x268] sm:$0xff]
    %v2196 = vld [vmem:[#allocation4 + $0x270] sm:$0xff]
    %v2197 = vld [vmem:[#allocation4 + $0x278] sm:$0xff]
    %v2198 = vld [vmem:[#allocation4 + $0x280] sm:$0xff]
    %v2199 = vld [vmem:[#allocation4 + $0x288] sm:$0xff]
    %v2200 = vld [vmem:[#allocation4 + $0x290] sm:$0xff]
    %v2201 = vld [vmem:[#allocation4 + $0x298] sm:$0xff]
    %v2202 = vld [vmem:[#allocation4 + $0x2a0] sm:$0xff]
    %v2203 = vld [vmem:[#allocation4 + $0x2a8] sm:$0xff]
    %v2204 = vld [vmem:[#allocation4 + $0x2b0] sm:$0xff]
    %v2205 = vld [vmem:[#allocation4 + $0x2b8] sm:$0xff]
    %v2206 = vld [vmem:[#allocation4 + $0x2c0] sm:$0xff]
    %v2207 = vld [vmem:[#allocation4 + $0x2c8] sm:$0xff]
    %v2208 = vld [vmem:[#allocation4 + $0x2d0] sm:$0xff]
    %v2209 = vld [vmem:[#allocation4 + $0x2d8] sm:$0xff]
    %v2210 = vld [vmem:[#allocation4 + $0x2e0] sm:$0xff]
    %v2211 = vld [vmem:[#allocation4 + $0x2e8] sm:$0xff]
    %v2212 = vld [vmem:[#allocation4 + $0x2f0] sm:$0xff]
    %v2213 = vld [vmem:[#allocation4 + $0x2f8] sm:$0xff]
    %v2214 = vld [vmem:[#allocation4 + $0x300] sm:$0xff]
    %v2215 = vld [vmem:[#allocation4 + $0x308] sm:$0xff]
    %v2216 = vld [vmem:[#allocation4 + $0x310] sm:$0xff]
    %v2217 = vld [vmem:[#allocation4 + $0x318] sm:$0xff]
    %v2218 = vld [vmem:[#allocation4 + $0x320] sm:$0xff]
    %v2219 = vld [vmem:[#allocation4 + $0x328] sm:$0xff]
    %v2220 = vld [vmem:[#allocation4 + $0x330] sm:$0xff]
    %v2221 = vld [vmem:[#allocation4 + $0x338] sm:$0xff]
    %v2222 = vld [vmem:[#allocation4 + $0x340] sm:$0xff]
    %v2223 = vld [vmem:[#allocation4 + $0x348] sm:$0xff]
    %v2224 = vld [vmem:[#allocation4 + $0x350] sm:$0xff]
    %v2225 = vld [vmem:[#allocation4 + $0x358] sm:$0xff]
    %v2226 = vld [vmem:[#allocation4 + $0x360] sm:$0xff]
    %v2227 = vld [vmem:[#allocation4 + $0x368] sm:$0xff]
    %v2228 = vld [vmem:[#allocation4 + $0x370] sm:$0xff]
    %v2229 = vld [vmem:[#allocation4 + $0x378] sm:$0xff]
    %v2230 = vld [vmem:[#allocation4 + $0x380] sm:$0xff]
    %v2231 = vld [vmem:[#allocation4 + $0x388] sm:$0xff]
    %v2232 = vld [vmem:[#allocation4 + $0x390] sm:$0xff]
    %v2233 = vld [vmem:[#allocation4 + $0x398] sm:$0xff]
    %v2234 = vld [vmem:[#allocation4 + $0x3a0] sm:$0xff]
    %v2235 = vld [vmem:[#allocation4 + $0x3a8] sm:$0xff]
    %v2236 = vld [vmem:[#allocation4 + $0x3b0] sm:$0xff]
    %v2237 = vld [vmem:[#allocation4 + $0x3b8] sm:$0xff]
    %v2238 = vld [vmem:[#allocation4 + $0x3c0] sm:$0xff]
    %v2239 = vld [vmem:[#allocation4 + $0x3c8] sm:$0xff]
    %v2240 = vld [vmem:[#allocation4 + $0x3d0] sm:$0xff]
    %v2241 = vld [vmem:[#allocation4 + $0x3d8] sm:$0xff]
    %v2242 = vld [vmem:[#allocation4 + $0x3e0] sm:$0xff]
    %v2243 = vld [vmem:[#allocation4 + $0x3e8] sm:$0xff]
    %v2244 = vld [vmem:[#allocation4 + $0x3f0] sm:$0xff]
    %v2245 = vld [vmem:[#allocation4 + $0x3f8] sm:$0xff]
    %v2246 = vld [vmem:[#allocation4 + $0x400] sm:$0xff]
    %v2247 = vld [vmem:[#allocation4 + $0x408] sm:$0xff]
    %v2248 = vld [vmem:[#allocation4 + $0x410] sm:$0xff]
    %v2249 = vld [vmem:[#allocation4 + $0x418] sm:$0xff]
    %v2250 = vld [vmem:[#allocation4 + $0x420] sm:$0xff]
    %v2251 = vld [vmem:[#allocation4 + $0x428] sm:$0xff]
    %v2252 = vld [vmem:[#allocation4 + $0x430] sm:$0xff]
    %v2253 = vld [vmem:[#allocation4 + $0x438] sm:$0xff]
    %v2254 = vld [vmem:[#allocation4 + $0x440] sm:$0xff]
    %v2255 = vld [vmem:[#allocation4 + $0x448] sm:$0xff]
    %v2256 = vld [vmem:[#allocation4 + $0x450] sm:$0xff]
    %v2257 = vld [vmem:[#allocation4 + $0x458] sm:$0xff]
    %v2258 = vld [vmem:[#allocation4 + $0x460] sm:$0xff]
    %v2259 = vld [vmem:[#allocation4 + $0x468] sm:$0xff]
    %v2260 = vld [vmem:[#allocation4 + $0x470] sm:$0xff]
    %v2261 = vld [vmem:[#allocation4 + $0x478] sm:$0xff]
    %v2262 = vld [vmem:[#allocation4 + $0x480] sm:$0xff]
    %v2263 = vld [vmem:[#allocation4 + $0x488] sm:$0xff]
    %v2264 = vld [vmem:[#allocation4 + $0x490] sm:$0xff]
    %v2265 = vld [vmem:[#allocation4 + $0x498] sm:$0xff]
    %v2266 = vld [vmem:[#allocation4 + $0x4a0] sm:$0xff]
    %v2267 = vld [vmem:[#allocation4 + $0x4a8] sm:$0xff]
    %v2268 = vld [vmem:[#allocation4 + $0x4b0] sm:$0xff]
    %v2269 = vld [vmem:[#allocation4 + $0x4b8] sm:$0xff]
    %v2270 = vld [vmem:[#allocation4 + $0x4c0] sm:$0xff]
    %v2271 = vld [vmem:[#allocation4 + $0x4c8] sm:$0xff]
    %v2272 = vld [vmem:[#allocation4 + $0x4d0] sm:$0xff]
    %v2273 = vld [vmem:[#allocation4 + $0x4d8] sm:$0xff]
    %v2274 = vld [vmem:[#allocation4 + $0x4e0] sm:$0xff]
    %v2275 = vld [vmem:[#allocation4 + $0x4e8] sm:$0xff]
    %v2276 = vld [vmem:[#allocation4 + $0x4f0] sm:$0xff]
    %v2277 = vld [vmem:[#allocation4 + $0x4f8] sm:$0xff]
    %v2278 = vld [vmem:[#allocation4 + $0x500] sm:$0xff]
    %v2279 = vld [vmem:[#allocation4 + $0x508] sm:$0xff]
    %v2280 = vld [vmem:[#allocation4 + $0x510] sm:$0xff]
    %v2281 = vld [vmem:[#allocation4 + $0x518] sm:$0xff]
    %v2282 = vld [vmem:[#allocation4 + $0x520] sm:$0xff]
    %v2283 = vld [vmem:[#allocation4 + $0x528] sm:$0xff]
    %v2284 = vld [vmem:[#allocation4 + $0x530] sm:$0xff]
    %v2285 = vld [vmem:[#allocation4 + $0x538] sm:$0xff]
    %v2286 = vld [vmem:[#allocation4 + $0x540] sm:$0xff]
    %v2287 = vld [vmem:[#allocation4 + $0x548] sm:$0xff]
    %v2288 = vld [vmem:[#allocation4 + $0x550] sm:$0xff]
    %v2289 = vld [vmem:[#allocation4 + $0x558] sm:$0xff]
    %v2290 = vld [vmem:[#allocation4 + $0x560] sm:$0xff]
    %v2291 = vld [vmem:[#allocation4 + $0x568] sm:$0xff]
    %v2292 = vld [vmem:[#allocation4 + $0x570] sm:$0xff]
    %v2293 = vld [vmem:[#allocation4 + $0x578] sm:$0xff]
    %v2294 = vld [vmem:[#allocation4 + $0x580] sm:$0xff]
    %v2295 = vld [vmem:[#allocation4 + $0x588] sm:$0xff]
    %v2296 = vld [vmem:[#allocation4 + $0x590] sm:$0xff]
    %v2297 = vld [vmem:[#allocation4 + $0x598] sm:$0xff]
    %v2298 = vld [vmem:[#allocation4 + $0x5a0] sm:$0xff]
    %v2299 = vld [vmem:[#allocation4 + $0x5a8] sm:$0xff]
    %v2300 = vld [vmem:[#allocation4 + $0x5b0] sm:$0xff]
    %v2301 = vld [vmem:[#allocation4 + $0x5b8] sm:$0xff]
    %v2302 = vld [vmem:[#allocation4 + $0x5c0] sm:$0xff]
    %v2303 = vld [vmem:[#allocation4 + $0x5c8] sm:$0xff]
    %v2304 = vld [vmem:[#allocation4 + $0x5d0] sm:$0xff]
    %v2305 = vld [vmem:[#allocation4 + $0x5d8] sm:$0xff]
    %v2306 = vld [vmem:[#allocation4 + $0x5e0] sm:$0xff]
    %v2307 = vld [vmem:[#allocation4 + $0x5e8] sm:$0xff]
    %v2308 = vld [vmem:[#allocation4 + $0x5f0] sm:$0xff]
    %v2309 = vld [vmem:[#allocation4 + $0x5f8] sm:$0xff]
    %v2310 = vld [vmem:[#allocation4 + $0x600] sm:$0xff]
    %v2311 = vld [vmem:[#allocation4 + $0x608] sm:$0xff]
    %v2312 = vld [vmem:[#allocation4 + $0x610] sm:$0xff]
    %v2313 = vld [vmem:[#allocation4 + $0x618] sm:$0xff]
    %v2314 = vld [vmem:[#allocation4 + $0x620] sm:$0xff]
    %v2315 = vld [vmem:[#allocation4 + $0x628] sm:$0xff]
    %v2316 = vld [vmem:[#allocation4 + $0x630] sm:$0xff]
    %v2317 = vld [vmem:[#allocation4 + $0x638] sm:$0xff]
    %v2318 = vld [vmem:[#allocation4 + $0x640] sm:$0xff]
    %v2319 = vld [vmem:[#allocation4 + $0x648] sm:$0xff]
    %v2320 = vld [vmem:[#allocation4 + $0x650] sm:$0xff]
    %v2321 = vld [vmem:[#allocation4 + $0x658] sm:$0xff]
    %v2322 = vld [vmem:[#allocation4 + $0x660] sm:$0xff]
    %v2323 = vld [vmem:[#allocation4 + $0x668] sm:$0xff]
    %v2324 = vld [vmem:[#allocation4 + $0x670] sm:$0xff]
    %v2325 = vld [vmem:[#allocation4 + $0x678] sm:$0xff]
    %v2326 = vld [vmem:[#allocation4 + $0x680] sm:$0xff]
    %v2327 = vld [vmem:[#allocation4 + $0x688] sm:$0xff]
    %v2328 = vld [vmem:[#allocation4 + $0x690] sm:$0xff]
    %v2329 = vld [vmem:[#allocation4 + $0x698] sm:$0xff]
    %v2330 = vld [vmem:[#allocation4 + $0x6a0] sm:$0xff]
    %v2331 = vld [vmem:[#allocation4 + $0x6a8] sm:$0xff]
    %v2332 = vld [vmem:[#allocation4 + $0x6b0] sm:$0xff]
    %v2333 = vld [vmem:[#allocation4 + $0x6b8] sm:$0xff]
    %v2334 = vld [vmem:[#allocation4 + $0x6c0] sm:$0xff]
    %v2335 = vld [vmem:[#allocation4 + $0x6c8] sm:$0xff]
    %v2336 = vld [vmem:[#allocation4 + $0x6d0] sm:$0xff]
    %v2337 = vld [vmem:[#allocation4 + $0x6d8] sm:$0xff]
    %v2338 = vld [vmem:[#allocation4 + $0x6e0] sm:$0xff]
    %v2339 = vld [vmem:[#allocation4 + $0x6e8] sm:$0xff]
    %v2340 = vld [vmem:[#allocation4 + $0x6f0] sm:$0xff]
    %v2341 = vld [vmem:[#allocation4 + $0x6f8] sm:$0xff]
    %v2342 = vld [vmem:[#allocation4 + $0x700] sm:$0xff]
    %v2343 = vld [vmem:[#allocation4 + $0x708] sm:$0xff]
    %v2344 = vld [vmem:[#allocation4 + $0x710] sm:$0xff]
    %v2345 = vld [vmem:[#allocation4 + $0x718] sm:$0xff]
    %v2346 = vld [vmem:[#allocation4 + $0x720] sm:$0xff]
    %v2347 = vld [vmem:[#allocation4 + $0x728] sm:$0xff]
    %v2348 = vld [vmem:[#allocation4 + $0x730] sm:$0xff]
    %v2349 = vld [vmem:[#allocation4 + $0x738] sm:$0xff]
    %v2350 = vld [vmem:[#allocation4 + $0x740] sm:$0xff]
    %v2351 = vld [vmem:[#allocation4 + $0x748] sm:$0xff]
    %v2352 = vld [vmem:[#allocation4 + $0x750] sm:$0xff]
    %v2353 = vld [vmem:[#allocation4 + $0x758] sm:$0xff]
    %v2354 = vld [vmem:[#allocation4 + $0x760] sm:$0xff]
    %v2355 = vld [vmem:[#allocation4 + $0x768] sm:$0xff]
    %v2356 = vld [vmem:[#allocation4 + $0x770] sm:$0xff]
    %v2357 = vld [vmem:[#allocation4 + $0x778] sm:$0xff]
    %v2358 = vld [vmem:[#allocation4 + $0x780] sm:$0xff]
    %v2359 = vld [vmem:[#allocation4 + $0x788] sm:$0xff]
    %v2360 = vld [vmem:[#allocation4 + $0x790] sm:$0xff]
    %v2361 = vld [vmem:[#allocation4 + $0x798] sm:$0xff]
    %v2362 = vld [vmem:[#allocation4 + $0x7a0] sm:$0xff]
    %v2363 = vld [vmem:[#allocation4 + $0x7a8] sm:$0xff]
    %v2364 = vld [vmem:[#allocation4 + $0x7b0] sm:$0xff]
    %v2365 = vld [vmem:[#allocation4 + $0x7b8] sm:$0xff]
    %v2366 = vld [vmem:[#allocation4 + $0x7c0] sm:$0xff]
    %v2367 = vld [vmem:[#allocation4 + $0x7c8] sm:$0xff]
    %v2368 = vld [vmem:[#allocation4 + $0x7d0] sm:$0xff]
    %v2369 = vld [vmem:[#allocation4 + $0x7d8] sm:$0xff]
    %v2370 = vld [vmem:[#allocation4 + $0x7e0] sm:$0xff]
    %v2371 = vld [vmem:[#allocation4 + $0x7e8] sm:$0xff]
    %v2372 = vld [vmem:[#allocation4 + $0x7f0] sm:$0xff]
    %v2373 = vld [vmem:[#allocation4 + $0x7f8] sm:$0xff]
    %v2374 = vld [vmem:[#allocation4 + $0x800] sm:$0xff]
    %v2375 = vld [vmem:[#allocation4 + $0x808] sm:$0xff]
    %v2376 = vld [vmem:[#allocation4 + $0x810] sm:$0xff]
    %v2377 = vld [vmem:[#allocation4 + $0x818] sm:$0xff]
    %v2378 = vld [vmem:[#allocation4 + $0x820] sm:$0xff]
    %v2379 = vld [vmem:[#allocation4 + $0x828] sm:$0xff]
    %v2380 = vld [vmem:[#allocation4 + $0x830] sm:$0xff]
    %v2381 = vld [vmem:[#allocation4 + $0x838] sm:$0xff]
    %v2382 = vld [vmem:[#allocation4 + $0x840] sm:$0xff]
    %v2383 = vld [vmem:[#allocation4 + $0x848] sm:$0xff]
    %v2384 = vld [vmem:[#allocation4 + $0x850] sm:$0xff]
    %v2385 = vld [vmem:[#allocation4 + $0x858] sm:$0xff]
    %v2386 = vld [vmem:[#allocation4 + $0x860] sm:$0xff]
    %v2387 = vld [vmem:[#allocation4 + $0x868] sm:$0xff]
    %v2388 = vld [vmem:[#allocation4 + $0x870] sm:$0xff]
    %v2389 = vld [vmem:[#allocation4 + $0x878] sm:$0xff]
    %v2390 = vld [vmem:[#allocation4 + $0x880] sm:$0xff]
    %v2391 = vld [vmem:[#allocation4 + $0x888] sm:$0xff]
    %v2392 = vld [vmem:[#allocation4 + $0x890] sm:$0xff]
    %v2393 = vld [vmem:[#allocation4 + $0x898] sm:$0xff]
    %v2394 = vld [vmem:[#allocation4 + $0x8a0] sm:$0xff]
    %v2395 = vld [vmem:[#allocation4 + $0x8a8] sm:$0xff]
    %v2396 = vld [vmem:[#allocation4 + $0x8b0] sm:$0xff]
    %v2397 = vld [vmem:[#allocation4 + $0x8b8] sm:$0xff]
    %v2398 = vld [vmem:[#allocation4 + $0x8c0] sm:$0xff]
    %v2399 = vld [vmem:[#allocation4 + $0x8c8] sm:$0xff]
    %v2400 = vld [vmem:[#allocation4 + $0x8d0] sm:$0xff]
    %v2401 = vld [vmem:[#allocation4 + $0x8d8] sm:$0xff]
    %v2402 = vld [vmem:[#allocation4 + $0x8e0] sm:$0xff]
    %v2403 = vld [vmem:[#allocation4 + $0x8e8] sm:$0xff]
    %v2404 = vld [vmem:[#allocation4 + $0x8f0] sm:$0xff]
    %v2405 = vld [vmem:[#allocation4 + $0x8f8] sm:$0xff]
    %v2406 = vld [vmem:[#allocation4 + $0x900] sm:$0xff]
    %v2407 = vld [vmem:[#allocation4 + $0x908] sm:$0xff]
    %v2408 = vld [vmem:[#allocation4 + $0x910] sm:$0xff]
    %v2409 = vld [vmem:[#allocation4 + $0x918] sm:$0xff]
    %v2410 = vld [vmem:[#allocation4 + $0x920] sm:$0xff]
    %v2411 = vld [vmem:[#allocation4 + $0x928] sm:$0xff]
    %v2412 = vld [vmem:[#allocation4 + $0x930] sm:$0xff]
    %v2413 = vld [vmem:[#allocation4 + $0x938] sm:$0xff]
    %v2414 = vld [vmem:[#allocation4 + $0x940] sm:$0xff]
    %v2415 = vld [vmem:[#allocation4 + $0x948] sm:$0xff]
    %v2416 = vld [vmem:[#allocation4 + $0x950] sm:$0xff]
    %v2417 = vld [vmem:[#allocation4 + $0x958] sm:$0xff]
    %v2418 = vld [vmem:[#allocation4 + $0x960] sm:$0xff]
    %v2419 = vld [vmem:[#allocation4 + $0x968] sm:$0xff]
    %v2420 = vld [vmem:[#allocation4 + $0x970] sm:$0xff]
    %v2421 = vld [vmem:[#allocation4 + $0x978] sm:$0xff]
    %v2422 = vld [vmem:[#allocation4 + $0x980] sm:$0xff]
    %v2423 = vld [vmem:[#allocation4 + $0x988] sm:$0xff]
    %v2424 = vld [vmem:[#allocation4 + $0x990] sm:$0xff]
    %v2425 = vld [vmem:[#allocation4 + $0x998] sm:$0xff]
    %v2426 = vld [vmem:[#allocation4 + $0x9a0] sm:$0xff]
    %v2427 = vld [vmem:[#allocation4 + $0x9a8] sm:$0xff]
    %v2428 = vld [vmem:[#allocation4 + $0x9b0] sm:$0xff]
    %v2429 = vld [vmem:[#allocation4 + $0x9b8] sm:$0xff]
    %v2430 = vld [vmem:[#allocation4 + $0x9c0] sm:$0xff]
    %v2431 = vld [vmem:[#allocation4 + $0x9c8] sm:$0xff]
    %v2432 = vld [vmem:[#allocation4 + $0x9d0] sm:$0xff]
    %v2433 = vld [vmem:[#allocation4 + $0x9d8] sm:$0xff]
    %v2434 = vld [vmem:[#allocation4 + $0x9e0] sm:$0xff]
    %v2435 = vld [vmem:[#allocation4 + $0x9e8] sm:$0xff]
    %v2436 = vld [vmem:[#allocation4 + $0x9f0] sm:$0xff]
    %v2437 = vld [vmem:[#allocation4 + $0x9f8] sm:$0xff]
    %v2438 = vld [vmem:[#allocation4 + $0xa00] sm:$0xff]
    %v2439 = vld [vmem:[#allocation4 + $0xa08] sm:$0xff]
    %v2440 = vld [vmem:[#allocation4 + $0xa10] sm:$0xff]
    %v2441 = vld [vmem:[#allocation4 + $0xa18] sm:$0xff]
    %v2442 = vld [vmem:[#allocation4 + $0xa20] sm:$0xff]
    %v2443 = vld [vmem:[#allocation4 + $0xa28] sm:$0xff]
    %v2444 = vld [vmem:[#allocation4 + $0xa30] sm:$0xff]
    %v2445 = vld [vmem:[#allocation4 + $0xa38] sm:$0xff]
    %v2446 = vld [vmem:[#allocation4 + $0xa40] sm:$0xff]
    %v2447 = vld [vmem:[#allocation4 + $0xa48] sm:$0xff]
    %v2448 = vld [vmem:[#allocation4 + $0xa50] sm:$0xff]
    %v2449 = vld [vmem:[#allocation4 + $0xa58] sm:$0xff]
    %v2450 = vld [vmem:[#allocation4 + $0xa60] sm:$0xff]
    %v2451 = vld [vmem:[#allocation4 + $0xa68] sm:$0xff]
    %v2452 = vld [vmem:[#allocation4 + $0xa70] sm:$0xff]
    %v2453 = vld [vmem:[#allocation4 + $0xa78] sm:$0xff]
    %v2454 = vld [vmem:[#allocation4 + $0xa80] sm:$0xff]
    %v2455 = vld [vmem:[#allocation4 + $0xa88] sm:$0xff]
    %v2456 = vld [vmem:[#allocation4 + $0xa90] sm:$0xff]
    %v2457 = vld [vmem:[#allocation4 + $0xa98] sm:$0xff]
    %v2458 = vld [vmem:[#allocation4 + $0xaa0] sm:$0xff]
    %v2459 = vld [vmem:[#allocation4 + $0xaa8] sm:$0xff]
    %v2460 = vld [vmem:[#allocation4 + $0xab0] sm:$0xff]
    %v2461 = vld [vmem:[#allocation4 + $0xab8] sm:$0xff]
    %v2462 = vld [vmem:[#allocation4 + $0xac0] sm:$0xff]
    %v2463 = vld [vmem:[#allocation4 + $0xac8] sm:$0xff]
    %v2464 = vld [vmem:[#allocation4 + $0xad0] sm:$0xff]
    %v2465 = vld [vmem:[#allocation4 + $0xad8] sm:$0xff]
    %v2466 = vld [vmem:[#allocation4 + $0xae0] sm:$0xff]
    %v2467 = vld [vmem:[#allocation4 + $0xae8] sm:$0xff]
    %v2468 = vld [vmem:[#allocation4 + $0xaf0] sm:$0xff]
    %v2469 = vld [vmem:[#allocation4 + $0xaf8] sm:$0xff]
    %v2470 = vld [vmem:[#allocation4 + $0xb00] sm:$0xff]
    %v2471 = vld [vmem:[#allocation4 + $0xb08] sm:$0xff]
    %v2472 = vld [vmem:[#allocation4 + $0xb10] sm:$0xff]
    %v2473 = vld [vmem:[#allocation4 + $0xb18] sm:$0xff]
    %v2474 = vld [vmem:[#allocation4 + $0xb20] sm:$0xff]
    %v2475 = vld [vmem:[#allocation4 + $0xb28] sm:$0xff]
    %v2476 = vld [vmem:[#allocation4 + $0xb30] sm:$0xff]
    %v2477 = vld [vmem:[#allocation4 + $0xb38] sm:$0xff]
    %v2478 = vld [vmem:[#allocation4 + $0xb40] sm:$0xff]
    %v2479 = vld [vmem:[#allocation4 + $0xb48] sm:$0xff]
    %v2480 = vld [vmem:[#allocation4 + $0xb50] sm:$0xff]
    %v2481 = vld [vmem:[#allocation4 + $0xb58] sm:$0xff]
    %v2482 = vld [vmem:[#allocation4 + $0xb60] sm:$0xff]
    %v2483 = vld [vmem:[#allocation4 + $0xb68] sm:$0xff]
    %v2484 = vld [vmem:[#allocation4 + $0xb70] sm:$0xff]
    %v2485 = vld [vmem:[#allocation4 + $0xb78] sm:$0xff]
    %v2486 = vld [vmem:[#allocation4 + $0xb80] sm:$0xff]
    %v2487 = vld [vmem:[#allocation4 + $0xb88] sm:$0xff]
    %v2488 = vld [vmem:[#allocation4 + $0xb90] sm:$0xff]
    %v2489 = vld [vmem:[#allocation4 + $0xb98] sm:$0xff]
    %v2490 = vld [vmem:[#allocation4 + $0xba0] sm:$0xff]
    %v2491 = vld [vmem:[#allocation4 + $0xba8] sm:$0xff]
    %v2492 = vld [vmem:[#allocation4 + $0xbb0] sm:$0xff]
    %v2493 = vld [vmem:[#allocation4 + $0xbb8] sm:$0xff]
    %v2494 = vld [vmem:[#allocation4 + $0xbc0] sm:$0xff]
    %v2495 = vld [vmem:[#allocation4 + $0xbc8] sm:$0xff]
    %v2496 = vld [vmem:[#allocation4 + $0xbd0] sm:$0xff]
    %v2497 = vld [vmem:[#allocation4 + $0xbd8] sm:$0xff]
    %v2498 = vld [vmem:[#allocation4 + $0xbe0] sm:$0xff]
    %v2499 = vld [vmem:[#allocation4 + $0xbe8] sm:$0xff]
    %v2500 = vld [vmem:[#allocation4 + $0xbf0] sm:$0xff]
    %v2501 = vld [vmem:[#allocation4 + $0xbf8] sm:$0xff]
    %2502 = vmatprep.subr.mxu0 0.0
    %2503 = vmatpush1.msra.mxu0 %v2133
    %2504 = vmatprep.subr.mxu0 0.0
    %2505 = vmatpush1.msra.mxu0 %v2132
    %2506 = vmatprep.subr.mxu0 0.0
    %2507 = vmatpush1.msra.mxu0 %v2131
    %2508 = vmatprep.subr.mxu0 0.0
    %2509 = vmatpush1.msra.mxu0 %v2130
    %2510 = vmatprep.subr.mxu0 0.0
    %2511 = vmatpush1.msra.mxu0 %v2129
    %2512 = vmatprep.subr.mxu0 0.0
    %2513 = vmatpush1.msra.mxu0 %v2128
    %2514 = vmatprep.subr.mxu0 0.0
    %2515 = vmatpush1.msra.mxu0 %v2127
    %2516 = vmatprep.subr.mxu0 0.0
    %2517 = vmatpush1.msra.mxu0 %v2126
    %2518 = vmatprep.subr.mxu0 0.0
    %2519 = vmatpush1.msra.mxu0 %v2125
    %2520 = vmatprep.subr.mxu0 0.0
    %2521 = vmatpush1.msra.mxu0 %v2124
    %2522 = vmatprep.subr.mxu0 0.0
    %2523 = vmatpush1.msra.mxu0 %v2123
    %2524 = vmatprep.subr.mxu0 0.0
    %2525 = vmatpush1.msra.mxu0 %v2122
    %2526 = vmatprep.subr.mxu0 0.0
    %2527 = vmatpush1.msra.mxu0 %v2121
    %2528 = vmatprep.subr.mxu0 0.0
    %2529 = vmatpush1.msra.mxu0 %v2120
    %2530 = vmatprep.subr.mxu0 0.0
    %2531 = vmatpush1.msra.mxu0 %v2119
    %2532 = vmatprep.subr.mxu0 0.0
    %2533 = vmatpush1.msra.mxu0 %v2118
    %2534 = vmatprep.subr.mxu0 0.0
    %2535 = vmatpush2.msra.mxu0 %v2149
    %2536 = vmatprep.subr.mxu0 0.0
    %2537 = vmatpush2.msra.mxu0 %v2148
    %2538 = vmatprep.subr.mxu0 0.0
    %2539 = vmatpush2.msra.mxu0 %v2147
    %2540 = vmatprep.subr.mxu0 0.0
    %2541 = vmatpush2.msra.mxu0 %v2146
    %2542 = vmatprep.subr.mxu0 0.0
    %2543 = vmatpush2.msra.mxu0 %v2145
    %2544 = vmatprep.subr.mxu0 0.0
    %2545 = vmatpush2.msra.mxu0 %v2144
    %2546 = vmatprep.subr.mxu0 0.0
    %2547 = vmatpush2.msra.mxu0 %v2143
    %2548 = vmatprep.subr.mxu0 0.0
    %2549 = vmatpush2.msra.mxu0 %v2142
    %2550 = vmatprep.subr.mxu0 0.0
    %2551 = vmatpush2.msra.mxu0 %v2141
    %2552 = vmatprep.subr.mxu0 0.0
    %2553 = vmatpush2.msra.mxu0 %v2140
    %2554 = vmatprep.subr.mxu0 0.0
    %2555 = vmatpush2.msra.mxu0 %v2139
    %2556 = vmatprep.subr.mxu0 0.0
    %2557 = vmatpush2.msra.mxu0 %v2138
    %2558 = vmatprep.subr.mxu0 0.0
    %2559 = vmatpush2.msra.mxu0 %v2137
    %2560 = vmatprep.subr.mxu0 0.0
    %2561 = vmatpush2.msra.mxu0 %v2136
    %2562 = vmatprep.subr.mxu0 0.0
    %2563 = vmatpush2.msra.mxu0 %v2135
    %2564 = vmatprep.subr.mxu0 0.0
    %2565 = vmatpush2.msra.mxu0 %v2134
    %2566 = vmatprep.mubr.f32.mxu0 %v2095
    %2567 = vmatmul.mubr.f32.gmra.mxu0 %v2094
    %v2568 = vpop.f32.mrf.mxu0
    %v2569 = vadd.f32 0.0, %v2568
    %v2570 = vpop.f32.mrf.mxu0
    %2571 = vdwg.mxu0
    %2572 = vmatprep.subr.mxu0 0.0
    %2573 = vmatpush1.msra.mxu0 %v2165
    %2574 = vmatprep.subr.mxu0 0.0
    %2575 = vmatpush1.msra.mxu0 %v2164
    %2576 = vmatprep.subr.mxu0 0.0
    %2577 = vmatpush1.msra.mxu0 %v2163
    %2578 = vmatprep.subr.mxu0 0.0
    %2579 = vmatpush1.msra.mxu0 %v2162
    %2580 = vmatprep.subr.mxu0 0.0
    %2581 = vmatpush1.msra.mxu0 %v2161
    %2582 = vmatprep.subr.mxu0 0.0
    %2583 = vmatpush1.msra.mxu0 %v2160
    %2584 = vmatprep.subr.mxu0 0.0
    %2585 = vmatpush1.msra.mxu0 %v2159
    %2586 = vmatprep.subr.mxu0 0.0
    %2587 = vmatpush1.msra.mxu0 %v2158
    %2588 = vmatprep.subr.mxu0 0.0
    %2589 = vmatpush1.msra.mxu0 %v2157
    %2590 = vmatprep.subr.mxu0 0.0
    %2591 = vmatpush1.msra.mxu0 %v2156
    %2592 = vmatprep.subr.mxu0 0.0
    %2593 = vmatpush1.msra.mxu0 %v2155
    %2594 = vmatprep.subr.mxu0 0.0
    %2595 = vmatpush1.msra.mxu0 %v2154
    %2596 = vmatprep.subr.mxu0 0.0
    %2597 = vmatpush1.msra.mxu0 %v2153
    %2598 = vmatprep.subr.mxu0 0.0
    %2599 = vmatpush1.msra.mxu0 %v2152
    %2600 = vmatprep.subr.mxu0 0.0
    %2601 = vmatpush1.msra.mxu0 %v2151
    %2602 = vmatprep.subr.mxu0 0.0
    %2603 = vmatpush1.msra.mxu0 %v2150
    %2604 = vmatprep.subr.mxu0 0.0
    %2605 = vmatpush2.msra.mxu0 %v2181
    %2606 = vmatprep.subr.mxu0 0.0
    %2607 = vmatpush2.msra.mxu0 %v2180
    %2608 = vmatprep.subr.mxu0 0.0
    %2609 = vmatpush2.msra.mxu0 %v2179
    %2610 = vmatprep.subr.mxu0 0.0
    %2611 = vmatpush2.msra.mxu0 %v2178
    %2612 = vmatprep.subr.mxu0 0.0
    %2613 = vmatpush2.msra.mxu0 %v2177
    %2614 = vmatprep.subr.mxu0 0.0
    %2615 = vmatpush2.msra.mxu0 %v2176
    %2616 = vmatprep.subr.mxu0 0.0
    %2617 = vmatpush2.msra.mxu0 %v2175
    %2618 = vmatprep.subr.mxu0 0.0
    %2619 = vmatpush2.msra.mxu0 %v2174
    %2620 = vmatprep.subr.mxu0 0.0
    %2621 = vmatpush2.msra.mxu0 %v2173
    %2622 = vmatprep.subr.mxu0 0.0
    %2623 = vmatpush2.msra.mxu0 %v2172
    %2624 = vmatprep.subr.mxu0 0.0
    %2625 = vmatpush2.msra.mxu0 %v2171
    %2626 = vmatprep.subr.mxu0 0.0
    %2627 = vmatpush2.msra.mxu0 %v2170
    %2628 = vmatprep.subr.mxu0 0.0
    %2629 = vmatpush2.msra.mxu0 %v2169
    %2630 = vmatprep.subr.mxu0 0.0
    %2631 = vmatpush2.msra.mxu0 %v2168
    %2632 = vmatprep.subr.mxu0 0.0
    %2633 = vmatpush2.msra.mxu0 %v2167
    %2634 = vmatprep.subr.mxu0 0.0
    %2635 = vmatpush2.msra.mxu0 %v2166
    %2636 = vmatprep.mubr.f32.mxu0 %v2097
    %2637 = vmatmul.mubr.f32.gmra.mxu0 %v2096
    %v2638 = vpop.f32.mrf.mxu0
    %v2639 = vadd.f32 %v2569, %v2638
    %v2640 = vpop.f32.mrf.mxu0
    %2641 = vdwg.mxu0
    %2642 = vmatprep.subr.mxu0 0.0
    %2643 = vmatpush1.msra.mxu0 %v2197
    %2644 = vmatprep.subr.mxu0 0.0
    %2645 = vmatpush1.msra.mxu0 %v2196
    %2646 = vmatprep.subr.mxu0 0.0
    %2647 = vmatpush1.msra.mxu0 %v2195
    %2648 = vmatprep.subr.mxu0 0.0
    %2649 = vmatpush1.msra.mxu0 %v2194
    %2650 = vmatprep.subr.mxu0 0.0
    %2651 = vmatpush1.msra.mxu0 %v2193
    %2652 = vmatprep.subr.mxu0 0.0
    %2653 = vmatpush1.msra.mxu0 %v2192
    %2654 = vmatprep.subr.mxu0 0.0
    %2655 = vmatpush1.msra.mxu0 %v2191
    %2656 = vmatprep.subr.mxu0 0.0
    %2657 = vmatpush1.msra.mxu0 %v2190
    %2658 = vmatprep.subr.mxu0 0.0
    %2659 = vmatpush1.msra.mxu0 %v2189
    %2660 = vmatprep.subr.mxu0 0.0
    %2661 = vmatpush1.msra.mxu0 %v2188
    %2662 = vmatprep.subr.mxu0 0.0
    %2663 = vmatpush1.msra.mxu0 %v2187
    %2664 = vmatprep.subr.mxu0 0.0
    %2665 = vmatpush1.msra.mxu0 %v2186
    %2666 = vmatprep.subr.mxu0 0.0
    %2667 = vmatpush1.msra.mxu0 %v2185
    %2668 = vmatprep.subr.mxu0 0.0
    %2669 = vmatpush1.msra.mxu0 %v2184
    %2670 = vmatprep.subr.mxu0 0.0
    %2671 = vmatpush1.msra.mxu0 %v2183
    %2672 = vmatprep.subr.mxu0 0.0
    %2673 = vmatpush1.msra.mxu0 %v2182
    %2674 = vmatprep.subr.mxu0 0.0
    %2675 = vmatpush2.msra.mxu0 %v2213
    %2676 = vmatprep.subr.mxu0 0.0
    %2677 = vmatpush2.msra.mxu0 %v2212
    %2678 = vmatprep.subr.mxu0 0.0
    %2679 = vmatpush2.msra.mxu0 %v2211
    %2680 = vmatprep.subr.mxu0 0.0
    %2681 = vmatpush2.msra.mxu0 %v2210
    %2682 = vmatprep.subr.mxu0 0.0
    %2683 = vmatpush2.msra.mxu0 %v2209
    %2684 = vmatprep.subr.mxu0 0.0
    %2685 = vmatpush2.msra.mxu0 %v2208
    %2686 = vmatprep.subr.mxu0 0.0
    %2687 = vmatpush2.msra.mxu0 %v2207
    %2688 = vmatprep.subr.mxu0 0.0
    %2689 = vmatpush2.msra.mxu0 %v2206
    %2690 = vmatprep.subr.mxu0 0.0
    %2691 = vmatpush2.msra.mxu0 %v2205
    %2692 = vmatprep.subr.mxu0 0.0
    %2693 = vmatpush2.msra.mxu0 %v2204
    %2694 = vmatprep.subr.mxu0 0.0
    %2695 = vmatpush2.msra.mxu0 %v2203
    %2696 = vmatprep.subr.mxu0 0.0
    %2697 = vmatpush2.msra.mxu0 %v2202
    %2698 = vmatprep.subr.mxu0 0.0
    %2699 = vmatpush2.msra.mxu0 %v2201
    %2700 = vmatprep.subr.mxu0 0.0
    %2701 = vmatpush2.msra.mxu0 %v2200
    %2702 = vmatprep.subr.mxu0 0.0
    %2703 = vmatpush2.msra.mxu0 %v2199
    %2704 = vmatprep.subr.mxu0 0.0
    %2705 = vmatpush2.msra.mxu0 %v2198
    %2706 = vmatprep.mubr.f32.mxu0 %v2099
    %2707 = vmatmul.mubr.f32.gmra.mxu0 %v2098
    %v2708 = vpop.f32.mrf.mxu0
    %v2709 = vadd.f32 %v2639, %v2708
    %v2710 = vpop.f32.mrf.mxu0
    %2711 = vdwg.mxu0
    %2712 = vmatprep.subr.mxu0 0.0
    %2713 = vmatpush1.msra.mxu0 %v2229
    %2714 = vmatprep.subr.mxu0 0.0
    %2715 = vmatpush1.msra.mxu0 %v2228
    %2716 = vmatprep.subr.mxu0 0.0
    %2717 = vmatpush1.msra.mxu0 %v2227
    %2718 = vmatprep.subr.mxu0 0.0
    %2719 = vmatpush1.msra.mxu0 %v2226
    %2720 = vmatprep.subr.mxu0 0.0
    %2721 = vmatpush1.msra.mxu0 %v2225
    %2722 = vmatprep.subr.mxu0 0.0
    %2723 = vmatpush1.msra.mxu0 %v2224
    %2724 = vmatprep.subr.mxu0 0.0
    %2725 = vmatpush1.msra.mxu0 %v2223
    %2726 = vmatprep.subr.mxu0 0.0
    %2727 = vmatpush1.msra.mxu0 %v2222
    %2728 = vmatprep.subr.mxu0 0.0
    %2729 = vmatpush1.msra.mxu0 %v2221
    %2730 = vmatprep.subr.mxu0 0.0
    %2731 = vmatpush1.msra.mxu0 %v2220
    %2732 = vmatprep.subr.mxu0 0.0
    %2733 = vmatpush1.msra.mxu0 %v2219
    %2734 = vmatprep.subr.mxu0 0.0
    %2735 = vmatpush1.msra.mxu0 %v2218
    %2736 = vmatprep.subr.mxu0 0.0
    %2737 = vmatpush1.msra.mxu0 %v2217
    %2738 = vmatprep.subr.mxu0 0.0
    %2739 = vmatpush1.msra.mxu0 %v2216
    %2740 = vmatprep.subr.mxu0 0.0
    %2741 = vmatpush1.msra.mxu0 %v2215
    %2742 = vmatprep.subr.mxu0 0.0
    %2743 = vmatpush1.msra.mxu0 %v2214
    %2744 = vmatprep.subr.mxu0 0.0
    %2745 = vmatpush2.msra.mxu0 %v2245
    %2746 = vmatprep.subr.mxu0 0.0
    %2747 = vmatpush2.msra.mxu0 %v2244
    %2748 = vmatprep.subr.mxu0 0.0
    %2749 = vmatpush2.msra.mxu0 %v2243
    %2750 = vmatprep.subr.mxu0 0.0
    %2751 = vmatpush2.msra.mxu0 %v2242
    %2752 = vmatprep.subr.mxu0 0.0
    %2753 = vmatpush2.msra.mxu0 %v2241
    %2754 = vmatprep.subr.mxu0 0.0
    %2755 = vmatpush2.msra.mxu0 %v2240
    %2756 = vmatprep.subr.mxu0 0.0
    %2757 = vmatpush2.msra.mxu0 %v2239
    %2758 = vmatprep.subr.mxu0 0.0
    %2759 = vmatpush2.msra.mxu0 %v2238
    %2760 = vmatprep.subr.mxu0 0.0
    %2761 = vmatpush2.msra.mxu0 %v2237
    %2762 = vmatprep.subr.mxu0 0.0
    %2763 = vmatpush2.msra.mxu0 %v2236
    %2764 = vmatprep.subr.mxu0 0.0
    %2765 = vmatpush2.msra.mxu0 %v2235
    %2766 = vmatprep.subr.mxu0 0.0
    %2767 = vmatpush2.msra.mxu0 %v2234
    %2768 = vmatprep.subr.mxu0 0.0
    %2769 = vmatpush2.msra.mxu0 %v2233
    %2770 = vmatprep.subr.mxu0 0.0
    %2771 = vmatpush2.msra.mxu0 %v2232
    %2772 = vmatprep.subr.mxu0 0.0
    %2773 = vmatpush2.msra.mxu0 %v2231
    %2774 = vmatprep.subr.mxu0 0.0
    %2775 = vmatpush2.msra.mxu0 %v2230
    %2776 = vmatprep.mubr.f32.mxu0 %v2101
    %2777 = vmatmul.mubr.f32.gmra.mxu0 %v2100
    %v2778 = vpop.f32.mrf.mxu0
    %v2779 = vadd.f32 %v2709, %v2778
    %v2780 = vpop.f32.mrf.mxu0
    %2781 = vdwg.mxu0
    %2782 = vmatprep.subr.mxu0 0.0
    %2783 = vmatpush1.msra.mxu0 %v2261
    %2784 = vmatprep.subr.mxu0 0.0
    %2785 = vmatpush1.msra.mxu0 %v2260
    %2786 = vmatprep.subr.mxu0 0.0
    %2787 = vmatpush1.msra.mxu0 %v2259
    %2788 = vmatprep.subr.mxu0 0.0
    %2789 = vmatpush1.msra.mxu0 %v2258
    %2790 = vmatprep.subr.mxu0 0.0
    %2791 = vmatpush1.msra.mxu0 %v2257
    %2792 = vmatprep.subr.mxu0 0.0
    %2793 = vmatpush1.msra.mxu0 %v2256
    %2794 = vmatprep.subr.mxu0 0.0
    %2795 = vmatpush1.msra.mxu0 %v2255
    %2796 = vmatprep.subr.mxu0 0.0
    %2797 = vmatpush1.msra.mxu0 %v2254
    %2798 = vmatprep.subr.mxu0 0.0
    %2799 = vmatpush1.msra.mxu0 %v2253
    %2800 = vmatprep.subr.mxu0 0.0
    %2801 = vmatpush1.msra.mxu0 %v2252
    %2802 = vmatprep.subr.mxu0 0.0
    %2803 = vmatpush1.msra.mxu0 %v2251
    %2804 = vmatprep.subr.mxu0 0.0
    %2805 = vmatpush1.msra.mxu0 %v2250
    %2806 = vmatprep.subr.mxu0 0.0
    %2807 = vmatpush1.msra.mxu0 %v2249
    %2808 = vmatprep.subr.mxu0 0.0
    %2809 = vmatpush1.msra.mxu0 %v2248
    %2810 = vmatprep.subr.mxu0 0.0
    %2811 = vmatpush1.msra.mxu0 %v2247
    %2812 = vmatprep.subr.mxu0 0.0
    %2813 = vmatpush1.msra.mxu0 %v2246
    %2814 = vmatprep.subr.mxu0 0.0
    %2815 = vmatpush2.msra.mxu0 %v2277
    %2816 = vmatprep.subr.mxu0 0.0
    %2817 = vmatpush2.msra.mxu0 %v2276
    %2818 = vmatprep.subr.mxu0 0.0
    %2819 = vmatpush2.msra.mxu0 %v2275
    %2820 = vmatprep.subr.mxu0 0.0
    %2821 = vmatpush2.msra.mxu0 %v2274
    %2822 = vmatprep.subr.mxu0 0.0
    %2823 = vmatpush2.msra.mxu0 %v2273
    %2824 = vmatprep.subr.mxu0 0.0
    %2825 = vmatpush2.msra.mxu0 %v2272
    %2826 = vmatprep.subr.mxu0 0.0
    %2827 = vmatpush2.msra.mxu0 %v2271
    %2828 = vmatprep.subr.mxu0 0.0
    %2829 = vmatpush2.msra.mxu0 %v2270
    %2830 = vmatprep.subr.mxu0 0.0
    %2831 = vmatpush2.msra.mxu0 %v2269
    %2832 = vmatprep.subr.mxu0 0.0
    %2833 = vmatpush2.msra.mxu0 %v2268
    %2834 = vmatprep.subr.mxu0 0.0
    %2835 = vmatpush2.msra.mxu0 %v2267
    %2836 = vmatprep.subr.mxu0 0.0
    %2837 = vmatpush2.msra.mxu0 %v2266
    %2838 = vmatprep.subr.mxu0 0.0
    %2839 = vmatpush2.msra.mxu0 %v2265
    %2840 = vmatprep.subr.mxu0 0.0
    %2841 = vmatpush2.msra.mxu0 %v2264
    %2842 = vmatprep.subr.mxu0 0.0
    %2843 = vmatpush2.msra.mxu0 %v2263
    %2844 = vmatprep.subr.mxu0 0.0
    %2845 = vmatpush2.msra.mxu0 %v2262
    %2846 = vmatprep.mubr.f32.mxu0 %v2103
    %2847 = vmatmul.mubr.f32.gmra.mxu0 %v2102
    %v2848 = vpop.f32.mrf.mxu0
    %v2849 = vadd.f32 %v2779, %v2848
    %v2850 = vpop.f32.mrf.mxu0
    %2851 = vdwg.mxu0
    %2852 = vmatprep.subr.mxu0 0.0
    %2853 = vmatpush1.msra.mxu0 %v2293
    %2854 = vmatprep.subr.mxu0 0.0
    %2855 = vmatpush1.msra.mxu0 %v2292
    %2856 = vmatprep.subr.mxu0 0.0
    %2857 = vmatpush1.msra.mxu0 %v2291
    %2858 = vmatprep.subr.mxu0 0.0
    %2859 = vmatpush1.msra.mxu0 %v2290
    %2860 = vmatprep.subr.mxu0 0.0
    %2861 = vmatpush1.msra.mxu0 %v2289
    %2862 = vmatprep.subr.mxu0 0.0
    %2863 = vmatpush1.msra.mxu0 %v2288
    %2864 = vmatprep.subr.mxu0 0.0
    %2865 = vmatpush1.msra.mxu0 %v2287
    %2866 = vmatprep.subr.mxu0 0.0
    %2867 = vmatpush1.msra.mxu0 %v2286
    %2868 = vmatprep.subr.mxu0 0.0
    %2869 = vmatpush1.msra.mxu0 %v2285
    %2870 = vmatprep.subr.mxu0 0.0
    %2871 = vmatpush1.msra.mxu0 %v2284
    %2872 = vmatprep.subr.mxu0 0.0
    %2873 = vmatpush1.msra.mxu0 %v2283
    %2874 = vmatprep.subr.mxu0 0.0
    %2875 = vmatpush1.msra.mxu0 %v2282
    %2876 = vmatprep.subr.mxu0 0.0
    %2877 = vmatpush1.msra.mxu0 %v2281
    %2878 = vmatprep.subr.mxu0 0.0
    %2879 = vmatpush1.msra.mxu0 %v2280
    %2880 = vmatprep.subr.mxu0 0.0
    %2881 = vmatpush1.msra.mxu0 %v2279
    %2882 = vmatprep.subr.mxu0 0.0
    %2883 = vmatpush1.msra.mxu0 %v2278
    %2884 = vmatprep.subr.mxu0 0.0
    %2885 = vmatpush2.msra.mxu0 %v2309
    %2886 = vmatprep.subr.mxu0 0.0
    %2887 = vmatpush2.msra.mxu0 %v2308
    %2888 = vmatprep.subr.mxu0 0.0
    %2889 = vmatpush2.msra.mxu0 %v2307
    %2890 = vmatprep.subr.mxu0 0.0
    %2891 = vmatpush2.msra.mxu0 %v2306
    %2892 = vmatprep.subr.mxu0 0.0
    %2893 = vmatpush2.msra.mxu0 %v2305
    %2894 = vmatprep.subr.mxu0 0.0
    %2895 = vmatpush2.msra.mxu0 %v2304
    %2896 = vmatprep.subr.mxu0 0.0
    %2897 = vmatpush2.msra.mxu0 %v2303
    %2898 = vmatprep.subr.mxu0 0.0
    %2899 = vmatpush2.msra.mxu0 %v2302
    %2900 = vmatprep.subr.mxu0 0.0
    %2901 = vmatpush2.msra.mxu0 %v2301
    %2902 = vmatprep.subr.mxu0 0.0
    %2903 = vmatpush2.msra.mxu0 %v2300
    %2904 = vmatprep.subr.mxu0 0.0
    %2905 = vmatpush2.msra.mxu0 %v2299
    %2906 = vmatprep.subr.mxu0 0.0
    %2907 = vmatpush2.msra.mxu0 %v2298
    %2908 = vmatprep.subr.mxu0 0.0
    %2909 = vmatpush2.msra.mxu0 %v2297
    %2910 = vmatprep.subr.mxu0 0.0
    %2911 = vmatpush2.msra.mxu0 %v2296
    %2912 = vmatprep.subr.mxu0 0.0
    %2913 = vmatpush2.msra.mxu0 %v2295
    %2914 = vmatprep.subr.mxu0 0.0
    %2915 = vmatpush2.msra.mxu0 %v2294
    %2916 = vmatprep.mubr.f32.mxu0 %v2105
    %2917 = vmatmul.mubr.f32.gmra.mxu0 %v2104
    %v2918 = vpop.f32.mrf.mxu0
    %v2919 = vadd.f32 %v2849, %v2918
    %v2920 = vpop.f32.mrf.mxu0
    %2921 = vdwg.mxu0
    %2922 = vmatprep.subr.mxu0 0.0
    %2923 = vmatpush1.msra.mxu0 %v2325
    %2924 = vmatprep.subr.mxu0 0.0
    %2925 = vmatpush1.msra.mxu0 %v2324
    %2926 = vmatprep.subr.mxu0 0.0
    %2927 = vmatpush1.msra.mxu0 %v2323
    %2928 = vmatprep.subr.mxu0 0.0
    %2929 = vmatpush1.msra.mxu0 %v2322
    %2930 = vmatprep.subr.mxu0 0.0
    %2931 = vmatpush1.msra.mxu0 %v2321
    %2932 = vmatprep.subr.mxu0 0.0
    %2933 = vmatpush1.msra.mxu0 %v2320
    %2934 = vmatprep.subr.mxu0 0.0
    %2935 = vmatpush1.msra.mxu0 %v2319
    %2936 = vmatprep.subr.mxu0 0.0
    %2937 = vmatpush1.msra.mxu0 %v2318
    %2938 = vmatprep.subr.mxu0 0.0
    %2939 = vmatpush1.msra.mxu0 %v2317
    %2940 = vmatprep.subr.mxu0 0.0
    %2941 = vmatpush1.msra.mxu0 %v2316
    %2942 = vmatprep.subr.mxu0 0.0
    %2943 = vmatpush1.msra.mxu0 %v2315
    %2944 = vmatprep.subr.mxu0 0.0
    %2945 = vmatpush1.msra.mxu0 %v2314
    %2946 = vmatprep.subr.mxu0 0.0
    %2947 = vmatpush1.msra.mxu0 %v2313
    %2948 = vmatprep.subr.mxu0 0.0
    %2949 = vmatpush1.msra.mxu0 %v2312
    %2950 = vmatprep.subr.mxu0 0.0
    %2951 = vmatpush1.msra.mxu0 %v2311
    %2952 = vmatprep.subr.mxu0 0.0
    %2953 = vmatpush1.msra.mxu0 %v2310
    %2954 = vmatprep.subr.mxu0 0.0
    %2955 = vmatpush2.msra.mxu0 %v2341
    %2956 = vmatprep.subr.mxu0 0.0
    %2957 = vmatpush2.msra.mxu0 %v2340
    %2958 = vmatprep.subr.mxu0 0.0
    %2959 = vmatpush2.msra.mxu0 %v2339
    %2960 = vmatprep.subr.mxu0 0.0
    %2961 = vmatpush2.msra.mxu0 %v2338
    %2962 = vmatprep.subr.mxu0 0.0
    %2963 = vmatpush2.msra.mxu0 %v2337
    %2964 = vmatprep.subr.mxu0 0.0
    %2965 = vmatpush2.msra.mxu0 %v2336
    %2966 = vmatprep.subr.mxu0 0.0
    %2967 = vmatpush2.msra.mxu0 %v2335
    %2968 = vmatprep.subr.mxu0 0.0
    %2969 = vmatpush2.msra.mxu0 %v2334
    %2970 = vmatprep.subr.mxu0 0.0
    %2971 = vmatpush2.msra.mxu0 %v2333
    %2972 = vmatprep.subr.mxu0 0.0
    %2973 = vmatpush2.msra.mxu0 %v2332
    %2974 = vmatprep.subr.mxu0 0.0
    %2975 = vmatpush2.msra.mxu0 %v2331
    %2976 = vmatprep.subr.mxu0 0.0
    %2977 = vmatpush2.msra.mxu0 %v2330
    %2978 = vmatprep.subr.mxu0 0.0
    %2979 = vmatpush2.msra.mxu0 %v2329
    %2980 = vmatprep.subr.mxu0 0.0
    %2981 = vmatpush2.msra.mxu0 %v2328
    %2982 = vmatprep.subr.mxu0 0.0
    %2983 = vmatpush2.msra.mxu0 %v2327
    %2984 = vmatprep.subr.mxu0 0.0
    %2985 = vmatpush2.msra.mxu0 %v2326
    %2986 = vmatprep.mubr.f32.mxu0 %v2107
    %2987 = vmatmul.mubr.f32.gmra.mxu0 %v2106
    %v2988 = vpop.f32.mrf.mxu0
    %v2989 = vadd.f32 %v2919, %v2988
    %v2990 = vpop.f32.mrf.mxu0
    %2991 = vdwg.mxu0
    %2992 = vmatprep.subr.mxu0 0.0
    %2993 = vmatpush1.msra.mxu0 %v2357
    %2994 = vmatprep.subr.mxu0 0.0
    %2995 = vmatpush1.msra.mxu0 %v2356
    %2996 = vmatprep.subr.mxu0 0.0
    %2997 = vmatpush1.msra.mxu0 %v2355
    %2998 = vmatprep.subr.mxu0 0.0
    %2999 = vmatpush1.msra.mxu0 %v2354
    %3000 = vmatprep.subr.mxu0 0.0
    %3001 = vmatpush1.msra.mxu0 %v2353
    %3002 = vmatprep.subr.mxu0 0.0
    %3003 = vmatpush1.msra.mxu0 %v2352
    %3004 = vmatprep.subr.mxu0 0.0
    %3005 = vmatpush1.msra.mxu0 %v2351
    %3006 = vmatprep.subr.mxu0 0.0
    %3007 = vmatpush1.msra.mxu0 %v2350
    %3008 = vmatprep.subr.mxu0 0.0
    %3009 = vmatpush1.msra.mxu0 %v2349
    %3010 = vmatprep.subr.mxu0 0.0
    %3011 = vmatpush1.msra.mxu0 %v2348
    %3012 = vmatprep.subr.mxu0 0.0
    %3013 = vmatpush1.msra.mxu0 %v2347
    %3014 = vmatprep.subr.mxu0 0.0
    %3015 = vmatpush1.msra.mxu0 %v2346
    %3016 = vmatprep.subr.mxu0 0.0
    %3017 = vmatpush1.msra.mxu0 %v2345
    %3018 = vmatprep.subr.mxu0 0.0
    %3019 = vmatpush1.msra.mxu0 %v2344
    %3020 = vmatprep.subr.mxu0 0.0
    %3021 = vmatpush1.msra.mxu0 %v2343
    %3022 = vmatprep.subr.mxu0 0.0
    %3023 = vmatpush1.msra.mxu0 %v2342
    %3024 = vmatprep.subr.mxu0 0.0
    %3025 = vmatpush2.msra.mxu0 %v2373
    %3026 = vmatprep.subr.mxu0 0.0
    %3027 = vmatpush2.msra.mxu0 %v2372
    %3028 = vmatprep.subr.mxu0 0.0
    %3029 = vmatpush2.msra.mxu0 %v2371
    %3030 = vmatprep.subr.mxu0 0.0
    %3031 = vmatpush2.msra.mxu0 %v2370
    %3032 = vmatprep.subr.mxu0 0.0
    %3033 = vmatpush2.msra.mxu0 %v2369
    %3034 = vmatprep.subr.mxu0 0.0
    %3035 = vmatpush2.msra.mxu0 %v2368
    %3036 = vmatprep.subr.mxu0 0.0
    %3037 = vmatpush2.msra.mxu0 %v2367
    %3038 = vmatprep.subr.mxu0 0.0
    %3039 = vmatpush2.msra.mxu0 %v2366
    %3040 = vmatprep.subr.mxu0 0.0
    %3041 = vmatpush2.msra.mxu0 %v2365
    %3042 = vmatprep.subr.mxu0 0.0
    %3043 = vmatpush2.msra.mxu0 %v2364
    %3044 = vmatprep.subr.mxu0 0.0
    %3045 = vmatpush2.msra.mxu0 %v2363
    %3046 = vmatprep.subr.mxu0 0.0
    %3047 = vmatpush2.msra.mxu0 %v2362
    %3048 = vmatprep.subr.mxu0 0.0
    %3049 = vmatpush2.msra.mxu0 %v2361
    %3050 = vmatprep.subr.mxu0 0.0
    %3051 = vmatpush2.msra.mxu0 %v2360
    %3052 = vmatprep.subr.mxu0 0.0
    %3053 = vmatpush2.msra.mxu0 %v2359
    %3054 = vmatprep.subr.mxu0 0.0
    %3055 = vmatpush2.msra.mxu0 %v2358
    %3056 = vmatprep.mubr.f32.mxu0 %v2109
    %3057 = vmatmul.mubr.f32.gmra.mxu0 %v2108
    %v3058 = vpop.f32.mrf.mxu0
    %v3059 = vadd.f32 %v2989, %v3058
    %v3060 = vpop.f32.mrf.mxu0
    %3061 = vdwg.mxu0
    %3062 = vmatprep.subr.mxu0 0.0
    %3063 = vmatpush1.msra.mxu0 %v2389
    %3064 = vmatprep.subr.mxu0 0.0
    %3065 = vmatpush1.msra.mxu0 %v2388
    %3066 = vmatprep.subr.mxu0 0.0
    %3067 = vmatpush1.msra.mxu0 %v2387
    %3068 = vmatprep.subr.mxu0 0.0
    %3069 = vmatpush1.msra.mxu0 %v2386
    %3070 = vmatprep.subr.mxu0 0.0
    %3071 = vmatpush1.msra.mxu0 %v2385
    %3072 = vmatprep.subr.mxu0 0.0
    %3073 = vmatpush1.msra.mxu0 %v2384
    %3074 = vmatprep.subr.mxu0 0.0
    %3075 = vmatpush1.msra.mxu0 %v2383
    %3076 = vmatprep.subr.mxu0 0.0
    %3077 = vmatpush1.msra.mxu0 %v2382
    %3078 = vmatprep.subr.mxu0 0.0
    %3079 = vmatpush1.msra.mxu0 %v2381
    %3080 = vmatprep.subr.mxu0 0.0
    %3081 = vmatpush1.msra.mxu0 %v2380
    %3082 = vmatprep.subr.mxu0 0.0
    %3083 = vmatpush1.msra.mxu0 %v2379
    %3084 = vmatprep.subr.mxu0 0.0
    %3085 = vmatpush1.msra.mxu0 %v2378
    %3086 = vmatprep.subr.mxu0 0.0
    %3087 = vmatpush1.msra.mxu0 %v2377
    %3088 = vmatprep.subr.mxu0 0.0
    %3089 = vmatpush1.msra.mxu0 %v2376
    %3090 = vmatprep.subr.mxu0 0.0
    %3091 = vmatpush1.msra.mxu0 %v2375
    %3092 = vmatprep.subr.mxu0 0.0
    %3093 = vmatpush1.msra.mxu0 %v2374
    %3094 = vmatprep.subr.mxu0 0.0
    %3095 = vmatpush2.msra.mxu0 %v2405
    %3096 = vmatprep.subr.mxu0 0.0
    %3097 = vmatpush2.msra.mxu0 %v2404
    %3098 = vmatprep.subr.mxu0 0.0
    %3099 = vmatpush2.msra.mxu0 %v2403
    %3100 = vmatprep.subr.mxu0 0.0
    %3101 = vmatpush2.msra.mxu0 %v2402
    %3102 = vmatprep.subr.mxu0 0.0
    %3103 = vmatpush2.msra.mxu0 %v2401
    %3104 = vmatprep.subr.mxu0 0.0
    %3105 = vmatpush2.msra.mxu0 %v2400
    %3106 = vmatprep.subr.mxu0 0.0
    %3107 = vmatpush2.msra.mxu0 %v2399
    %3108 = vmatprep.subr.mxu0 0.0
    %3109 = vmatpush2.msra.mxu0 %v2398
    %3110 = vmatprep.subr.mxu0 0.0
    %3111 = vmatpush2.msra.mxu0 %v2397
    %3112 = vmatprep.subr.mxu0 0.0
    %3113 = vmatpush2.msra.mxu0 %v2396
    %3114 = vmatprep.subr.mxu0 0.0
    %3115 = vmatpush2.msra.mxu0 %v2395
    %3116 = vmatprep.subr.mxu0 0.0
    %3117 = vmatpush2.msra.mxu0 %v2394
    %3118 = vmatprep.subr.mxu0 0.0
    %3119 = vmatpush2.msra.mxu0 %v2393
    %3120 = vmatprep.subr.mxu0 0.0
    %3121 = vmatpush2.msra.mxu0 %v2392
    %3122 = vmatprep.subr.mxu0 0.0
    %3123 = vmatpush2.msra.mxu0 %v2391
    %3124 = vmatprep.subr.mxu0 0.0
    %3125 = vmatpush2.msra.mxu0 %v2390
    %3126 = vmatprep.mubr.f32.mxu0 %v2111
    %3127 = vmatmul.mubr.f32.gmra.mxu0 %v2110
    %v3128 = vpop.f32.mrf.mxu0
    %v3129 = vadd.f32 %v3059, %v3128
    %v3130 = vpop.f32.mrf.mxu0
    %3131 = vdwg.mxu0
    %3132 = vmatprep.subr.mxu0 0.0
    %3133 = vmatpush1.msra.mxu0 %v2421
    %3134 = vmatprep.subr.mxu0 0.0
    %3135 = vmatpush1.msra.mxu0 %v2420
    %3136 = vmatprep.subr.mxu0 0.0
    %3137 = vmatpush1.msra.mxu0 %v2419
    %3138 = vmatprep.subr.mxu0 0.0
    %3139 = vmatpush1.msra.mxu0 %v2418
    %3140 = vmatprep.subr.mxu0 0.0
    %3141 = vmatpush1.msra.mxu0 %v2417
    %3142 = vmatprep.subr.mxu0 0.0
    %3143 = vmatpush1.msra.mxu0 %v2416
    %3144 = vmatprep.subr.mxu0 0.0
    %3145 = vmatpush1.msra.mxu0 %v2415
    %3146 = vmatprep.subr.mxu0 0.0
    %3147 = vmatpush1.msra.mxu0 %v2414
    %3148 = vmatprep.subr.mxu0 0.0
    %3149 = vmatpush1.msra.mxu0 %v2413
    %3150 = vmatprep.subr.mxu0 0.0
    %3151 = vmatpush1.msra.mxu0 %v2412
    %3152 = vmatprep.subr.mxu0 0.0
    %3153 = vmatpush1.msra.mxu0 %v2411
    %3154 = vmatprep.subr.mxu0 0.0
    %3155 = vmatpush1.msra.mxu0 %v2410
    %3156 = vmatprep.subr.mxu0 0.0
    %3157 = vmatpush1.msra.mxu0 %v2409
    %3158 = vmatprep.subr.mxu0 0.0
    %3159 = vmatpush1.msra.mxu0 %v2408
    %3160 = vmatprep.subr.mxu0 0.0
    %3161 = vmatpush1.msra.mxu0 %v2407
    %3162 = vmatprep.subr.mxu0 0.0
    %3163 = vmatpush1.msra.mxu0 %v2406
    %3164 = vmatprep.subr.mxu0 0.0
    %3165 = vmatpush2.msra.mxu0 %v2437
    %3166 = vmatprep.subr.mxu0 0.0
    %3167 = vmatpush2.msra.mxu0 %v2436
    %3168 = vmatprep.subr.mxu0 0.0
    %3169 = vmatpush2.msra.mxu0 %v2435
    %3170 = vmatprep.subr.mxu0 0.0
    %3171 = vmatpush2.msra.mxu0 %v2434
    %3172 = vmatprep.subr.mxu0 0.0
    %3173 = vmatpush2.msra.mxu0 %v2433
    %3174 = vmatprep.subr.mxu0 0.0
    %3175 = vmatpush2.msra.mxu0 %v2432
    %3176 = vmatprep.subr.mxu0 0.0
    %3177 = vmatpush2.msra.mxu0 %v2431
    %3178 = vmatprep.subr.mxu0 0.0
    %3179 = vmatpush2.msra.mxu0 %v2430
    %3180 = vmatprep.subr.mxu0 0.0
    %3181 = vmatpush2.msra.mxu0 %v2429
    %3182 = vmatprep.subr.mxu0 0.0
    %3183 = vmatpush2.msra.mxu0 %v2428
    %3184 = vmatprep.subr.mxu0 0.0
    %3185 = vmatpush2.msra.mxu0 %v2427
    %3186 = vmatprep.subr.mxu0 0.0
    %3187 = vmatpush2.msra.mxu0 %v2426
    %3188 = vmatprep.subr.mxu0 0.0
    %3189 = vmatpush2.msra.mxu0 %v2425
    %3190 = vmatprep.subr.mxu0 0.0
    %3191 = vmatpush2.msra.mxu0 %v2424
    %3192 = vmatprep.subr.mxu0 0.0
    %3193 = vmatpush2.msra.mxu0 %v2423
    %3194 = vmatprep.subr.mxu0 0.0
    %3195 = vmatpush2.msra.mxu0 %v2422
    %3196 = vmatprep.mubr.f32.mxu0 %v2113
    %3197 = vmatmul.mubr.f32.gmra.mxu0 %v2112
    %v3198 = vpop.f32.mrf.mxu0
    %v3199 = vadd.f32 %v3129, %v3198
    %v3200 = vpop.f32.mrf.mxu0
    %3201 = vdwg.mxu0
    %3202 = vmatprep.subr.mxu0 0.0
    %3203 = vmatpush1.msra.mxu0 %v2453
    %3204 = vmatprep.subr.mxu0 0.0
    %3205 = vmatpush1.msra.mxu0 %v2452
    %3206 = vmatprep.subr.mxu0 0.0
    %3207 = vmatpush1.msra.mxu0 %v2451
    %3208 = vmatprep.subr.mxu0 0.0
    %3209 = vmatpush1.msra.mxu0 %v2450
    %3210 = vmatprep.subr.mxu0 0.0
    %3211 = vmatpush1.msra.mxu0 %v2449
    %3212 = vmatprep.subr.mxu0 0.0
    %3213 = vmatpush1.msra.mxu0 %v2448
    %3214 = vmatprep.subr.mxu0 0.0
    %3215 = vmatpush1.msra.mxu0 %v2447
    %3216 = vmatprep.subr.mxu0 0.0
    %3217 = vmatpush1.msra.mxu0 %v2446
    %3218 = vmatprep.subr.mxu0 0.0
    %3219 = vmatpush1.msra.mxu0 %v2445
    %3220 = vmatprep.subr.mxu0 0.0
    %3221 = vmatpush1.msra.mxu0 %v2444
    %3222 = vmatprep.subr.mxu0 0.0
    %3223 = vmatpush1.msra.mxu0 %v2443
    %3224 = vmatprep.subr.mxu0 0.0
    %3225 = vmatpush1.msra.mxu0 %v2442
    %3226 = vmatprep.subr.mxu0 0.0
    %3227 = vmatpush1.msra.mxu0 %v2441
    %3228 = vmatprep.subr.mxu0 0.0
    %3229 = vmatpush1.msra.mxu0 %v2440
    %3230 = vmatprep.subr.mxu0 0.0
    %3231 = vmatpush1.msra.mxu0 %v2439
    %3232 = vmatprep.subr.mxu0 0.0
    %3233 = vmatpush1.msra.mxu0 %v2438
    %3234 = vmatprep.subr.mxu0 0.0
    %3235 = vmatpush2.msra.mxu0 %v2469
    %3236 = vmatprep.subr.mxu0 0.0
    %3237 = vmatpush2.msra.mxu0 %v2468
    %3238 = vmatprep.subr.mxu0 0.0
    %3239 = vmatpush2.msra.mxu0 %v2467
    %3240 = vmatprep.subr.mxu0 0.0
    %3241 = vmatpush2.msra.mxu0 %v2466
    %3242 = vmatprep.subr.mxu0 0.0
    %3243 = vmatpush2.msra.mxu0 %v2465
    %3244 = vmatprep.subr.mxu0 0.0
    %3245 = vmatpush2.msra.mxu0 %v2464
    %3246 = vmatprep.subr.mxu0 0.0
    %3247 = vmatpush2.msra.mxu0 %v2463
    %3248 = vmatprep.subr.mxu0 0.0
    %3249 = vmatpush2.msra.mxu0 %v2462
    %3250 = vmatprep.subr.mxu0 0.0
    %3251 = vmatpush2.msra.mxu0 %v2461
    %3252 = vmatprep.subr.mxu0 0.0
    %3253 = vmatpush2.msra.mxu0 %v2460
    %3254 = vmatprep.subr.mxu0 0.0
    %3255 = vmatpush2.msra.mxu0 %v2459
    %3256 = vmatprep.subr.mxu0 0.0
    %3257 = vmatpush2.msra.mxu0 %v2458
    %3258 = vmatprep.subr.mxu0 0.0
    %3259 = vmatpush2.msra.mxu0 %v2457
    %3260 = vmatprep.subr.mxu0 0.0
    %3261 = vmatpush2.msra.mxu0 %v2456
    %3262 = vmatprep.subr.mxu0 0.0
    %3263 = vmatpush2.msra.mxu0 %v2455
    %3264 = vmatprep.subr.mxu0 0.0
    %3265 = vmatpush2.msra.mxu0 %v2454
    %3266 = vmatprep.mubr.f32.mxu0 %v2115
    %3267 = vmatmul.mubr.f32.gmra.mxu0 %v2114
    %v3268 = vpop.f32.mrf.mxu0
    %v3269 = vadd.f32 %v3199, %v3268
    %v3270 = vpop.f32.mrf.mxu0
    %3271 = vdwg.mxu0
    %3272 = vmatprep.subr.mxu0 0.0
    %3273 = vmatpush1.msra.mxu0 %v2485
    %3274 = vmatprep.subr.mxu0 0.0
    %3275 = vmatpush1.msra.mxu0 %v2484
    %3276 = vmatprep.subr.mxu0 0.0
    %3277 = vmatpush1.msra.mxu0 %v2483
    %3278 = vmatprep.subr.mxu0 0.0
    %3279 = vmatpush1.msra.mxu0 %v2482
    %3280 = vmatprep.subr.mxu0 0.0
    %3281 = vmatpush1.msra.mxu0 %v2481
    %3282 = vmatprep.subr.mxu0 0.0
    %3283 = vmatpush1.msra.mxu0 %v2480
    %3284 = vmatprep.subr.mxu0 0.0
    %3285 = vmatpush1.msra.mxu0 %v2479
    %3286 = vmatprep.subr.mxu0 0.0
    %3287 = vmatpush1.msra.mxu0 %v2478
    %3288 = vmatprep.subr.mxu0 0.0
    %3289 = vmatpush1.msra.mxu0 %v2477
    %3290 = vmatprep.subr.mxu0 0.0
    %3291 = vmatpush1.msra.mxu0 %v2476
    %3292 = vmatprep.subr.mxu0 0.0
    %3293 = vmatpush1.msra.mxu0 %v2475
    %3294 = vmatprep.subr.mxu0 0.0
    %3295 = vmatpush1.msra.mxu0 %v2474
    %3296 = vmatprep.subr.mxu0 0.0
    %3297 = vmatpush1.msra.mxu0 %v2473
    %3298 = vmatprep.subr.mxu0 0.0
    %3299 = vmatpush1.msra.mxu0 %v2472
    %3300 = vmatprep.subr.mxu0 0.0
    %3301 = vmatpush1.msra.mxu0 %v2471
    %3302 = vmatprep.subr.mxu0 0.0
    %3303 = vmatpush1.msra.mxu0 %v2470
    %3304 = vmatprep.subr.mxu0 0.0
    %3305 = vmatpush2.msra.mxu0 %v2501
    %3306 = vmatprep.subr.mxu0 0.0
    %3307 = vmatpush2.msra.mxu0 %v2500
    %3308 = vmatprep.subr.mxu0 0.0
    %3309 = vmatpush2.msra.mxu0 %v2499
    %3310 = vmatprep.subr.mxu0 0.0
    %3311 = vmatpush2.msra.mxu0 %v2498
    %3312 = vmatprep.subr.mxu0 0.0
    %3313 = vmatpush2.msra.mxu0 %v2497
    %3314 = vmatprep.subr.mxu0 0.0
    %3315 = vmatpush2.msra.mxu0 %v2496
    %3316 = vmatprep.subr.mxu0 0.0
    %3317 = vmatpush2.msra.mxu0 %v2495
    %3318 = vmatprep.subr.mxu0 0.0
    %3319 = vmatpush2.msra.mxu0 %v2494
    %3320 = vmatprep.subr.mxu0 0.0
    %3321 = vmatpush2.msra.mxu0 %v2493
    %3322 = vmatprep.subr.mxu0 0.0
    %3323 = vmatpush2.msra.mxu0 %v2492
    %3324 = vmatprep.subr.mxu0 0.0
    %3325 = vmatpush2.msra.mxu0 %v2491
    %3326 = vmatprep.subr.mxu0 0.0
    %3327 = vmatpush2.msra.mxu0 %v2490
    %3328 = vmatprep.subr.mxu0 0.0
    %3329 = vmatpush2.msra.mxu0 %v2489
    %3330 = vmatprep.subr.mxu0 0.0
    %3331 = vmatpush2.msra.mxu0 %v2488
    %3332 = vmatprep.subr.mxu0 0.0
    %3333 = vmatpush2.msra.mxu0 %v2487
    %3334 = vmatprep.subr.mxu0 0.0
    %3335 = vmatpush2.msra.mxu0 %v2486
    %3336 = vmatprep.mubr.f32.mxu0 %v2117
    %3337 = vmatmul.mubr.f32.gmra.mxu0 %v2116
    %v3338 = vpop.f32.mrf.mxu0
    %v3339 = vadd.f32 %v3269, %v3338
    %v3340 = vpop.f32.mrf.mxu0
    %3341 = vdwg.mxu0
    %v3342 = vld [vmem:[%s4] sm:$0xff]
    %v3343 = vld [vmem:[%s4 + $0x8] sm:$0xff]
    %v3344 = vld [vmem:[%s4 + $0x10] sm:$0xff]
    %v3345 = vld [vmem:[%s4 + $0x18] sm:$0xff]
    %v3346 = vld [vmem:[%s5] sm:$0xff]
    %v3347 = vld [vmem:[%s5 + $0x8] sm:$0xff]
    %v3348 = vld [vmem:[%s5 + $0x10] sm:$0xff]
    %v3349 = vld [vmem:[%s5 + $0x18] sm:$0xff]
    %3351 = vset.pattern.permute.xlu0 0
    %3352 = vperm.xlu0 %3351, %v3346
    %v3353 = vpop.permute.xlu0 %3352
    %3356 = vset.pattern.permute.xlu0 0
    %3357 = vperm.xlu0 %3356, %v3347
    %v3358 = vpop.permute.xlu0 %3357
    %3361 = vset.pattern.permute.xlu0 0
    %3362 = vperm.xlu0 %3361, %v3348
    %v3363 = vpop.permute.xlu0 %3362
    %3366 = vset.pattern.permute.xlu0 0
    %3367 = vperm.xlu0 %3366, %v3349
    %v3368 = vpop.permute.xlu0 %3367
    %vm3370 = vcmask 64512
    %v3372 = vsel %vm3370, %v3342, 0
    %v3375 = vsel %vm3370, %v3343, 0
    %v3378 = vsel %vm3370, %v3344, 0
    %v3381 = vsel %vm3370, %v3345, 0
    %3383 = vmatprep.subr.mxu0 0.0
    %3384 = vmatpush1.msra.mxu0 0.0
    %3385 = vmatprep.subr.mxu0 0.0
    %3386 = vmatpush1.msra.mxu0 0.0
    %3387 = vmatprep.subr.mxu0 0.0
    %3388 = vmatpush1.msra.mxu0 0.0
    %3389 = vmatprep.subr.mxu0 0.0
    %3390 = vmatpush1.msra.mxu0 0.0
    %3391 = vmatprep.subr.mxu0 0.0
    %3392 = vmatpush1.msra.mxu0 0.0
    %3393 = vmatprep.subr.mxu0 0.0
    %3394 = vmatpush1.msra.mxu0 0.0
    %3395 = vmatprep.subr.mxu0 0.0
    %3396 = vmatpush1.msra.mxu0 0.0
    %3397 = vmatprep.subr.mxu0 0.0
    %3398 = vmatpush1.msra.mxu0 0.0
    %3399 = vmatprep.subr.mxu0 0.0
    %3400 = vmatpush1.msra.mxu0 0.0
    %3401 = vmatprep.subr.mxu0 0.0
    %3402 = vmatpush1.msra.mxu0 0.0
    %3403 = vmatprep.subr.mxu0 0.0
    %3404 = vmatpush1.msra.mxu0 0.0
    %3405 = vmatprep.subr.mxu0 0.0
    %3406 = vmatpush1.msra.mxu0 0.0
    %3407 = vmatprep.subr.mxu0 0.0
    %3408 = vmatpush1.msra.mxu0 0.0
    %3409 = vmatprep.subr.mxu0 0.0
    %3410 = vmatpush1.msra.mxu0 0.0
    %3411 = vmatprep.subr.mxu0 0.0
    %3412 = vmatpush1.msra.mxu0 0.0
    %3413 = vmatprep.subr.mxu0 0.0
    %3414 = vmatpush1.msra.mxu0 %v3339
    %3415 = vmatprep.subr.mxu0 0.0
    %3416 = vmatpush2.msra.mxu0 0.0
    %3417 = vmatprep.subr.mxu0 0.0
    %3418 = vmatpush2.msra.mxu0 0.0
    %3419 = vmatprep.subr.mxu0 0.0
    %3420 = vmatpush2.msra.mxu0 0.0
    %3421 = vmatprep.subr.mxu0 0.0
    %3422 = vmatpush2.msra.mxu0 0.0
    %3423 = vmatprep.subr.mxu0 0.0
    %3424 = vmatpush2.msra.mxu0 0.0
    %3425 = vmatprep.subr.mxu0 0.0
    %3426 = vmatpush2.msra.mxu0 0.0
    %3427 = vmatprep.subr.mxu0 0.0
    %3428 = vmatpush2.msra.mxu0 0.0
    %3429 = vmatprep.subr.mxu0 0.0
    %3430 = vmatpush2.msra.mxu0 0.0
    %3431 = vmatprep.subr.mxu0 0.0
    %3432 = vmatpush2.msra.mxu0 0.0
    %3433 = vmatprep.subr.mxu0 0.0
    %3434 = vmatpush2.msra.mxu0 0.0
    %3435 = vmatprep.subr.mxu0 0.0
    %3436 = vmatpush2.msra.mxu0 0.0
    %3437 = vmatprep.subr.mxu0 0.0
    %3438 = vmatpush2.msra.mxu0 0.0
    %3439 = vmatprep.subr.mxu0 0.0
    %3440 = vmatpush2.msra.mxu0 0.0
    %3441 = vmatprep.subr.mxu0 0.0
    %3442 = vmatpush2.msra.mxu0 0.0
    %3443 = vmatprep.subr.mxu0 0.0
    %3444 = vmatpush2.msra.mxu0 0.0
    %3445 = vmatprep.subr.mxu0 0.0
    %3446 = vmatpush2.msra.mxu0 0.0
    %3447 = vmatprep.mubr.f32.mxu0 0.0
    %3448 = vmatmul.mubr.f32.gmra.mxu0 %v3372
    %v3449 = vpop.f32.mrf.mxu0
    %v3450 = vadd.f32 %v3353, %v3449
    %v3451 = vpop.f32.mrf.mxu0
    %3452 = vmatprep.mubr.f32.mxu0 0.0
    %3453 = vmatmul.mubr.f32.gmra.mxu0 %v3375
    %v3454 = vpop.f32.mrf.mxu0
    %v3455 = vadd.f32 %v3358, %v3454
    %v3456 = vpop.f32.mrf.mxu0
    %3457 = vmatprep.mubr.f32.mxu0 0.0
    %3458 = vmatmul.mubr.f32.gmra.mxu0 %v3378
    %v3459 = vpop.f32.mrf.mxu0
    %v3460 = vadd.f32 %v3363, %v3459
    %v3461 = vpop.f32.mrf.mxu0
    %3462 = vmatprep.mubr.f32.mxu0 0.0
    %3463 = vmatmul.mubr.f32.gmra.mxu0 %v3381
    %v3464 = vpop.f32.mrf.mxu0
    %v3465 = vadd.f32 %v3368, %v3464
    %v3466 = vpop.f32.mrf.mxu0
    %3467 = vdwg.mxu0
    %v3468 = vmax.f32 %v3450, 0.0
    %v3469 = vmax.f32 %v3455, 0.0
    %v3470 = vmax.f32 %v3460, 0.0
    %v3471 = vmax.f32 %v3465, 0.0
    %v3472 = vld [vmem:[#allocation9] sm:$0xff]
    %v3473 = vld [vmem:[#allocation9 + $0x8] sm:$0xff]
    %v3474 = vld [vmem:[#allocation9 + $0x10] sm:$0xff]
    %v3475 = vld [vmem:[#allocation9 + $0x18] sm:$0xff]
    %v3476 = vld [vmem:[%s7] sm:$0xff]
    %v3477 = vld [vmem:[%s7 + $0x8] sm:$0xff]
    %v3478 = vld [vmem:[%s7 + $0x10] sm:$0xff]
    %v3479 = vld [vmem:[%s7 + $0x18] sm:$0xff]
    %3481 = vset.pattern.permute.xlu0 0
    %3482 = vperm.xlu0 %3481, %v3476
    %v3483 = vpop.permute.xlu0 %3482
    %3486 = vset.pattern.permute.xlu0 0
    %3487 = vperm.xlu0 %3486, %v3477
    %v3488 = vpop.permute.xlu0 %3487
    %3491 = vset.pattern.permute.xlu0 0
    %3492 = vperm.xlu0 %3491, %v3478
    %v3493 = vpop.permute.xlu0 %3492
    %3496 = vset.pattern.permute.xlu0 0
    %3497 = vperm.xlu0 %3496, %v3479
    %v3498 = vpop.permute.xlu0 %3497
    %vm3500 = vcmask 261120
    %v3502 = vsel %vm3500, %v3472, 0
    %v3505 = vsel %vm3500, %v3473, 0
    %v3508 = vsel %vm3500, %v3474, 0
    %v3511 = vsel %vm3500, %v3475, 0
    %3513 = vmatprep.subr.mxu0 0.0
    %3514 = vmatpush1.msra.mxu0 0.0
    %3515 = vmatprep.subr.mxu0 0.0
    %3516 = vmatpush1.msra.mxu0 0.0
    %3517 = vmatprep.subr.mxu0 0.0
    %3518 = vmatpush1.msra.mxu0 0.0
    %3519 = vmatprep.subr.mxu0 0.0
    %3520 = vmatpush1.msra.mxu0 0.0
    %3521 = vmatprep.subr.mxu0 0.0
    %3522 = vmatpush1.msra.mxu0 0.0
    %3523 = vmatprep.subr.mxu0 0.0
    %3524 = vmatpush1.msra.mxu0 0.0
    %3525 = vmatprep.subr.mxu0 0.0
    %3526 = vmatpush1.msra.mxu0 0.0
    %3527 = vmatprep.subr.mxu0 0.0
    %3528 = vmatpush1.msra.mxu0 0.0
    %3529 = vmatprep.subr.mxu0 0.0
    %3530 = vmatpush1.msra.mxu0 0.0
    %3531 = vmatprep.subr.mxu0 0.0
    %3532 = vmatpush1.msra.mxu0 0.0
    %3533 = vmatprep.subr.mxu0 0.0
    %3534 = vmatpush1.msra.mxu0 0.0
    %3535 = vmatprep.subr.mxu0 0.0
    %3536 = vmatpush1.msra.mxu0 0.0
    %3537 = vmatprep.subr.mxu0 0.0
    %3538 = vmatpush1.msra.mxu0 %v3471
    %3539 = vmatprep.subr.mxu0 0.0
    %3540 = vmatpush1.msra.mxu0 %v3470
    %3541 = vmatprep.subr.mxu0 0.0
    %3542 = vmatpush1.msra.mxu0 %v3469
    %3543 = vmatprep.subr.mxu0 0.0
    %3544 = vmatpush1.msra.mxu0 %v3468
    %3545 = vmatprep.subr.mxu0 0.0
    %3546 = vmatpush2.msra.mxu0 0.0
    %3547 = vmatprep.subr.mxu0 0.0
    %3548 = vmatpush2.msra.mxu0 0.0
    %3549 = vmatprep.subr.mxu0 0.0
    %3550 = vmatpush2.msra.mxu0 0.0
    %3551 = vmatprep.subr.mxu0 0.0
    %3552 = vmatpush2.msra.mxu0 0.0
    %3553 = vmatprep.subr.mxu0 0.0
    %3554 = vmatpush2.msra.mxu0 0.0
    %3555 = vmatprep.subr.mxu0 0.0
    %3556 = vmatpush2.msra.mxu0 0.0
    %3557 = vmatprep.subr.mxu0 0.0
    %3558 = vmatpush2.msra.mxu0 0.0
    %3559 = vmatprep.subr.mxu0 0.0
    %3560 = vmatpush2.msra.mxu0 0.0
    %3561 = vmatprep.subr.mxu0 0.0
    %3562 = vmatpush2.msra.mxu0 0.0
    %3563 = vmatprep.subr.mxu0 0.0
    %3564 = vmatpush2.msra.mxu0 0.0
    %3565 = vmatprep.subr.mxu0 0.0
    %3566 = vmatpush2.msra.mxu0 0.0
    %3567 = vmatprep.subr.mxu0 0.0
    %3568 = vmatpush2.msra.mxu0 0.0
    %3569 = vmatprep.subr.mxu0 0.0
    %3570 = vmatpush2.msra.mxu0 0.0
    %3571 = vmatprep.subr.mxu0 0.0
    %3572 = vmatpush2.msra.mxu0 0.0
    %3573 = vmatprep.subr.mxu0 0.0
    %3574 = vmatpush2.msra.mxu0 0.0
    %3575 = vmatprep.subr.mxu0 0.0
    %3576 = vmatpush2.msra.mxu0 0.0
    %3577 = vmatprep.mubr.f32.mxu0 0.0
    %3578 = vmatmul.mubr.f32.gmra.mxu0 %v3502
    %v3579 = vpop.f32.mrf.mxu0
    %v3580 = vadd.f32 %v3483, %v3579
    %v3581 = vpop.f32.mrf.mxu0
    %3582 = vmatprep.mubr.f32.mxu0 0.0
    %3583 = vmatmul.mubr.f32.gmra.mxu0 %v3505
    %v3584 = vpop.f32.mrf.mxu0
    %v3585 = vadd.f32 %v3488, %v3584
    %v3586 = vpop.f32.mrf.mxu0
    %3587 = vmatprep.mubr.f32.mxu0 0.0
    %3588 = vmatmul.mubr.f32.gmra.mxu0 %v3508
    %v3589 = vpop.f32.mrf.mxu0
    %v3590 = vadd.f32 %v3493, %v3589
    %v3591 = vpop.f32.mrf.mxu0
    %3592 = vmatprep.mubr.f32.mxu0 0.0
    %3593 = vmatmul.mubr.f32.gmra.mxu0 %v3511
    %v3594 = vpop.f32.mrf.mxu0
    %v3595 = vadd.f32 %v3498, %v3594
    %v3596 = vpop.f32.mrf.mxu0
    %3597 = vdwg.mxu0
    %v3598 = vmax.f32 %v3580, 0.0
    %v3599 = vmax.f32 %v3585, 0.0
    %v3600 = vmax.f32 %v3590, 0.0
    %v3601 = vmax.f32 %v3595, 0.0
    %v3602 = vld [vmem:[#allocation10] sm:$0xff]
    %v3603 = vld [vmem:[#allocation10 + $0x8] sm:$0xff]
    %v3604 = vld [vmem:[%s9] sm:$0xff]
    %v3605 = vld [vmem:[%s9 + $0x8] sm:$0xff]
    %3607 = vset.pattern.permute.xlu0 0
    %3608 = vperm.xlu0 %3607, %v3604
    %v3609 = vpop.permute.xlu0 %3608
    %3612 = vset.pattern.permute.xlu0 0
    %3613 = vperm.xlu0 %3612, %v3605
    %v3614 = vpop.permute.xlu0 %3613
    %v3617 = vsel %vm3500, %v3602, 0
    %v3620 = vsel %vm3500, %v3603, 0
    %3622 = vmatprep.subr.mxu0 0.0
    %3623 = vmatpush1.msra.mxu0 0.0
    %3624 = vmatprep.subr.mxu0 0.0
    %3625 = vmatpush1.msra.mxu0 0.0
    %3626 = vmatprep.subr.mxu0 0.0
    %3627 = vmatpush1.msra.mxu0 0.0
    %3628 = vmatprep.subr.mxu0 0.0
    %3629 = vmatpush1.msra.mxu0 0.0
    %3630 = vmatprep.subr.mxu0 0.0
    %3631 = vmatpush1.msra.mxu0 0.0
    %3632 = vmatprep.subr.mxu0 0.0
    %3633 = vmatpush1.msra.mxu0 0.0
    %3634 = vmatprep.subr.mxu0 0.0
    %3635 = vmatpush1.msra.mxu0 0.0
    %3636 = vmatprep.subr.mxu0 0.0
    %3637 = vmatpush1.msra.mxu0 0.0
    %3638 = vmatprep.subr.mxu0 0.0
    %3639 = vmatpush1.msra.mxu0 0.0
    %3640 = vmatprep.subr.mxu0 0.0
    %3641 = vmatpush1.msra.mxu0 0.0
    %3642 = vmatprep.subr.mxu0 0.0
    %3643 = vmatpush1.msra.mxu0 0.0
    %3644 = vmatprep.subr.mxu0 0.0
    %3645 = vmatpush1.msra.mxu0 0.0
    %3646 = vmatprep.subr.mxu0 0.0
    %3647 = vmatpush1.msra.mxu0 %v3601
    %3648 = vmatprep.subr.mxu0 0.0
    %3649 = vmatpush1.msra.mxu0 %v3600
    %3650 = vmatprep.subr.mxu0 0.0
    %3651 = vmatpush1.msra.mxu0 %v3599
    %3652 = vmatprep.subr.mxu0 0.0
    %3653 = vmatpush1.msra.mxu0 %v3598
    %3654 = vmatprep.subr.mxu0 0.0
    %3655 = vmatpush2.msra.mxu0 0.0
    %3656 = vmatprep.subr.mxu0 0.0
    %3657 = vmatpush2.msra.mxu0 0.0
    %3658 = vmatprep.subr.mxu0 0.0
    %3659 = vmatpush2.msra.mxu0 0.0
    %3660 = vmatprep.subr.mxu0 0.0
    %3661 = vmatpush2.msra.mxu0 0.0
    %3662 = vmatprep.subr.mxu0 0.0
    %3663 = vmatpush2.msra.mxu0 0.0
    %3664 = vmatprep.subr.mxu0 0.0
    %3665 = vmatpush2.msra.mxu0 0.0
    %3666 = vmatprep.subr.mxu0 0.0
    %3667 = vmatpush2.msra.mxu0 0.0
    %3668 = vmatprep.subr.mxu0 0.0
    %3669 = vmatpush2.msra.mxu0 0.0
    %3670 = vmatprep.subr.mxu0 0.0
    %3671 = vmatpush2.msra.mxu0 0.0
    %3672 = vmatprep.subr.mxu0 0.0
    %3673 = vmatpush2.msra.mxu0 0.0
    %3674 = vmatprep.subr.mxu0 0.0
    %3675 = vmatpush2.msra.mxu0 0.0
    %3676 = vmatprep.subr.mxu0 0.0
    %3677 = vmatpush2.msra.mxu0 0.0
    %3678 = vmatprep.subr.mxu0 0.0
    %3679 = vmatpush2.msra.mxu0 0.0
    %3680 = vmatprep.subr.mxu0 0.0
    %3681 = vmatpush2.msra.mxu0 0.0
    %3682 = vmatprep.subr.mxu0 0.0
    %3683 = vmatpush2.msra.mxu0 0.0
    %3684 = vmatprep.subr.mxu0 0.0
    %3685 = vmatpush2.msra.mxu0 0.0
    %3686 = vmatprep.mubr.f32.mxu0 0.0
    %3687 = vmatmul.mubr.f32.gmra.mxu0 %v3617
    %v3688 = vpop.f32.mrf.mxu0
    %v3689 = vadd.f32 %v3609, %v3688
    %v3690 = vpop.f32.mrf.mxu0
    %3691 = vmatprep.mubr.f32.mxu0 0.0
    %3692 = vmatmul.mubr.f32.gmra.mxu0 %v3620
    %v3693 = vpop.f32.mrf.mxu0
    %v3694 = vadd.f32 %v3614, %v3693
    %v3695 = vpop.f32.mrf.mxu0
    %3696 = vdwg.mxu0
    %v3697 = vtanh.pop %v3689
    %v3698 = vtanh.pop %v3694
    %v3699 = vld [vmem:[#allocation12] sm:$0x1]
    %v3700 = vld [vmem:[#allocation3] sm:$0x1]
    %3702 = vset.pattern.permute.xlu0 0
    %3703 = vperm.xlu0 %3702, %v3700
    %v3704 = vpop.permute.xlu0 %3703
    %v3706 = vlaneseq
    %v3707 = vshrl.u32 %v3706, 7
    %v3708 = vsub.s32 0, %v3707
    %v3709 = vrot.slane %v3704, %v3708
    %vm3710 = vcmask 130048
    %v3712 = vsel %vm3710, %v3699, 0
    %3714 = vmatprep.subr.mxu0 0.0
    %3715 = vmatpush1.msra.mxu0 0.0
    %3716 = vmatprep.subr.mxu0 0.0
    %3717 = vmatpush1.msra.mxu0 0.0
    %3718 = vmatprep.subr.mxu0 0.0
    %3719 = vmatpush1.msra.mxu0 0.0
    %3720 = vmatprep.subr.mxu0 0.0
    %3721 = vmatpush1.msra.mxu0 0.0
    %3722 = vmatprep.subr.mxu0 0.0
    %3723 = vmatpush1.msra.mxu0 0.0
    %3724 = vmatprep.subr.mxu0 0.0
    %3725 = vmatpush1.msra.mxu0 0.0
    %3726 = vmatprep.subr.mxu0 0.0
    %3727 = vmatpush1.msra.mxu0 0.0
    %3728 = vmatprep.subr.mxu0 0.0
    %3729 = vmatpush1.msra.mxu0 0.0
    %3730 = vmatprep.subr.mxu0 0.0
    %3731 = vmatpush1.msra.mxu0 0.0
    %3732 = vmatprep.subr.mxu0 0.0
    %3733 = vmatpush1.msra.mxu0 0.0
    %3734 = vmatprep.subr.mxu0 0.0
    %3735 = vmatpush1.msra.mxu0 0.0
    %3736 = vmatprep.subr.mxu0 0.0
    %3737 = vmatpush1.msra.mxu0 0.0
    %3738 = vmatprep.subr.mxu0 0.0
    %3739 = vmatpush1.msra.mxu0 0.0
    %3740 = vmatprep.subr.mxu0 0.0
    %3741 = vmatpush1.msra.mxu0 0.0
    %3742 = vmatprep.subr.mxu0 0.0
    %3743 = vmatpush1.msra.mxu0 %v3698
    %3744 = vmatprep.subr.mxu0 0.0
    %3745 = vmatpush1.msra.mxu0 %v3697
    %3746 = vmatprep.subr.mxu0 0.0
    %3747 = vmatpush2.msra.mxu0 0.0
    %3748 = vmatprep.subr.mxu0 0.0
    %3749 = vmatpush2.msra.mxu0 0.0
    %3750 = vmatprep.subr.mxu0 0.0
    %3751 = vmatpush2.msra.mxu0 0.0
    %3752 = vmatprep.subr.mxu0 0.0
    %3753 = vmatpush2.msra.mxu0 0.0
    %3754 = vmatprep.subr.mxu0 0.0
    %3755 = vmatpush2.msra.mxu0 0.0
    %3756 = vmatprep.subr.mxu0 0.0
    %3757 = vmatpush2.msra.mxu0 0.0
    %3758 = vmatprep.subr.mxu0 0.0
    %3759 = vmatpush2.msra.mxu0 0.0
    %3760 = vmatprep.subr.mxu0 0.0
    %3761 = vmatpush2.msra.mxu0 0.0
    %3762 = vmatprep.subr.mxu0 0.0
    %3763 = vmatpush2.msra.mxu0 0.0
    %3764 = vmatprep.subr.mxu0 0.0
    %3765 = vmatpush2.msra.mxu0 0.0
    %3766 = vmatprep.subr.mxu0 0.0
    %3767 = vmatpush2.msra.mxu0 0.0
    %3768 = vmatprep.subr.mxu0 0.0
    %3769 = vmatpush2.msra.mxu0 0.0
    %3770 = vmatprep.subr.mxu0 0.0
    %3771 = vmatpush2.msra.mxu0 0.0
    %3772 = vmatprep.subr.mxu0 0.0
    %3773 = vmatpush2.msra.mxu0 0.0
    %3774 = vmatprep.subr.mxu0 0.0
    %3775 = vmatpush2.msra.mxu0 0.0
    %3776 = vmatprep.subr.mxu0 0.0
    %3777 = vmatpush2.msra.mxu0 0.0
    %3778 = vmatprep.mubr.f32.mxu0 0.0
    %3779 = vmatmul.mubr.f32.gmra.mxu0 %v3712
    %v3780 = vpop.f32.mrf.mxu0
    %v3781 = vadd.f32 %v3709, %v3780
    %v3782 = vpop.f32.mrf.mxu0
    %3783 = vdwg.mxu0
    %vm3784 = vcmask 57344
    %v3785 = vsel %vm3784, %v3781, -inf
    %3786 = vmax.xlane.f32.xlu0 %v3785
    %v3787 = vpop.xlane.xlu0 %3786
    %v3788 = vsub.f32 %v3781, %v3787
    %v3789 = vmul.f32 %v3788, 1.442695
    %v3790 = vpow.pop %v3789
    %v3791 = vsel %vm3784, %v3790, 0.0
    %3792 = vadd.xlane.f32.xlu0 %v3791
    %v3793 = vpop.xlane.xlu0 %3792
    %v3794 = vrcp.pop %v3793
    %v3795 = vmul.f32 %v3790, %v3794
    %3796 = vst.msk [vmem:[#allocation22] sm:$0x1] %vm3784, %v3795
    %v3798 = vsel %vm3370, %v3795, 0
    %v3801 = vsel %vm3370, %v3598, 0
    %v3804 = vsel %vm3370, %v3599, 0
    %v3807 = vsel %vm3370, %v3600, 0
    %v3810 = vsel %vm3370, %v3601, 0
    %3812 = vmatprep.subr.mxu0 0.0
    %3813 = vmatpush1.xpose.msra.mxu0 0.0
    %3814 = vmatprep.subr.mxu0 0.0
    %3815 = vmatpush1.xpose.msra.mxu0 0.0
    %3816 = vmatprep.subr.mxu0 0.0
    %3817 = vmatpush1.xpose.msra.mxu0 0.0
    %3818 = vmatprep.subr.mxu0 0.0
    %3819 = vmatpush1.xpose.msra.mxu0 0.0
    %3820 = vmatprep.subr.mxu0 0.0
    %3821 = vmatpush1.xpose.msra.mxu0 0.0
    %3822 = vmatprep.subr.mxu0 0.0
    %3823 = vmatpush1.xpose.msra.mxu0 0.0
    %3824 = vmatprep.subr.mxu0 0.0
    %3825 = vmatpush1.xpose.msra.mxu0 0.0
    %3826 = vmatprep.subr.mxu0 0.0
    %3827 = vmatpush1.xpose.msra.mxu0 0.0
    %3828 = vmatprep.subr.mxu0 0.0
    %3829 = vmatpush1.xpose.msra.mxu0 0.0
    %3830 = vmatprep.subr.mxu0 0.0
    %3831 = vmatpush1.xpose.msra.mxu0 0.0
    %3832 = vmatprep.subr.mxu0 0.0
    %3833 = vmatpush1.xpose.msra.mxu0 0.0
    %3834 = vmatprep.subr.mxu0 0.0
    %3835 = vmatpush1.xpose.msra.mxu0 0.0
    %3836 = vmatprep.subr.mxu0 0.0
    %3837 = vmatpush1.xpose.msra.mxu0 %v3810
    %3838 = vmatprep.subr.mxu0 0.0
    %3839 = vmatpush1.xpose.msra.mxu0 %v3807
    %3840 = vmatprep.subr.mxu0 0.0
    %3841 = vmatpush1.xpose.msra.mxu0 %v3804
    %3842 = vmatprep.subr.mxu0 0.0
    %3843 = vmatpush1.xpose.msra.mxu0 %v3801
    %3844 = vmatprep.subr.mxu0 0.0
    %3845 = vmatpush2.xpose.msra.mxu0 0.0
    %3846 = vmatprep.subr.mxu0 0.0
    %3847 = vmatpush2.xpose.msra.mxu0 0.0
    %3848 = vmatprep.subr.mxu0 0.0
    %3849 = vmatpush2.xpose.msra.mxu0 0.0
    %3850 = vmatprep.subr.mxu0 0.0
    %3851 = vmatpush2.xpose.msra.mxu0 0.0
    %3852 = vmatprep.subr.mxu0 0.0
    %3853 = vmatpush2.xpose.msra.mxu0 0.0
    %3854 = vmatprep.subr.mxu0 0.0
    %3855 = vmatpush2.xpose.msra.mxu0 0.0
    %3856 = vmatprep.subr.mxu0 0.0
    %3857 = vmatpush2.xpose.msra.mxu0 0.0
    %3858 = vmatprep.subr.mxu0 0.0
    %3859 = vmatpush2.xpose.msra.mxu0 0.0
    %3860 = vmatprep.subr.mxu0 0.0
    %3861 = vmatpush2.xpose.msra.mxu0 0.0
    %3862 = vmatprep.subr.mxu0 0.0
    %3863 = vmatpush2.xpose.msra.mxu0 0.0
    %3864 = vmatprep.subr.mxu0 0.0
    %3865 = vmatpush2.xpose.msra.mxu0 0.0
    %3866 = vmatprep.subr.mxu0 0.0
    %3867 = vmatpush2.xpose.msra.mxu0 0.0
    %3868 = vmatprep.subr.mxu0 0.0
    %3869 = vmatpush2.xpose.msra.mxu0 0.0
    %3870 = vmatprep.subr.mxu0 0.0
    %3871 = vmatpush2.xpose.msra.mxu0 0.0
    %3872 = vmatprep.subr.mxu0 0.0
    %3873 = vmatpush2.xpose.msra.mxu0 0.0
    %3874 = vmatprep.subr.mxu0 0.0
    %3875 = vmatpush2.xpose.msra.mxu0 0.0
    %3876 = vmatprep.mubr.f32.mxu0 0.0
    %3877 = vmatmul.mubr.f32.gmra.mxu0 %v3798
    %v3878 = vpop.f32.mrf.mxu0
    %v3879 = vadd.f32 0.0, %v3878
    %v3880 = vpop.f32.mrf.mxu0
    %3881 = vdwg.mxu0
    %v3882 = vld [vmem:[#allocation15] sm:$0xff]
    %v3883 = vld [vmem:[#allocation15 + $0x8] sm:$0xff]
    %v3884 = vld [vmem:[#allocation15 + $0x10] sm:$0xff]
    %v3885 = vld [vmem:[#allocation15 + $0x18] sm:$0xff]
    %v3886 = vld [vmem:[#allocation13] sm:$0x1]
    %v3887 = vld [vmem:[#allocation16] sm:$0x1f]
    %vm3888 = vcmask 39936
    %v3890 = vsel %vm3888, %v3886, 0
    %vm3892 = vcmask 1044480
    %v3894 = vsel %vm3892, %v3887, 0
    %3896 = vmatprep.subr.mxu0 0.0
    %3897 = vmatpush1.msra.mxu0 0.0
    %3898 = vmatprep.subr.mxu0 0.0
    %3899 = vmatpush1.msra.mxu0 0.0
    %3900 = vmatprep.subr.mxu0 0.0
    %3901 = vmatpush1.msra.mxu0 0.0
    %3902 = vmatprep.subr.mxu0 0.0
    %3903 = vmatpush1.msra.mxu0 0.0
    %3904 = vmatprep.subr.mxu0 0.0
    %3905 = vmatpush1.msra.mxu0 0.0
    %3906 = vmatprep.subr.mxu0 0.0
    %3907 = vmatpush1.msra.mxu0 0.0
    %3908 = vmatprep.subr.mxu0 0.0
    %3909 = vmatpush1.msra.mxu0 0.0
    %3910 = vmatprep.subr.mxu0 0.0
    %3911 = vmatpush1.msra.mxu0 0.0
    %3912 = vmatprep.subr.mxu0 0.0
    %3913 = vmatpush1.msra.mxu0 0.0
    %3914 = vmatprep.subr.mxu0 0.0
    %3915 = vmatpush1.msra.mxu0 0.0
    %3916 = vmatprep.subr.mxu0 0.0
    %3917 = vmatpush1.msra.mxu0 0.0
    %3918 = vmatprep.subr.mxu0 0.0
    %3919 = vmatpush1.msra.mxu0 0.0
    %3920 = vmatprep.subr.mxu0 0.0
    %3921 = vmatpush1.msra.mxu0 0.0
    %3922 = vmatprep.subr.mxu0 0.0
    %3923 = vmatpush1.msra.mxu0 0.0
    %3924 = vmatprep.subr.mxu0 0.0
    %3925 = vmatpush1.msra.mxu0 0.0
    %3926 = vmatprep.subr.mxu0 0.0
    %3927 = vmatpush1.msra.mxu0 %v3894
    %3928 = vmatprep.subr.mxu0 0.0
    %3929 = vmatpush2.msra.mxu0 0.0
    %3930 = vmatprep.subr.mxu0 0.0
    %3931 = vmatpush2.msra.mxu0 0.0
    %3932 = vmatprep.subr.mxu0 0.0
    %3933 = vmatpush2.msra.mxu0 0.0
    %3934 = vmatprep.subr.mxu0 0.0
    %3935 = vmatpush2.msra.mxu0 0.0
    %3936 = vmatprep.subr.mxu0 0.0
    %3937 = vmatpush2.msra.mxu0 0.0
    %3938 = vmatprep.subr.mxu0 0.0
    %3939 = vmatpush2.msra.mxu0 0.0
    %3940 = vmatprep.subr.mxu0 0.0
    %3941 = vmatpush2.msra.mxu0 0.0
    %3942 = vmatprep.subr.mxu0 0.0
    %3943 = vmatpush2.msra.mxu0 0.0
    %3944 = vmatprep.subr.mxu0 0.0
    %3945 = vmatpush2.msra.mxu0 0.0
    %3946 = vmatprep.subr.mxu0 0.0
    %3947 = vmatpush2.msra.mxu0 0.0
    %3948 = vmatprep.subr.mxu0 0.0
    %3949 = vmatpush2.msra.mxu0 0.0
    %3950 = vmatprep.subr.mxu0 0.0
    %3951 = vmatpush2.msra.mxu0 0.0
    %3952 = vmatprep.subr.mxu0 0.0
    %3953 = vmatpush2.msra.mxu0 0.0
    %3954 = vmatprep.subr.mxu0 0.0
    %3955 = vmatpush2.msra.mxu0 0.0
    %3956 = vmatprep.subr.mxu0 0.0
    %3957 = vmatpush2.msra.mxu0 0.0
    %3958 = vmatprep.subr.mxu0 0.0
    %3959 = vmatpush2.msra.mxu0 0.0
    %3960 = vmatprep.mubr.f32.mxu0 0.0
    %3961 = vmatmul.mubr.f32.gmra.mxu0 %v3890
    %v3962 = vpop.f32.mrf.mxu0
    %v3963 = vadd.f32 0.0, %v3962
    %v3964 = vpop.f32.mrf.mxu0
    %3965 = vdwg.mxu0
    %v3967 = vsel %vm3500, %v3879, 0
    %3969 = vmatprep.subr.mxu0 0.0
    %3970 = vmatpush1.msra.mxu0 0.0
    %3971 = vmatprep.subr.mxu0 0.0
    %3972 = vmatpush1.msra.mxu0 0.0
    %3973 = vmatprep.subr.mxu0 0.0
    %3974 = vmatpush1.msra.mxu0 0.0
    %3975 = vmatprep.subr.mxu0 0.0
    %3976 = vmatpush1.msra.mxu0 0.0
    %3977 = vmatprep.subr.mxu0 0.0
    %3978 = vmatpush1.msra.mxu0 0.0
    %3979 = vmatprep.subr.mxu0 0.0
    %3980 = vmatpush1.msra.mxu0 0.0
    %3981 = vmatprep.subr.mxu0 0.0
    %3982 = vmatpush1.msra.mxu0 0.0
    %3983 = vmatprep.subr.mxu0 0.0
    %3984 = vmatpush1.msra.mxu0 0.0
    %3985 = vmatprep.subr.mxu0 0.0
    %3986 = vmatpush1.msra.mxu0 0.0
    %3987 = vmatprep.subr.mxu0 0.0
    %3988 = vmatpush1.msra.mxu0 0.0
    %3989 = vmatprep.subr.mxu0 0.0
    %3990 = vmatpush1.msra.mxu0 0.0
    %3991 = vmatprep.subr.mxu0 0.0
    %3992 = vmatpush1.msra.mxu0 0.0
    %3993 = vmatprep.subr.mxu0 0.0
    %3994 = vmatpush1.msra.mxu0 %v3885
    %3995 = vmatprep.subr.mxu0 0.0
    %3996 = vmatpush1.msra.mxu0 %v3884
    %3997 = vmatprep.subr.mxu0 0.0
    %3998 = vmatpush1.msra.mxu0 %v3883
    %3999 = vmatprep.subr.mxu0 0.0
    %4000 = vmatpush1.msra.mxu0 %v3882
    %4001 = vmatprep.subr.mxu0 0.0
    %4002 = vmatpush2.msra.mxu0 0.0
    %4003 = vmatprep.subr.mxu0 0.0
    %4004 = vmatpush2.msra.mxu0 0.0
    %4005 = vmatprep.subr.mxu0 0.0
    %4006 = vmatpush2.msra.mxu0 0.0
    %4007 = vmatprep.subr.mxu0 0.0
    %4008 = vmatpush2.msra.mxu0 0.0
    %4009 = vmatprep.subr.mxu0 0.0
    %4010 = vmatpush2.msra.mxu0 0.0
    %4011 = vmatprep.subr.mxu0 0.0
    %4012 = vmatpush2.msra.mxu0 0.0
    %4013 = vmatprep.subr.mxu0 0.0
    %4014 = vmatpush2.msra.mxu0 0.0
    %4015 = vmatprep.subr.mxu0 0.0
    %4016 = vmatpush2.msra.mxu0 0.0
    %4017 = vmatprep.subr.mxu0 0.0
    %4018 = vmatpush2.msra.mxu0 0.0
    %4019 = vmatprep.subr.mxu0 0.0
    %4020 = vmatpush2.msra.mxu0 0.0
    %4021 = vmatprep.subr.mxu0 0.0
    %4022 = vmatpush2.msra.mxu0 0.0
    %4023 = vmatprep.subr.mxu0 0.0
    %4024 = vmatpush2.msra.mxu0 0.0
    %4025 = vmatprep.subr.mxu0 0.0
    %4026 = vmatpush2.msra.mxu0 0.0
    %4027 = vmatprep.subr.mxu0 0.0
    %4028 = vmatpush2.msra.mxu0 0.0
    %4029 = vmatprep.subr.mxu0 0.0
    %4030 = vmatpush2.msra.mxu0 0.0
    %4031 = vmatprep.subr.mxu0 0.0
    %4032 = vmatpush2.msra.mxu0 0.0
    %4033 = vmatprep.mubr.f32.mxu0 0.0
    %4034 = vmatmul.mubr.f32.gmra.mxu0 %v3967
    %v4035 = vpop.f32.mrf.mxu0
    %v4036 = vadd.f32 %v3963, %v4035
    %v4037 = vpop.f32.mrf.mxu0
    %4038 = vdwg.mxu0
    %v4039 = vld [vmem:[#allocation18] sm:$0x1]
    %v4040 = vadd.f32 %v4036, %v4039
    %v4041 = vmax.f32 %v4040, 0.0
    %v4042 = vld [vmem:[%s16] sm:$0xff]
    %v4043 = vld [vmem:[%s16 + $0x8] sm:$0xff]
    %v4044 = vld [vmem:[%s16 + $0x10] sm:$0xff]
    %v4045 = vld [vmem:[%s16 + $0x18] sm:$0xff]
    %v4046 = vld [vmem:[%s16 + $0x20] sm:$0xff]
    %v4047 = vld [vmem:[%s16 + $0x28] sm:$0xff]
    %v4048 = vld [vmem:[%s16 + $0x30] sm:$0xff]
    %v4049 = vld [vmem:[%s16 + $0x38] sm:$0xff]
    %v4050 = vld [vmem:[#allocation19] sm:$0x1]
    %vm4051 = vcmask 523264
    %v4053 = vsel %vm4051, %v4041, 0
    %4055 = vmatprep.subr.mxu0 0.0
    %4056 = vmatpush1.msra.mxu0 0.0
    %4057 = vmatprep.subr.mxu0 0.0
    %4058 = vmatpush1.msra.mxu0 0.0
    %4059 = vmatprep.subr.mxu0 0.0
    %4060 = vmatpush1.msra.mxu0 0.0
    %4061 = vmatprep.subr.mxu0 0.0
    %4062 = vmatpush1.msra.mxu0 0.0
    %4063 = vmatprep.subr.mxu0 0.0
    %4064 = vmatpush1.msra.mxu0 0.0
    %4065 = vmatprep.subr.mxu0 0.0
    %4066 = vmatpush1.msra.mxu0 0.0
    %4067 = vmatprep.subr.mxu0 0.0
    %4068 = vmatpush1.msra.mxu0 0.0
    %4069 = vmatprep.subr.mxu0 0.0
    %4070 = vmatpush1.msra.mxu0 0.0
    %4071 = vmatprep.subr.mxu0 0.0
    %4072 = vmatpush1.msra.mxu0 %v4049
    %4073 = vmatprep.subr.mxu0 0.0
    %4074 = vmatpush1.msra.mxu0 %v4048
    %4075 = vmatprep.subr.mxu0 0.0
    %4076 = vmatpush1.msra.mxu0 %v4047
    %4077 = vmatprep.subr.mxu0 0.0
    %4078 = vmatpush1.msra.mxu0 %v4046
    %4079 = vmatprep.subr.mxu0 0.0
    %4080 = vmatpush1.msra.mxu0 %v4045
    %4081 = vmatprep.subr.mxu0 0.0
    %4082 = vmatpush1.msra.mxu0 %v4044
    %4083 = vmatprep.subr.mxu0 0.0
    %4084 = vmatpush1.msra.mxu0 %v4043
    %4085 = vmatprep.subr.mxu0 0.0
    %4086 = vmatpush1.msra.mxu0 %v4042
    %4087 = vmatprep.subr.mxu0 0.0
    %4088 = vmatpush2.msra.mxu0 0.0
    %4089 = vmatprep.subr.mxu0 0.0
    %4090 = vmatpush2.msra.mxu0 0.0
    %4091 = vmatprep.subr.mxu0 0.0
    %4092 = vmatpush2.msra.mxu0 0.0
    %4093 = vmatprep.subr.mxu0 0.0
    %4094 = vmatpush2.msra.mxu0 0.0
    %4095 = vmatprep.subr.mxu0 0.0
    %4096 = vmatpush2.msra.mxu0 0.0
    %4097 = vmatprep.subr.mxu0 0.0
    %4098 = vmatpush2.msra.mxu0 0.0
    %4099 = vmatprep.subr.mxu0 0.0
    %4100 = vmatpush2.msra.mxu0 0.0
    %4101 = vmatprep.subr.mxu0 0.0
    %4102 = vmatpush2.msra.mxu0 0.0
    %4103 = vmatprep.subr.mxu0 0.0
    %4104 = vmatpush2.msra.mxu0 0.0
    %4105 = vmatprep.subr.mxu0 0.0
    %4106 = vmatpush2.msra.mxu0 0.0
    %4107 = vmatprep.subr.mxu0 0.0
    %4108 = vmatpush2.msra.mxu0 0.0
    %4109 = vmatprep.subr.mxu0 0.0
    %4110 = vmatpush2.msra.mxu0 0.0
    %4111 = vmatprep.subr.mxu0 0.0
    %4112 = vmatpush2.msra.mxu0 0.0
    %4113 = vmatprep.subr.mxu0 0.0
    %4114 = vmatpush2.msra.mxu0 0.0
    %4115 = vmatprep.subr.mxu0 0.0
    %4116 = vmatpush2.msra.mxu0 0.0
    %4117 = vmatprep.subr.mxu0 0.0
    %4118 = vmatpush2.msra.mxu0 0.0
    %4119 = vmatprep.mubr.f32.mxu0 0.0
    %4120 = vmatmul.mubr.f32.gmra.mxu0 %v4053
    %v4121 = vpop.f32.mrf.mxu0
    %v4122 = vadd.f32 %v4050, %v4121
    %v4123 = vpop.f32.mrf.mxu0
    %4124 = vdwg.mxu0
    %vm4125 = vcmask 8192
    %4126 = vst.msk [vmem:[#allocation21] sm:$0x1] %vm4125, %v4122
    // Predicated region
    $region114: #{mil_net_forward.1} parent=1 // pred_check
      _
    $region115: #{mil_net_forward.1} parent=1 // pred_check_branch
      %4128 = sbr.rel (0) target = $region117
    $region116: #{mil_net_forward.1} parent=1 // pred_region
      %s4130 = ssub.s32 16, 16
      %4131 = vsyncadd [#allocation6], %s4130
      %s4133 = sshll.u32 [#allocation21], 4
      %s4134 = int_to_ptr.vmem [resolvable:$true] %s4133
      %4136 = dma.vmem_to_hbm [thread:$0]  %s4134, 16, %s18, [#allocation6]
    $region117: #{mil_net_forward.1} parent=1 // pred_fallthru
      _
    // Predicated region
    $region118: #{mil_net_forward.1} parent=1 // pred_check
      _
    $region119: #{mil_net_forward.1} parent=1 // pred_check_branch
      %4138 = sbr.rel (0) target = $region121
    $region120: #{mil_net_forward.1} parent=1 // pred_region
      %s4140 = ssub.s32 16, 16
      %4141 = vsyncadd [#allocation23], %s4140
      %s4143 = sshll.u32 [#allocation22], 4
      %s4144 = int_to_ptr.vmem [resolvable:$true] %s4143
      %4146 = dma.vmem_to_hbm [thread:$0]  %s4144, 16, %s19, [#allocation23]
    $region121: #{mil_net_forward.1} parent=1 // pred_fallthru
      _
    // Predicated region
    $region122: #{mil_net_forward.1} parent=1 // pred_check
      _
    $region123: #{mil_net_forward.1} parent=1 // pred_check_branch
      %4148 = sbr.rel (0) target = $region125
    $region124: #{mil_net_forward.1} parent=1 // pred_region
      %4149 = dma.done [#allocation6], 16
    $region125: #{mil_net_forward.1} parent=1 // pred_fallthru
      _
    // Predicated region
    $region126: #{mil_net_forward.1} parent=1 // pred_check
      _
    $region127: #{mil_net_forward.1} parent=1 // pred_check_branch
      %4151 = sbr.rel (0) target = $region129
    $region128: #{mil_net_forward.1} parent=1 // pred_region
      %4152 = dma.done [#allocation23], 16
    $region129: #{mil_net_forward.1} parent=1 // pred_fallthru
      _
    %4153 = vsyncpa [#allocation5], 1
    %4154 = vsyncpa [#allocation8], 1
    %4155 = vsyncpa [#allocation11], 1
    %4156 = vsyncpa [#allocation14], 1
    %4157 = vsyncpa [#allocation17], 1
    %4158 = vsyncpa [#allocation20], 1
    %4159 = vsyncpa [#allocation6], 1
    %4160 = vsyncpa [#allocation23], 1

</llo_original>
